<compile_context>
chip_gen: v7x
topology: tpu7x:2x2x1
jax: 0.10.0
libtpu: 0.0.40
codegen_flags: <defaults>
</compile_context>

<pallas_src>
import functools

import jax
import jax.numpy as jnp
import numpy as np
from jax.experimental import pallas as pl
from jax.experimental.pallas import tpu as pltpu

K = 7            # temporal extent of both (1,7) and (7,1) convolutions
NEG_SLOPE = 0.02  # nn.LeakyReLU(0.02) in ConvBatchBlock
BN_EPS = 1e-5


# ---------------------------------------------------------------------------
# lane-shift helpers (jnp.roll convention: roll(x, s)[p] == x[(p - s) % N])
# ---------------------------------------------------------------------------
def _read_ahead(x, d):
    """result[:, p] = x[:, (p + d) % N]  (shift data left by d lanes)."""
    if d == 0:
        return x
    n = x.shape[-1]
    return pltpu.roll(x, n - d, axis=1)


def _read_behind(x, d):
    """result[:, p] = x[:, (p - d) % N]  (shift data right by d lanes)."""
    if d == 0:
        return x
    return pltpu.roll(x, d, axis=1)


def _segment_mean_bcast(act, scale_row, start_row, dists):
    """Masked per-segment mean along lanes, broadcast back to every lane.

    act       : (R, N) activations
    scale_row : (1, N) 1/num_valid on valid lanes of each segment, 0 elsewhere
    start_row : (1, N) 1.0 on the first lane of each segment, 0 elsewhere
    dists     : power-of-two shift distances covering the segment, largest first
    """
    t = act * scale_row
    for d in dists:                      # tree-sum: segment mean lands on its first lane
        t = t + _read_ahead(t, d)
    t = t * start_row                    # keep only segment-start lanes
    for d in reversed(dists):            # fill the whole segment from its first lane
        t = t + _read_behind(t, d)
    return t


# ---------------------------------------------------------------------------
# kernel
# ---------------------------------------------------------------------------
def _cb_attention_kernel(x_ref, m_ref, w1_ref, b1_ref, w2_ref, b2_ref,
                         o_ref, aw_ref, ah_ref, *, B, C, H, W):
    """Single invocation (no grid).

    x_ref : (C*B, H*W) VMEM   input slab, rows = (c, b), lanes = h*W + w
    m_ref : (4, H*W)   VMEM   [scale_w, scale_h, start_w, start_h]
    w1_ref: (K*C*C,)   SMEM   folded (1,7) conv weights, idx = (k*C+c_in)*C+c_out
    b1_ref: (C,)       SMEM   folded BN bias, (1,7) branch
    w2_ref: (K*C*C,)   SMEM   folded (7,1) conv weights
    b2_ref: (C,)       SMEM   folded BN bias, (7,1) branch
    o_ref : (C*B, H*W) VMEM   sigmoid attention map
    aw_ref, ah_ref : (C*B, H*W) VMEM scratch (LeakyReLU'd conv activations)
    """
    x = x_ref[...]                                          # (C*B, H*W) f32

    # ---- ConvBatchBlock: 7-tap channel-mixing conv as shifted VPU adds ----
    def conv_branch(shifts, w_ref, b_ref, out_ref):
        rolled = [_read_ahead(x, s) for s in shifts]        # K x (C*B, HW)
        rows = [[r[c * B:(c + 1) * B, :] for c in range(C)] for r in rolled]
        for c_out in range(C):
            acc = None
            for k in range(K):
                for c_in in range(C):
                    w = w_ref[(k * C + c_in) * C + c_out]   # f32 scalar from SMEM
                    term = rows[k][c_in] * w
                    acc = term if acc is None else acc + term
            acc = acc + b_ref[c_out]                        # folded-BN bias (pre-ReLU)
            acc = jnp.where(acc >= 0, acc, NEG_SLOPE * acc)  # LeakyReLU(0.02)
            out_ref[c_out * B:(c_out + 1) * B, :] = acc     # assemble lane-dense slab

    conv_branch([k for k in range(K)], w1_ref, b1_ref, aw_ref)      # (1,7) conv
    conv_branch([k * W for k in range(K)], w2_ref, b2_ref, ah_ref)  # (7,1) conv

    # ---- masked means over w / over h + broadcast back (lane butterflies) ----
    scale_w, scale_h = m_ref[0:1, :], m_ref[1:2, :]
    start_w, start_h = m_ref[2:3, :], m_ref[3:4, :]
    w_dists = tuple(W >> i for i in range(1, W.bit_length()))        # W/2 ... 1
    h_dists = tuple((H >> i) * W for i in range(1, H.bit_length()))  # (H/2)*W ... W

    wf = _segment_mean_bcast(aw_ref[...], scale_w, start_w, w_dists)  # mean over dim=3
    hf = _segment_mean_bcast(ah_ref[...], scale_h, start_h, h_dists)  # mean over dim=2

    # ---- broadcasted outer product + sigmoid, single dense store ----
    o_ref[...] = jax.nn.sigmoid(wf * hf).astype(o_ref.dtype)


# ---------------------------------------------------------------------------
# wrapper / glue
# ---------------------------------------------------------------------------
def cb_attention_pallas(x_nchw, w1_oihw, b1_vec, w2_oihw, b2_vec):
    """x_nchw: (B, C, H, W) f32; conv weights OIHW with eval-mode BN already folded."""
    B, C, H, W = x_nchw.shape
    assert H >= K and W >= K, "valid 7-tap conv needs H, W >= 7"
    assert (H & (H - 1)) == 0 and (W & (W - 1)) == 0, "butterfly mean needs pow-2 H, W"
    HW = H * W
    Wo = W - (K - 1)
    Ho = H - (K - 1)

    # lane-dense kernel layout: rows = (c, b), lanes = h*W + w
    x2d = jnp.transpose(x_nchw, (1, 0, 2, 3)).reshape(C * B, HW).astype(jnp.float32)

    # flattened weights for SMEM scalar reads: flat[(k*C + c_in)*C + c_out]
    w1_flat = jnp.transpose(w1_oihw[:, :, 0, :], (2, 1, 0)).reshape(-1)
    w2_flat = jnp.transpose(w2_oihw[:, :, :, 0], (2, 1, 0)).reshape(-1)

    # constant scale/start vectors: valid-region masks with 1/Wo, 1/Ho folded in
    p = np.arange(HW)
    wcol, hrow = p % W, p // W
    masks = jnp.asarray(np.stack([
        np.where(wcol < Wo, 1.0 / Wo, 0.0),   # scale_w: valid width positions
        np.where(hrow < Ho, 1.0 / Ho, 0.0),   # scale_h: valid height positions
        (wcol == 0).astype(np.float64),       # start_w: first lane of each w-segment
        (hrow == 0).astype(np.float64),       # start_h: first lane of each h-segment
    ]), dtype=jnp.float32)                    # (4, HW)

    kernel = functools.partial(_cb_attention_kernel, B=B, C=C, H=H, W=W)
    out2d = pl.pallas_call(
        kernel,
        out_shape=jax.ShapeDtypeStruct((C * B, HW), jnp.float32),
        in_specs=[
            pl.BlockSpec(memory_space=pltpu.MemorySpace.VMEM),   # x slab
            pl.BlockSpec(memory_space=pltpu.MemorySpace.VMEM),   # scale/start vectors
            pl.BlockSpec(memory_space=pltpu.MemorySpace.SMEM),   # (1,7) weights
            pl.BlockSpec(memory_space=pltpu.MemorySpace.SMEM),   # (1,7) bias
            pl.BlockSpec(memory_space=pltpu.MemorySpace.SMEM),   # (7,1) weights
            pl.BlockSpec(memory_space=pltpu.MemorySpace.SMEM),   # (7,1) bias
        ],
        out_specs=pl.BlockSpec(memory_space=pltpu.MemorySpace.VMEM),
        scratch_shapes=[
            pltpu.VMEM((C * B, HW), jnp.float32),   # width-branch activations
            pltpu.VMEM((C * B, HW), jnp.float32),   # height-branch activations
        ],
    )(x2d, masks, w1_flat, b1_vec, w2_flat, b2_vec)

    # back to PyTorch NCHW
    return jnp.transpose(out2d.reshape(C, B, H, W), (1, 0, 2, 3))


def fold_bn(conv_w, gamma, beta, run_mean, run_var):
    """Fold eval-mode BatchNorm into conv weight (OIHW) + bias."""
    scale = gamma / jnp.sqrt(run_var + BN_EPS)                 # (out_c,)
    w_folded = conv_w * scale[:, None, None, None]
    b_folded = beta - run_mean * scale
    return w_folded, b_folded


def reference_nchw(x_nchw, w1, bn1, w2, bn2):
    """Pure-JAX reference mirroring the PyTorch forward (eval-mode BN)."""
    def conv_bn_lrelu(x, w, bn):
        g, b, m, v = bn
        y = jax.lax.conv_general_dilated(
            x, w, window_strides=(1, 1), padding="VALID",
            dimension_numbers=("NCHW", "OIHW", "NCHW"))
        y = (y - m[None, :, None, None]) / jnp.sqrt(v[None, :, None, None] + BN_EPS)
        y = y * g[None, :, None, None] + b[None, :, None, None]
        return jnp.where(y >= 0, y, NEG_SLOPE * y)

    wf = conv_bn_lrelu(x_nchw, w1, bn1).mean(axis=3, keepdims=True)  # (B,C,H,1)
    hf = conv_bn_lrelu(x_nchw, w2, bn2).mean(axis=2, keepdims=True)  # (B,C,1,W)
    return jax.nn.sigmoid(wf * hf)                                    # (B,C,H,W)


if __name__ == "__main__":
    B, C, H, W = 2, 4, 16, 16

    key = jax.random.PRNGKey(0)
    k_x, k_w1, k_w2, k_bn1, k_bn2 = jax.random.split(key, 5)

    # Input, PyTorch NCHW convention.
    x_nchw = jax.random.normal(k_x, (B, C, H, W), jnp.float32)

    # Conv weights (OIHW), bias=False as in the module.
    w1 = 0.2 * jax.random.normal(k_w1, (C, C, 1, K), jnp.float32)   # (1,7) conv
    w2 = 0.2 * jax.random.normal(k_w2, (C, C, K, 1), jnp.float32)   # (7,1) conv

    # BatchNorm params (eval-mode running stats), deterministic & non-trivial.
    def make_bn(k):
        ka, kb, km, kv = jax.random.split(k, 4)
        gamma = 1.0 + 0.1 * jax.random.normal(ka, (C,), jnp.float32)
        beta = 0.1 * jax.random.normal(kb, (C,), jnp.float32)
        mean = 0.1 * jax.random.normal(km, (C,), jnp.float32)
        var = 0.5 + jnp.abs(jax.random.normal(kv, (C,), jnp.float32))
        return gamma, beta, mean, var

    bn1 = make_bn(k_bn1)
    bn2 = make_bn(k_bn2)

    # glue: fold BN into the conv weights/biases
    w1_folded, b1_folded = fold_bn(w1, *bn1)   # (C, C, 1, 7), (C,)
    w2_folded, b2_folded = fold_bn(w2, *bn2)   # (C, C, 7, 1), (C,)

    out_nchw = jax.block_until_ready(
        cb_attention_pallas(x_nchw, w1_folded, b1_folded, w2_folded, b2_folded))

    # Cross-check against a pure-JAX NCHW reference of the PyTorch forward.
    ref = jax.block_until_ready(reference_nchw(x_nchw, w1, bn1, w2, bn2))
    assert out_nchw.shape == (B, C, H, W)
    err = float(jnp.max(jnp.abs(out_nchw - ref)))
    assert jnp.allclose(out_nchw, ref, rtol=1e-4, atol=1e-5), err

    print("KERNEL_OK")
</pallas_src>

<mosaic_0001>
module attributes {stable_mosaic.version = 11 : i64} {
  func.func @_cb_attention_kernel(%arg0: memref<8x256xf32, #tpu.memory_space<vmem>>, %arg1: memref<4x256xf32, #tpu.memory_space<vmem>>, %arg2: memref<112xf32, #tpu.memory_space<smem>>, %arg3: memref<4xf32, #tpu.memory_space<smem>>, %arg4: memref<112xf32, #tpu.memory_space<smem>>, %arg5: memref<4xf32, #tpu.memory_space<smem>>, %arg6: memref<8x256xf32, #tpu.memory_space<vmem>>, %arg7: memref<8x256xf32, #tpu.memory_space<vmem>>, %arg8: memref<8x256xf32, #tpu.memory_space<vmem>>) attributes {dimension_semantics = [], scalar_prefetch = 0 : i64, scratch_operands = 2 : i64, tpu.core_type = #tpu.core_type<tc>} {
    %c0 = arith.constant 0 : index
    %c0_0 = arith.constant 0 : index
    %0 = vector.load %arg0[%c0, %c0_0] : memref<8x256xf32, #tpu.memory_space<vmem>>, vector<8x256xf32>
    %c255_i32 = arith.constant 255 : i32
    %1 = tpu.dynamic_rotate %0 by %c255_i32 dim 1 : vector<8x256xf32>, i32 -> vector<8x256xf32>
    %c254_i32 = arith.constant 254 : i32
    %2 = tpu.dynamic_rotate %0 by %c254_i32 dim 1 : vector<8x256xf32>, i32 -> vector<8x256xf32>
    %c253_i32 = arith.constant 253 : i32
    %3 = tpu.dynamic_rotate %0 by %c253_i32 dim 1 : vector<8x256xf32>, i32 -> vector<8x256xf32>
    %c252_i32 = arith.constant 252 : i32
    %4 = tpu.dynamic_rotate %0 by %c252_i32 dim 1 : vector<8x256xf32>, i32 -> vector<8x256xf32>
    %c251_i32 = arith.constant 251 : i32
    %5 = tpu.dynamic_rotate %0 by %c251_i32 dim 1 : vector<8x256xf32>, i32 -> vector<8x256xf32>
    %c250_i32 = arith.constant 250 : i32
    %6 = tpu.dynamic_rotate %0 by %c250_i32 dim 1 : vector<8x256xf32>, i32 -> vector<8x256xf32>
    %7 = vector.extract_strided_slice %0 {offsets = [0, 0], sizes = [2, 256], strides = [1, 1]} : vector<8x256xf32> to vector<2x256xf32>
    %8 = vector.extract_strided_slice %0 {offsets = [2, 0], sizes = [2, 256], strides = [1, 1]} : vector<8x256xf32> to vector<2x256xf32>
    %9 = vector.extract_strided_slice %0 {offsets = [4, 0], sizes = [2, 256], strides = [1, 1]} : vector<8x256xf32> to vector<2x256xf32>
    %10 = vector.extract_strided_slice %0 {offsets = [6, 0], sizes = [2, 256], strides = [1, 1]} : vector<8x256xf32> to vector<2x256xf32>
    %11 = vector.extract_strided_slice %1 {offsets = [0, 0], sizes = [2, 256], strides = [1, 1]} : vector<8x256xf32> to vector<2x256xf32>
    %12 = vector.extract_strided_slice %1 {offsets = [2, 0], sizes = [2, 256], strides = [1, 1]} : vector<8x256xf32> to vector<2x256xf32>
    %13 = vector.extract_strided_slice %1 {offsets = [4, 0], sizes = [2, 256], strides = [1, 1]} : vector<8x256xf32> to vector<2x256xf32>
    %14 = vector.extract_strided_slice %1 {offsets = [6, 0], sizes = [2, 256], strides = [1, 1]} : vector<8x256xf32> to vector<2x256xf32>
    %15 = vector.extract_strided_slice %2 {offsets = [0, 0], sizes = [2, 256], strides = [1, 1]} : vector<8x256xf32> to vector<2x256xf32>
    %16 = vector.extract_strided_slice %2 {offsets = [2, 0], sizes = [2, 256], strides = [1, 1]} : vector<8x256xf32> to vector<2x256xf32>
    %17 = vector.extract_strided_slice %2 {offsets = [4, 0], sizes = [2, 256], strides = [1, 1]} : vector<8x256xf32> to vector<2x256xf32>
    %18 = vector.extract_strided_slice %2 {offsets = [6, 0], sizes = [2, 256], strides = [1, 1]} : vector<8x256xf32> to vector<2x256xf32>
    %19 = vector.extract_strided_slice %3 {offsets = [0, 0], sizes = [2, 256], strides = [1, 1]} : vector<8x256xf32> to vector<2x256xf32>
    %20 = vector.extract_strided_slice %3 {offsets = [2, 0], sizes = [2, 256], strides = [1, 1]} : vector<8x256xf32> to vector<2x256xf32>
    %21 = vector.extract_strided_slice %3 {offsets = [4, 0], sizes = [2, 256], strides = [1, 1]} : vector<8x256xf32> to vector<2x256xf32>
    %22 = vector.extract_strided_slice %3 {offsets = [6, 0], sizes = [2, 256], strides = [1, 1]} : vector<8x256xf32> to vector<2x256xf32>
    %23 = vector.extract_strided_slice %4 {offsets = [0, 0], sizes = [2, 256], strides = [1, 1]} : vector<8x256xf32> to vector<2x256xf32>
    %24 = vector.extract_strided_slice %4 {offsets = [2, 0], sizes = [2, 256], strides = [1, 1]} : vector<8x256xf32> to vector<2x256xf32>
    %25 = vector.extract_strided_slice %4 {offsets = [4, 0], sizes = [2, 256], strides = [1, 1]} : vector<8x256xf32> to vector<2x256xf32>
    %26 = vector.extract_strided_slice %4 {offsets = [6, 0], sizes = [2, 256], strides = [1, 1]} : vector<8x256xf32> to vector<2x256xf32>
    %27 = vector.extract_strided_slice %5 {offsets = [0, 0], sizes = [2, 256], strides = [1, 1]} : vector<8x256xf32> to vector<2x256xf32>
    %28 = vector.extract_strided_slice %5 {offsets = [2, 0], sizes = [2, 256], strides = [1, 1]} : vector<8x256xf32> to vector<2x256xf32>
    %29 = vector.extract_strided_slice %5 {offsets = [4, 0], sizes = [2, 256], strides = [1, 1]} : vector<8x256xf32> to vector<2x256xf32>
    %30 = vector.extract_strided_slice %5 {offsets = [6, 0], sizes = [2, 256], strides = [1, 1]} : vector<8x256xf32> to vector<2x256xf32>
    %31 = vector.extract_strided_slice %6 {offsets = [0, 0], sizes = [2, 256], strides = [1, 1]} : vector<8x256xf32> to vector<2x256xf32>
    %32 = vector.extract_strided_slice %6 {offsets = [2, 0], sizes = [2, 256], strides = [1, 1]} : vector<8x256xf32> to vector<2x256xf32>
    %33 = vector.extract_strided_slice %6 {offsets = [4, 0], sizes = [2, 256], strides = [1, 1]} : vector<8x256xf32> to vector<2x256xf32>
    %34 = vector.extract_strided_slice %6 {offsets = [6, 0], sizes = [2, 256], strides = [1, 1]} : vector<8x256xf32> to vector<2x256xf32>
    %c0_1 = arith.constant 0 : index
    %35 = memref.load %arg2[%c0_1] : memref<112xf32, #tpu.memory_space<smem>>
    %36 = vector.broadcast %35 : f32 to vector<2x256xf32>
    %37 = arith.mulf %7, %36 : vector<2x256xf32>
    %c4 = arith.constant 4 : index
    %38 = memref.load %arg2[%c4] : memref<112xf32, #tpu.memory_space<smem>>
    %39 = vector.broadcast %38 : f32 to vector<2x256xf32>
    %40 = arith.mulf %8, %39 : vector<2x256xf32>
    %41 = arith.addf %37, %40 : vector<2x256xf32>
    %c8 = arith.constant 8 : index
    %42 = memref.load %arg2[%c8] : memref<112xf32, #tpu.memory_space<smem>>
    %43 = vector.broadcast %42 : f32 to vector<2x256xf32>
    %44 = arith.mulf %9, %43 : vector<2x256xf32>
    %45 = arith.addf %41, %44 : vector<2x256xf32>
    %c12 = arith.constant 12 : index
    %46 = memref.load %arg2[%c12] : memref<112xf32, #tpu.memory_space<smem>>
    %47 = vector.broadcast %46 : f32 to vector<2x256xf32>
    %48 = arith.mulf %10, %47 : vector<2x256xf32>
    %49 = arith.addf %45, %48 : vector<2x256xf32>
    %c16 = arith.constant 16 : index
    %50 = memref.load %arg2[%c16] : memref<112xf32, #tpu.memory_space<smem>>
    %51 = vector.broadcast %50 : f32 to vector<2x256xf32>
    %52 = arith.mulf %11, %51 : vector<2x256xf32>
    %53 = arith.addf %49, %52 : vector<2x256xf32>
    %c20 = arith.constant 20 : index
    %54 = memref.load %arg2[%c20] : memref<112xf32, #tpu.memory_space<smem>>
    %55 = vector.broadcast %54 : f32 to vector<2x256xf32>
    %56 = arith.mulf %12, %55 : vector<2x256xf32>
    %57 = arith.addf %53, %56 : vector<2x256xf32>
    %c24 = arith.constant 24 : index
    %58 = memref.load %arg2[%c24] : memref<112xf32, #tpu.memory_space<smem>>
    %59 = vector.broadcast %58 : f32 to vector<2x256xf32>
    %60 = arith.mulf %13, %59 : vector<2x256xf32>
    %61 = arith.addf %57, %60 : vector<2x256xf32>
    %c28 = arith.constant 28 : index
    %62 = memref.load %arg2[%c28] : memref<112xf32, #tpu.memory_space<smem>>
    %63 = vector.broadcast %62 : f32 to vector<2x256xf32>
    %64 = arith.mulf %14, %63 : vector<2x256xf32>
    %65 = arith.addf %61, %64 : vector<2x256xf32>
    %c32 = arith.constant 32 : index
    %66 = memref.load %arg2[%c32] : memref<112xf32, #tpu.memory_space<smem>>
    %67 = vector.broadcast %66 : f32 to vector<2x256xf32>
    %68 = arith.mulf %15, %67 : vector<2x256xf32>
    %69 = arith.addf %65, %68 : vector<2x256xf32>
    %c36 = arith.constant 36 : index
    %70 = memref.load %arg2[%c36] : memref<112xf32, #tpu.memory_space<smem>>
    %71 = vector.broadcast %70 : f32 to vector<2x256xf32>
    %72 = arith.mulf %16, %71 : vector<2x256xf32>
    %73 = arith.addf %69, %72 : vector<2x256xf32>
    %c40 = arith.constant 40 : index
    %74 = memref.load %arg2[%c40] : memref<112xf32, #tpu.memory_space<smem>>
    %75 = vector.broadcast %74 : f32 to vector<2x256xf32>
    %76 = arith.mulf %17, %75 : vector<2x256xf32>
    %77 = arith.addf %73, %76 : vector<2x256xf32>
    %c44 = arith.constant 44 : index
    %78 = memref.load %arg2[%c44] : memref<112xf32, #tpu.memory_space<smem>>
    %79 = vector.broadcast %78 : f32 to vector<2x256xf32>
    %80 = arith.mulf %18, %79 : vector<2x256xf32>
    %81 = arith.addf %77, %80 : vector<2x256xf32>
    %c48 = arith.constant 48 : index
    %82 = memref.load %arg2[%c48] : memref<112xf32, #tpu.memory_space<smem>>
    %83 = vector.broadcast %82 : f32 to vector<2x256xf32>
    %84 = arith.mulf %19, %83 : vector<2x256xf32>
    %85 = arith.addf %81, %84 : vector<2x256xf32>
    %c52 = arith.constant 52 : index
    %86 = memref.load %arg2[%c52] : memref<112xf32, #tpu.memory_space<smem>>
    %87 = vector.broadcast %86 : f32 to vector<2x256xf32>
    %88 = arith.mulf %20, %87 : vector<2x256xf32>
    %89 = arith.addf %85, %88 : vector<2x256xf32>
    %c56 = arith.constant 56 : index
    %90 = memref.load %arg2[%c56] : memref<112xf32, #tpu.memory_space<smem>>
    %91 = vector.broadcast %90 : f32 to vector<2x256xf32>
    %92 = arith.mulf %21, %91 : vector<2x256xf32>
    %93 = arith.addf %89, %92 : vector<2x256xf32>
    %c60 = arith.constant 60 : index
    %94 = memref.load %arg2[%c60] : memref<112xf32, #tpu.memory_space<smem>>
    %95 = vector.broadcast %94 : f32 to vector<2x256xf32>
    %96 = arith.mulf %22, %95 : vector<2x256xf32>
    %97 = arith.addf %93, %96 : vector<2x256xf32>
    %c64 = arith.constant 64 : index
    %98 = memref.load %arg2[%c64] : memref<112xf32, #tpu.memory_space<smem>>
    %99 = vector.broadcast %98 : f32 to vector<2x256xf32>
    %100 = arith.mulf %23, %99 : vector<2x256xf32>
    %101 = arith.addf %97, %100 : vector<2x256xf32>
    %c68 = arith.constant 68 : index
    %102 = memref.load %arg2[%c68] : memref<112xf32, #tpu.memory_space<smem>>
    %103 = vector.broadcast %102 : f32 to vector<2x256xf32>
    %104 = arith.mulf %24, %103 : vector<2x256xf32>
    %105 = arith.addf %101, %104 : vector<2x256xf32>
    %c72 = arith.constant 72 : index
    %106 = memref.load %arg2[%c72] : memref<112xf32, #tpu.memory_space<smem>>
    %107 = vector.broadcast %106 : f32 to vector<2x256xf32>
    %108 = arith.mulf %25, %107 : vector<2x256xf32>
    %109 = arith.addf %105, %108 : vector<2x256xf32>
    %c76 = arith.constant 76 : index
    %110 = memref.load %arg2[%c76] : memref<112xf32, #tpu.memory_space<smem>>
    %111 = vector.broadcast %110 : f32 to vector<2x256xf32>
    %112 = arith.mulf %26, %111 : vector<2x256xf32>
    %113 = arith.addf %109, %112 : vector<2x256xf32>
    %c80 = arith.constant 80 : index
    %114 = memref.load %arg2[%c80] : memref<112xf32, #tpu.memory_space<smem>>
    %115 = vector.broadcast %114 : f32 to vector<2x256xf32>
    %116 = arith.mulf %27, %115 : vector<2x256xf32>
    %117 = arith.addf %113, %116 : vector<2x256xf32>
    %c84 = arith.constant 84 : index
    %118 = memref.load %arg2[%c84] : memref<112xf32, #tpu.memory_space<smem>>
    %119 = vector.broadcast %118 : f32 to vector<2x256xf32>
    %120 = arith.mulf %28, %119 : vector<2x256xf32>
    %121 = arith.addf %117, %120 : vector<2x256xf32>
    %c88 = arith.constant 88 : index
    %122 = memref.load %arg2[%c88] : memref<112xf32, #tpu.memory_space<smem>>
    %123 = vector.broadcast %122 : f32 to vector<2x256xf32>
    %124 = arith.mulf %29, %123 : vector<2x256xf32>
    %125 = arith.addf %121, %124 : vector<2x256xf32>
    %c92 = arith.constant 92 : index
    %126 = memref.load %arg2[%c92] : memref<112xf32, #tpu.memory_space<smem>>
    %127 = vector.broadcast %126 : f32 to vector<2x256xf32>
    %128 = arith.mulf %30, %127 : vector<2x256xf32>
    %129 = arith.addf %125, %128 : vector<2x256xf32>
    %c96 = arith.constant 96 : index
    %130 = memref.load %arg2[%c96] : memref<112xf32, #tpu.memory_space<smem>>
    %131 = vector.broadcast %130 : f32 to vector<2x256xf32>
    %132 = arith.mulf %31, %131 : vector<2x256xf32>
    %133 = arith.addf %129, %132 : vector<2x256xf32>
    %c100 = arith.constant 100 : index
    %134 = memref.load %arg2[%c100] : memref<112xf32, #tpu.memory_space<smem>>
    %135 = vector.broadcast %134 : f32 to vector<2x256xf32>
    %136 = arith.mulf %32, %135 : vector<2x256xf32>
    %137 = arith.addf %133, %136 : vector<2x256xf32>
    %c104 = arith.constant 104 : index
    %138 = memref.load %arg2[%c104] : memref<112xf32, #tpu.memory_space<smem>>
    %139 = vector.broadcast %138 : f32 to vector<2x256xf32>
    %140 = arith.mulf %33, %139 : vector<2x256xf32>
    %141 = arith.addf %137, %140 : vector<2x256xf32>
    %c108 = arith.constant 108 : index
    %142 = memref.load %arg2[%c108] : memref<112xf32, #tpu.memory_space<smem>>
    %143 = vector.broadcast %142 : f32 to vector<2x256xf32>
    %144 = arith.mulf %34, %143 : vector<2x256xf32>
    %145 = arith.addf %141, %144 : vector<2x256xf32>
    %c0_2 = arith.constant 0 : index
    %146 = memref.load %arg3[%c0_2] : memref<4xf32, #tpu.memory_space<smem>>
    %147 = vector.broadcast %146 : f32 to vector<2x256xf32>
    %148 = arith.addf %145, %147 : vector<2x256xf32>
    %cst = arith.constant 0.000000e+00 : f32
    %149 = vector.broadcast %cst : f32 to vector<2x256xf32>
    %150 = arith.cmpf oge, %148, %149 : vector<2x256xf32>
    %cst_3 = arith.constant 2.000000e-02 : f32
    %151 = vector.broadcast %cst_3 : f32 to vector<2x256xf32>
    %152 = arith.mulf %151, %148 : vector<2x256xf32>
    %153 = arith.select %150, %148, %152 : vector<2x256xi1>, vector<2x256xf32>
    %c0_4 = arith.constant 0 : index
    %c0_5 = arith.constant 0 : index
    %154 = vector.load %arg7[%c0_4, %c0_5] : memref<8x256xf32, #tpu.memory_space<vmem>>, vector<2x256xf32>
    tpu.vector_store %arg7[%c0_4, %c0_5], %153 {strides = array<i32>} : memref<8x256xf32, #tpu.memory_space<vmem>>, vector<2x256xf32>,
    %c1 = arith.constant 1 : index
    %155 = memref.load %arg2[%c1] : memref<112xf32, #tpu.memory_space<smem>>
    %156 = vector.broadcast %155 : f32 to vector<2x256xf32>
    %157 = arith.mulf %7, %156 : vector<2x256xf32>
    %c5 = arith.constant 5 : index
    %158 = memref.load %arg2[%c5] : memref<112xf32, #tpu.memory_space<smem>>
    %159 = vector.broadcast %158 : f32 to vector<2x256xf32>
    %160 = arith.mulf %8, %159 : vector<2x256xf32>
    %161 = arith.addf %157, %160 : vector<2x256xf32>
    %c9 = arith.constant 9 : index
    %162 = memref.load %arg2[%c9] : memref<112xf32, #tpu.memory_space<smem>>
    %163 = vector.broadcast %162 : f32 to vector<2x256xf32>
    %164 = arith.mulf %9, %163 : vector<2x256xf32>
    %165 = arith.addf %161, %164 : vector<2x256xf32>
    %c13 = arith.constant 13 : index
    %166 = memref.load %arg2[%c13] : memref<112xf32, #tpu.memory_space<smem>>
    %167 = vector.broadcast %166 : f32 to vector<2x256xf32>
    %168 = arith.mulf %10, %167 : vector<2x256xf32>
    %169 = arith.addf %165, %168 : vector<2x256xf32>
    %c17 = arith.constant 17 : index
    %170 = memref.load %arg2[%c17] : memref<112xf32, #tpu.memory_space<smem>>
    %171 = vector.broadcast %170 : f32 to vector<2x256xf32>
    %172 = arith.mulf %11, %171 : vector<2x256xf32>
    %173 = arith.addf %169, %172 : vector<2x256xf32>
    %c21 = arith.constant 21 : index
    %174 = memref.load %arg2[%c21] : memref<112xf32, #tpu.memory_space<smem>>
    %175 = vector.broadcast %174 : f32 to vector<2x256xf32>
    %176 = arith.mulf %12, %175 : vector<2x256xf32>
    %177 = arith.addf %173, %176 : vector<2x256xf32>
    %c25 = arith.constant 25 : index
    %178 = memref.load %arg2[%c25] : memref<112xf32, #tpu.memory_space<smem>>
    %179 = vector.broadcast %178 : f32 to vector<2x256xf32>
    %180 = arith.mulf %13, %179 : vector<2x256xf32>
    %181 = arith.addf %177, %180 : vector<2x256xf32>
    %c29 = arith.constant 29 : index
    %182 = memref.load %arg2[%c29] : memref<112xf32, #tpu.memory_space<smem>>
    %183 = vector.broadcast %182 : f32 to vector<2x256xf32>
    %184 = arith.mulf %14, %183 : vector<2x256xf32>
    %185 = arith.addf %181, %184 : vector<2x256xf32>
    %c33 = arith.constant 33 : index
    %186 = memref.load %arg2[%c33] : memref<112xf32, #tpu.memory_space<smem>>
    %187 = vector.broadcast %186 : f32 to vector<2x256xf32>
    %188 = arith.mulf %15, %187 : vector<2x256xf32>
    %189 = arith.addf %185, %188 : vector<2x256xf32>
    %c37 = arith.constant 37 : index
    %190 = memref.load %arg2[%c37] : memref<112xf32, #tpu.memory_space<smem>>
    %191 = vector.broadcast %190 : f32 to vector<2x256xf32>
    %192 = arith.mulf %16, %191 : vector<2x256xf32>
    %193 = arith.addf %189, %192 : vector<2x256xf32>
    %c41 = arith.constant 41 : index
    %194 = memref.load %arg2[%c41] : memref<112xf32, #tpu.memory_space<smem>>
    %195 = vector.broadcast %194 : f32 to vector<2x256xf32>
    %196 = arith.mulf %17, %195 : vector<2x256xf32>
    %197 = arith.addf %193, %196 : vector<2x256xf32>
    %c45 = arith.constant 45 : index
    %198 = memref.load %arg2[%c45] : memref<112xf32, #tpu.memory_space<smem>>
    %199 = vector.broadcast %198 : f32 to vector<2x256xf32>
    %200 = arith.mulf %18, %199 : vector<2x256xf32>
    %201 = arith.addf %197, %200 : vector<2x256xf32>
    %c49 = arith.constant 49 : index
    %202 = memref.load %arg2[%c49] : memref<112xf32, #tpu.memory_space<smem>>
    %203 = vector.broadcast %202 : f32 to vector<2x256xf32>
    %204 = arith.mulf %19, %203 : vector<2x256xf32>
    %205 = arith.addf %201, %204 : vector<2x256xf32>
    %c53 = arith.constant 53 : index
    %206 = memref.load %arg2[%c53] : memref<112xf32, #tpu.memory_space<smem>>
    %207 = vector.broadcast %206 : f32 to vector<2x256xf32>
    %208 = arith.mulf %20, %207 : vector<2x256xf32>
    %209 = arith.addf %205, %208 : vector<2x256xf32>
    %c57 = arith.constant 57 : index
    %210 = memref.load %arg2[%c57] : memref<112xf32, #tpu.memory_space<smem>>
    %211 = vector.broadcast %210 : f32 to vector<2x256xf32>
    %212 = arith.mulf %21, %211 : vector<2x256xf32>
    %213 = arith.addf %209, %212 : vector<2x256xf32>
    %c61 = arith.constant 61 : index
    %214 = memref.load %arg2[%c61] : memref<112xf32, #tpu.memory_space<smem>>
    %215 = vector.broadcast %214 : f32 to vector<2x256xf32>
    %216 = arith.mulf %22, %215 : vector<2x256xf32>
    %217 = arith.addf %213, %216 : vector<2x256xf32>
    %c65 = arith.constant 65 : index
    %218 = memref.load %arg2[%c65] : memref<112xf32, #tpu.memory_space<smem>>
    %219 = vector.broadcast %218 : f32 to vector<2x256xf32>
    %220 = arith.mulf %23, %219 : vector<2x256xf32>
    %221 = arith.addf %217, %220 : vector<2x256xf32>
    %c69 = arith.constant 69 : index
    %222 = memref.load %arg2[%c69] : memref<112xf32, #tpu.memory_space<smem>>
    %223 = vector.broadcast %222 : f32 to vector<2x256xf32>
    %224 = arith.mulf %24, %223 : vector<2x256xf32>
    %225 = arith.addf %221, %224 : vector<2x256xf32>
    %c73 = arith.constant 73 : index
    %226 = memref.load %arg2[%c73] : memref<112xf32, #tpu.memory_space<smem>>
    %227 = vector.broadcast %226 : f32 to vector<2x256xf32>
    %228 = arith.mulf %25, %227 : vector<2x256xf32>
    %229 = arith.addf %225, %228 : vector<2x256xf32>
    %c77 = arith.constant 77 : index
    %230 = memref.load %arg2[%c77] : memref<112xf32, #tpu.memory_space<smem>>
    %231 = vector.broadcast %230 : f32 to vector<2x256xf32>
    %232 = arith.mulf %26, %231 : vector<2x256xf32>
    %233 = arith.addf %229, %232 : vector<2x256xf32>
    %c81 = arith.constant 81 : index
    %234 = memref.load %arg2[%c81] : memref<112xf32, #tpu.memory_space<smem>>
    %235 = vector.broadcast %234 : f32 to vector<2x256xf32>
    %236 = arith.mulf %27, %235 : vector<2x256xf32>
    %237 = arith.addf %233, %236 : vector<2x256xf32>
    %c85 = arith.constant 85 : index
    %238 = memref.load %arg2[%c85] : memref<112xf32, #tpu.memory_space<smem>>
    %239 = vector.broadcast %238 : f32 to vector<2x256xf32>
    %240 = arith.mulf %28, %239 : vector<2x256xf32>
    %241 = arith.addf %237, %240 : vector<2x256xf32>
    %c89 = arith.constant 89 : index
    %242 = memref.load %arg2[%c89] : memref<112xf32, #tpu.memory_space<smem>>
    %243 = vector.broadcast %242 : f32 to vector<2x256xf32>
    %244 = arith.mulf %29, %243 : vector<2x256xf32>
    %245 = arith.addf %241, %244 : vector<2x256xf32>
    %c93 = arith.constant 93 : index
    %246 = memref.load %arg2[%c93] : memref<112xf32, #tpu.memory_space<smem>>
    %247 = vector.broadcast %246 : f32 to vector<2x256xf32>
    %248 = arith.mulf %30, %247 : vector<2x256xf32>
    %249 = arith.addf %245, %248 : vector<2x256xf32>
    %c97 = arith.constant 97 : index
    %250 = memref.load %arg2[%c97] : memref<112xf32, #tpu.memory_space<smem>>
    %251 = vector.broadcast %250 : f32 to vector<2x256xf32>
    %252 = arith.mulf %31, %251 : vector<2x256xf32>
    %253 = arith.addf %249, %252 : vector<2x256xf32>
    %c101 = arith.constant 101 : index
    %254 = memref.load %arg2[%c101] : memref<112xf32, #tpu.memory_space<smem>>
    %255 = vector.broadcast %254 : f32 to vector<2x256xf32>
    %256 = arith.mulf %32, %255 : vector<2x256xf32>
    %257 = arith.addf %253, %256 : vector<2x256xf32>
    %c105 = arith.constant 105 : index
    %258 = memref.load %arg2[%c105] : memref<112xf32, #tpu.memory_space<smem>>
    %259 = vector.broadcast %258 : f32 to vector<2x256xf32>
    %260 = arith.mulf %33, %259 : vector<2x256xf32>
    %261 = arith.addf %257, %260 : vector<2x256xf32>
    %c109 = arith.constant 109 : index
    %262 = memref.load %arg2[%c109] : memref<112xf32, #tpu.memory_space<smem>>
    %263 = vector.broadcast %262 : f32 to vector<2x256xf32>
    %264 = arith.mulf %34, %263 : vector<2x256xf32>
    %265 = arith.addf %261, %264 : vector<2x256xf32>
    %c1_6 = arith.constant 1 : index
    %266 = memref.load %arg3[%c1_6] : memref<4xf32, #tpu.memory_space<smem>>
    %267 = vector.broadcast %266 : f32 to vector<2x256xf32>
    %268 = arith.addf %265, %267 : vector<2x256xf32>
    %cst_7 = arith.constant 0.000000e+00 : f32
    %269 = vector.broadcast %cst_7 : f32 to vector<2x256xf32>
    %270 = arith.cmpf oge, %268, %269 : vector<2x256xf32>
    %cst_8 = arith.constant 2.000000e-02 : f32
    %271 = vector.broadcast %cst_8 : f32 to vector<2x256xf32>
    %272 = arith.mulf %271, %268 : vector<2x256xf32>
    %273 = arith.select %270, %268, %272 : vector<2x256xi1>, vector<2x256xf32>
    %c2 = arith.constant 2 : index
    %c0_9 = arith.constant 0 : index
    %274 = vector.load %arg7[%c2, %c0_9] : memref<8x256xf32, #tpu.memory_space<vmem>>, vector<2x256xf32>
    tpu.vector_store %arg7[%c2, %c0_9], %273 {strides = array<i32>} : memref<8x256xf32, #tpu.memory_space<vmem>>, vector<2x256xf32>,
    %c2_10 = arith.constant 2 : index
    %275 = memref.load %arg2[%c2_10] : memref<112xf32, #tpu.memory_space<smem>>
    %276 = vector.broadcast %275 : f32 to vector<2x256xf32>
    %277 = arith.mulf %7, %276 : vector<2x256xf32>
    %c6 = arith.constant 6 : index
    %278 = memref.load %arg2[%c6] : memref<112xf32, #tpu.memory_space<smem>>
    %279 = vector.broadcast %278 : f32 to vector<2x256xf32>
    %280 = arith.mulf %8, %279 : vector<2x256xf32>
    %281 = arith.addf %277, %280 : vector<2x256xf32>
    %c10 = arith.constant 10 : index
    %282 = memref.load %arg2[%c10] : memref<112xf32, #tpu.memory_space<smem>>
    %283 = vector.broadcast %282 : f32 to vector<2x256xf32>
    %284 = arith.mulf %9, %283 : vector<2x256xf32>
    %285 = arith.addf %281, %284 : vector<2x256xf32>
    %c14 = arith.constant 14 : index
    %286 = memref.load %arg2[%c14] : memref<112xf32, #tpu.memory_space<smem>>
    %287 = vector.broadcast %286 : f32 to vector<2x256xf32>
    %288 = arith.mulf %10, %287 : vector<2x256xf32>
    %289 = arith.addf %285, %288 : vector<2x256xf32>
    %c18 = arith.constant 18 : index
    %290 = memref.load %arg2[%c18] : memref<112xf32, #tpu.memory_space<smem>>
    %291 = vector.broadcast %290 : f32 to vector<2x256xf32>
    %292 = arith.mulf %11, %291 : vector<2x256xf32>
    %293 = arith.addf %289, %292 : vector<2x256xf32>
    %c22 = arith.constant 22 : index
    %294 = memref.load %arg2[%c22] : memref<112xf32, #tpu.memory_space<smem>>
    %295 = vector.broadcast %294 : f32 to vector<2x256xf32>
    %296 = arith.mulf %12, %295 : vector<2x256xf32>
    %297 = arith.addf %293, %296 : vector<2x256xf32>
    %c26 = arith.constant 26 : index
    %298 = memref.load %arg2[%c26] : memref<112xf32, #tpu.memory_space<smem>>
    %299 = vector.broadcast %298 : f32 to vector<2x256xf32>
    %300 = arith.mulf %13, %299 : vector<2x256xf32>
    %301 = arith.addf %297, %300 : vector<2x256xf32>
    %c30 = arith.constant 30 : index
    %302 = memref.load %arg2[%c30] : memref<112xf32, #tpu.memory_space<smem>>
    %303 = vector.broadcast %302 : f32 to vector<2x256xf32>
    %304 = arith.mulf %14, %303 : vector<2x256xf32>
    %305 = arith.addf %301, %304 : vector<2x256xf32>
    %c34 = arith.constant 34 : index
    %306 = memref.load %arg2[%c34] : memref<112xf32, #tpu.memory_space<smem>>
    %307 = vector.broadcast %306 : f32 to vector<2x256xf32>
    %308 = arith.mulf %15, %307 : vector<2x256xf32>
    %309 = arith.addf %305, %308 : vector<2x256xf32>
    %c38 = arith.constant 38 : index
    %310 = memref.load %arg2[%c38] : memref<112xf32, #tpu.memory_space<smem>>
    %311 = vector.broadcast %310 : f32 to vector<2x256xf32>
    %312 = arith.mulf %16, %311 : vector<2x256xf32>
    %313 = arith.addf %309, %312 : vector<2x256xf32>
    %c42 = arith.constant 42 : index
    %314 = memref.load %arg2[%c42] : memref<112xf32, #tpu.memory_space<smem>>
    %315 = vector.broadcast %314 : f32 to vector<2x256xf32>
    %316 = arith.mulf %17, %315 : vector<2x256xf32>
    %317 = arith.addf %313, %316 : vector<2x256xf32>
    %c46 = arith.constant 46 : index
    %318 = memref.load %arg2[%c46] : memref<112xf32, #tpu.memory_space<smem>>
    %319 = vector.broadcast %318 : f32 to vector<2x256xf32>
    %320 = arith.mulf %18, %319 : vector<2x256xf32>
    %321 = arith.addf %317, %320 : vector<2x256xf32>
    %c50 = arith.constant 50 : index
    %322 = memref.load %arg2[%c50] : memref<112xf32, #tpu.memory_space<smem>>
    %323 = vector.broadcast %322 : f32 to vector<2x256xf32>
    %324 = arith.mulf %19, %323 : vector<2x256xf32>
    %325 = arith.addf %321, %324 : vector<2x256xf32>
    %c54 = arith.constant 54 : index
    %326 = memref.load %arg2[%c54] : memref<112xf32, #tpu.memory_space<smem>>
    %327 = vector.broadcast %326 : f32 to vector<2x256xf32>
    %328 = arith.mulf %20, %327 : vector<2x256xf32>
    %329 = arith.addf %325, %328 : vector<2x256xf32>
    %c58 = arith.constant 58 : index
    %330 = memref.load %arg2[%c58] : memref<112xf32, #tpu.memory_space<smem>>
    %331 = vector.broadcast %330 : f32 to vector<2x256xf32>
    %332 = arith.mulf %21, %331 : vector<2x256xf32>
    %333 = arith.addf %329, %332 : vector<2x256xf32>
    %c62 = arith.constant 62 : index
    %334 = memref.load %arg2[%c62] : memref<112xf32, #tpu.memory_space<smem>>
    %335 = vector.broadcast %334 : f32 to vector<2x256xf32>
    %336 = arith.mulf %22, %335 : vector<2x256xf32>
    %337 = arith.addf %333, %336 : vector<2x256xf32>
    %c66 = arith.constant 66 : index
    %338 = memref.load %arg2[%c66] : memref<112xf32, #tpu.memory_space<smem>>
    %339 = vector.broadcast %338 : f32 to vector<2x256xf32>
    %340 = arith.mulf %23, %339 : vector<2x256xf32>
    %341 = arith.addf %337, %340 : vector<2x256xf32>
    %c70 = arith.constant 70 : index
    %342 = memref.load %arg2[%c70] : memref<112xf32, #tpu.memory_space<smem>>
    %343 = vector.broadcast %342 : f32 to vector<2x256xf32>
    %344 = arith.mulf %24, %343 : vector<2x256xf32>
    %345 = arith.addf %341, %344 : vector<2x256xf32>
    %c74 = arith.constant 74 : index
    %346 = memref.load %arg2[%c74] : memref<112xf32, #tpu.memory_space<smem>>
    %347 = vector.broadcast %346 : f32 to vector<2x256xf32>
    %348 = arith.mulf %25, %347 : vector<2x256xf32>
    %349 = arith.addf %345, %348 : vector<2x256xf32>
    %c78 = arith.constant 78 : index
    %350 = memref.load %arg2[%c78] : memref<112xf32, #tpu.memory_space<smem>>
    %351 = vector.broadcast %350 : f32 to vector<2x256xf32>
    %352 = arith.mulf %26, %351 : vector<2x256xf32>
    %353 = arith.addf %349, %352 : vector<2x256xf32>
    %c82 = arith.constant 82 : index
    %354 = memref.load %arg2[%c82] : memref<112xf32, #tpu.memory_space<smem>>
    %355 = vector.broadcast %354 : f32 to vector<2x256xf32>
    %356 = arith.mulf %27, %355 : vector<2x256xf32>
    %357 = arith.addf %353, %356 : vector<2x256xf32>
    %c86 = arith.constant 86 : index
    %358 = memref.load %arg2[%c86] : memref<112xf32, #tpu.memory_space<smem>>
    %359 = vector.broadcast %358 : f32 to vector<2x256xf32>
    %360 = arith.mulf %28, %359 : vector<2x256xf32>
    %361 = arith.addf %357, %360 : vector<2x256xf32>
    %c90 = arith.constant 90 : index
    %362 = memref.load %arg2[%c90] : memref<112xf32, #tpu.memory_space<smem>>
    %363 = vector.broadcast %362 : f32 to vector<2x256xf32>
    %364 = arith.mulf %29, %363 : vector<2x256xf32>
    %365 = arith.addf %361, %364 : vector<2x256xf32>
    %c94 = arith.constant 94 : index
    %366 = memref.load %arg2[%c94] : memref<112xf32, #tpu.memory_space<smem>>
    %367 = vector.broadcast %366 : f32 to vector<2x256xf32>
    %368 = arith.mulf %30, %367 : vector<2x256xf32>
    %369 = arith.addf %365, %368 : vector<2x256xf32>
    %c98 = arith.constant 98 : index
    %370 = memref.load %arg2[%c98] : memref<112xf32, #tpu.memory_space<smem>>
    %371 = vector.broadcast %370 : f32 to vector<2x256xf32>
    %372 = arith.mulf %31, %371 : vector<2x256xf32>
    %373 = arith.addf %369, %372 : vector<2x256xf32>
    %c102 = arith.constant 102 : index
    %374 = memref.load %arg2[%c102] : memref<112xf32, #tpu.memory_space<smem>>
    %375 = vector.broadcast %374 : f32 to vector<2x256xf32>
    %376 = arith.mulf %32, %375 : vector<2x256xf32>
    %377 = arith.addf %373, %376 : vector<2x256xf32>
    %c106 = arith.constant 106 : index
    %378 = memref.load %arg2[%c106] : memref<112xf32, #tpu.memory_space<smem>>
    %379 = vector.broadcast %378 : f32 to vector<2x256xf32>
    %380 = arith.mulf %33, %379 : vector<2x256xf32>
    %381 = arith.addf %377, %380 : vector<2x256xf32>
    %c110 = arith.constant 110 : index
    %382 = memref.load %arg2[%c110] : memref<112xf32, #tpu.memory_space<smem>>
    %383 = vector.broadcast %382 : f32 to vector<2x256xf32>
    %384 = arith.mulf %34, %383 : vector<2x256xf32>
    %385 = arith.addf %381, %384 : vector<2x256xf32>
    %c2_11 = arith.constant 2 : index
    %386 = memref.load %arg3[%c2_11] : memref<4xf32, #tpu.memory_space<smem>>
    %387 = vector.broadcast %386 : f32 to vector<2x256xf32>
    %388 = arith.addf %385, %387 : vector<2x256xf32>
    %cst_12 = arith.constant 0.000000e+00 : f32
    %389 = vector.broadcast %cst_12 : f32 to vector<2x256xf32>
    %390 = arith.cmpf oge, %388, %389 : vector<2x256xf32>
    %cst_13 = arith.constant 2.000000e-02 : f32
    %391 = vector.broadcast %cst_13 : f32 to vector<2x256xf32>
    %392 = arith.mulf %391, %388 : vector<2x256xf32>
    %393 = arith.select %390, %388, %392 : vector<2x256xi1>, vector<2x256xf32>
    %c4_14 = arith.constant 4 : index
    %c0_15 = arith.constant 0 : index
    %394 = vector.load %arg7[%c4_14, %c0_15] : memref<8x256xf32, #tpu.memory_space<vmem>>, vector<2x256xf32>
    tpu.vector_store %arg7[%c4_14, %c0_15], %393 {strides = array<i32>} : memref<8x256xf32, #tpu.memory_space<vmem>>, vector<2x256xf32>,
    %c3 = arith.constant 3 : index
    %395 = memref.load %arg2[%c3] : memref<112xf32, #tpu.memory_space<smem>>
    %396 = vector.broadcast %395 : f32 to vector<2x256xf32>
    %397 = arith.mulf %7, %396 : vector<2x256xf32>
    %c7 = arith.constant 7 : index
    %398 = memref.load %arg2[%c7] : memref<112xf32, #tpu.memory_space<smem>>
    %399 = vector.broadcast %398 : f32 to vector<2x256xf32>
    %400 = arith.mulf %8, %399 : vector<2x256xf32>
    %401 = arith.addf %397, %400 : vector<2x256xf32>
    %c11 = arith.constant 11 : index
    %402 = memref.load %arg2[%c11] : memref<112xf32, #tpu.memory_space<smem>>
    %403 = vector.broadcast %402 : f32 to vector<2x256xf32>
    %404 = arith.mulf %9, %403 : vector<2x256xf32>
    %405 = arith.addf %401, %404 : vector<2x256xf32>
    %c15 = arith.constant 15 : index
    %406 = memref.load %arg2[%c15] : memref<112xf32, #tpu.memory_space<smem>>
    %407 = vector.broadcast %406 : f32 to vector<2x256xf32>
    %408 = arith.mulf %10, %407 : vector<2x256xf32>
    %409 = arith.addf %405, %408 : vector<2x256xf32>
    %c19 = arith.constant 19 : index
    %410 = memref.load %arg2[%c19] : memref<112xf32, #tpu.memory_space<smem>>
    %411 = vector.broadcast %410 : f32 to vector<2x256xf32>
    %412 = arith.mulf %11, %411 : vector<2x256xf32>
    %413 = arith.addf %409, %412 : vector<2x256xf32>
    %c23 = arith.constant 23 : index
    %414 = memref.load %arg2[%c23] : memref<112xf32, #tpu.memory_space<smem>>
    %415 = vector.broadcast %414 : f32 to vector<2x256xf32>
    %416 = arith.mulf %12, %415 : vector<2x256xf32>
    %417 = arith.addf %413, %416 : vector<2x256xf32>
    %c27 = arith.constant 27 : index
    %418 = memref.load %arg2[%c27] : memref<112xf32, #tpu.memory_space<smem>>
    %419 = vector.broadcast %418 : f32 to vector<2x256xf32>
    %420 = arith.mulf %13, %419 : vector<2x256xf32>
    %421 = arith.addf %417, %420 : vector<2x256xf32>
    %c31 = arith.constant 31 : index
    %422 = memref.load %arg2[%c31] : memref<112xf32, #tpu.memory_space<smem>>
    %423 = vector.broadcast %422 : f32 to vector<2x256xf32>
    %424 = arith.mulf %14, %423 : vector<2x256xf32>
    %425 = arith.addf %421, %424 : vector<2x256xf32>
    %c35 = arith.constant 35 : index
    %426 = memref.load %arg2[%c35] : memref<112xf32, #tpu.memory_space<smem>>
    %427 = vector.broadcast %426 : f32 to vector<2x256xf32>
    %428 = arith.mulf %15, %427 : vector<2x256xf32>
    %429 = arith.addf %425, %428 : vector<2x256xf32>
    %c39 = arith.constant 39 : index
    %430 = memref.load %arg2[%c39] : memref<112xf32, #tpu.memory_space<smem>>
    %431 = vector.broadcast %430 : f32 to vector<2x256xf32>
    %432 = arith.mulf %16, %431 : vector<2x256xf32>
    %433 = arith.addf %429, %432 : vector<2x256xf32>
    %c43 = arith.constant 43 : index
    %434 = memref.load %arg2[%c43] : memref<112xf32, #tpu.memory_space<smem>>
    %435 = vector.broadcast %434 : f32 to vector<2x256xf32>
    %436 = arith.mulf %17, %435 : vector<2x256xf32>
    %437 = arith.addf %433, %436 : vector<2x256xf32>
    %c47 = arith.constant 47 : index
    %438 = memref.load %arg2[%c47] : memref<112xf32, #tpu.memory_space<smem>>
    %439 = vector.broadcast %438 : f32 to vector<2x256xf32>
    %440 = arith.mulf %18, %439 : vector<2x256xf32>
    %441 = arith.addf %437, %440 : vector<2x256xf32>
    %c51 = arith.constant 51 : index
    %442 = memref.load %arg2[%c51] : memref<112xf32, #tpu.memory_space<smem>>
    %443 = vector.broadcast %442 : f32 to vector<2x256xf32>
    %444 = arith.mulf %19, %443 : vector<2x256xf32>
    %445 = arith.addf %441, %444 : vector<2x256xf32>
    %c55 = arith.constant 55 : index
    %446 = memref.load %arg2[%c55] : memref<112xf32, #tpu.memory_space<smem>>
    %447 = vector.broadcast %446 : f32 to vector<2x256xf32>
    %448 = arith.mulf %20, %447 : vector<2x256xf32>
    %449 = arith.addf %445, %448 : vector<2x256xf32>
    %c59 = arith.constant 59 : index
    %450 = memref.load %arg2[%c59] : memref<112xf32, #tpu.memory_space<smem>>
    %451 = vector.broadcast %450 : f32 to vector<2x256xf32>
    %452 = arith.mulf %21, %451 : vector<2x256xf32>
    %453 = arith.addf %449, %452 : vector<2x256xf32>
    %c63 = arith.constant 63 : index
    %454 = memref.load %arg2[%c63] : memref<112xf32, #tpu.memory_space<smem>>
    %455 = vector.broadcast %454 : f32 to vector<2x256xf32>
    %456 = arith.mulf %22, %455 : vector<2x256xf32>
    %457 = arith.addf %453, %456 : vector<2x256xf32>
    %c67 = arith.constant 67 : index
    %458 = memref.load %arg2[%c67] : memref<112xf32, #tpu.memory_space<smem>>
    %459 = vector.broadcast %458 : f32 to vector<2x256xf32>
    %460 = arith.mulf %23, %459 : vector<2x256xf32>
    %461 = arith.addf %457, %460 : vector<2x256xf32>
    %c71 = arith.constant 71 : index
    %462 = memref.load %arg2[%c71] : memref<112xf32, #tpu.memory_space<smem>>
    %463 = vector.broadcast %462 : f32 to vector<2x256xf32>
    %464 = arith.mulf %24, %463 : vector<2x256xf32>
    %465 = arith.addf %461, %464 : vector<2x256xf32>
    %c75 = arith.constant 75 : index
    %466 = memref.load %arg2[%c75] : memref<112xf32, #tpu.memory_space<smem>>
    %467 = vector.broadcast %466 : f32 to vector<2x256xf32>
    %468 = arith.mulf %25, %467 : vector<2x256xf32>
    %469 = arith.addf %465, %468 : vector<2x256xf32>
    %c79 = arith.constant 79 : index
    %470 = memref.load %arg2[%c79] : memref<112xf32, #tpu.memory_space<smem>>
    %471 = vector.broadcast %470 : f32 to vector<2x256xf32>
    %472 = arith.mulf %26, %471 : vector<2x256xf32>
    %473 = arith.addf %469, %472 : vector<2x256xf32>
    %c83 = arith.constant 83 : index
    %474 = memref.load %arg2[%c83] : memref<112xf32, #tpu.memory_space<smem>>
    %475 = vector.broadcast %474 : f32 to vector<2x256xf32>
    %476 = arith.mulf %27, %475 : vector<2x256xf32>
    %477 = arith.addf %473, %476 : vector<2x256xf32>
    %c87 = arith.constant 87 : index
    %478 = memref.load %arg2[%c87] : memref<112xf32, #tpu.memory_space<smem>>
    %479 = vector.broadcast %478 : f32 to vector<2x256xf32>
    %480 = arith.mulf %28, %479 : vector<2x256xf32>
    %481 = arith.addf %477, %480 : vector<2x256xf32>
    %c91 = arith.constant 91 : index
    %482 = memref.load %arg2[%c91] : memref<112xf32, #tpu.memory_space<smem>>
    %483 = vector.broadcast %482 : f32 to vector<2x256xf32>
    %484 = arith.mulf %29, %483 : vector<2x256xf32>
    %485 = arith.addf %481, %484 : vector<2x256xf32>
    %c95 = arith.constant 95 : index
    %486 = memref.load %arg2[%c95] : memref<112xf32, #tpu.memory_space<smem>>
    %487 = vector.broadcast %486 : f32 to vector<2x256xf32>
    %488 = arith.mulf %30, %487 : vector<2x256xf32>
    %489 = arith.addf %485, %488 : vector<2x256xf32>
    %c99 = arith.constant 99 : index
    %490 = memref.load %arg2[%c99] : memref<112xf32, #tpu.memory_space<smem>>
    %491 = vector.broadcast %490 : f32 to vector<2x256xf32>
    %492 = arith.mulf %31, %491 : vector<2x256xf32>
    %493 = arith.addf %489, %492 : vector<2x256xf32>
    %c103 = arith.constant 103 : index
    %494 = memref.load %arg2[%c103] : memref<112xf32, #tpu.memory_space<smem>>
    %495 = vector.broadcast %494 : f32 to vector<2x256xf32>
    %496 = arith.mulf %32, %495 : vector<2x256xf32>
    %497 = arith.addf %493, %496 : vector<2x256xf32>
    %c107 = arith.constant 107 : index
    %498 = memref.load %arg2[%c107] : memref<112xf32, #tpu.memory_space<smem>>
    %499 = vector.broadcast %498 : f32 to vector<2x256xf32>
    %500 = arith.mulf %33, %499 : vector<2x256xf32>
    %501 = arith.addf %497, %500 : vector<2x256xf32>
    %c111 = arith.constant 111 : index
    %502 = memref.load %arg2[%c111] : memref<112xf32, #tpu.memory_space<smem>>
    %503 = vector.broadcast %502 : f32 to vector<2x256xf32>
    %504 = arith.mulf %34, %503 : vector<2x256xf32>
    %505 = arith.addf %501, %504 : vector<2x256xf32>
    %c3_16 = arith.constant 3 : index
    %506 = memref.load %arg3[%c3_16] : memref<4xf32, #tpu.memory_space<smem>>
    %507 = vector.broadcast %506 : f32 to vector<2x256xf32>
    %508 = arith.addf %505, %507 : vector<2x256xf32>
    %cst_17 = arith.constant 0.000000e+00 : f32
    %509 = vector.broadcast %cst_17 : f32 to vector<2x256xf32>
    %510 = arith.cmpf oge, %508, %509 : vector<2x256xf32>
    %cst_18 = arith.constant 2.000000e-02 : f32
    %511 = vector.broadcast %cst_18 : f32 to vector<2x256xf32>
    %512 = arith.mulf %511, %508 : vector<2x256xf32>
    %513 = arith.select %510, %508, %512 : vector<2x256xi1>, vector<2x256xf32>
    %c6_19 = arith.constant 6 : index
    %c0_20 = arith.constant 0 : index
    %514 = vector.load %arg7[%c6_19, %c0_20] : memref<8x256xf32, #tpu.memory_space<vmem>>, vector<2x256xf32>
    tpu.vector_store %arg7[%c6_19, %c0_20], %513 {strides = array<i32>} : memref<8x256xf32, #tpu.memory_space<vmem>>, vector<2x256xf32>,
    %c240_i32 = arith.constant 240 : i32
    %515 = tpu.dynamic_rotate %0 by %c240_i32 dim 1 : vector<8x256xf32>, i32 -> vector<8x256xf32>
    %c224_i32 = arith.constant 224 : i32
    %516 = tpu.dynamic_rotate %0 by %c224_i32 dim 1 : vector<8x256xf32>, i32 -> vector<8x256xf32>
    %c208_i32 = arith.constant 208 : i32
    %517 = tpu.dynamic_rotate %0 by %c208_i32 dim 1 : vector<8x256xf32>, i32 -> vector<8x256xf32>
    %c192_i32 = arith.constant 192 : i32
    %518 = tpu.dynamic_rotate %0 by %c192_i32 dim 1 : vector<8x256xf32>, i32 -> vector<8x256xf32>
    %c176_i32 = arith.constant 176 : i32
    %519 = tpu.dynamic_rotate %0 by %c176_i32 dim 1 : vector<8x256xf32>, i32 -> vector<8x256xf32>
    %c160_i32 = arith.constant 160 : i32
    %520 = tpu.dynamic_rotate %0 by %c160_i32 dim 1 : vector<8x256xf32>, i32 -> vector<8x256xf32>
    %521 = vector.extract_strided_slice %0 {offsets = [0, 0], sizes = [2, 256], strides = [1, 1]} : vector<8x256xf32> to vector<2x256xf32>
    %522 = vector.extract_strided_slice %0 {offsets = [2, 0], sizes = [2, 256], strides = [1, 1]} : vector<8x256xf32> to vector<2x256xf32>
    %523 = vector.extract_strided_slice %0 {offsets = [4, 0], sizes = [2, 256], strides = [1, 1]} : vector<8x256xf32> to vector<2x256xf32>
    %524 = vector.extract_strided_slice %0 {offsets = [6, 0], sizes = [2, 256], strides = [1, 1]} : vector<8x256xf32> to vector<2x256xf32>
    %525 = vector.extract_strided_slice %515 {offsets = [0, 0], sizes = [2, 256], strides = [1, 1]} : vector<8x256xf32> to vector<2x256xf32>
    %526 = vector.extract_strided_slice %515 {offsets = [2, 0], sizes = [2, 256], strides = [1, 1]} : vector<8x256xf32> to vector<2x256xf32>
    %527 = vector.extract_strided_slice %515 {offsets = [4, 0], sizes = [2, 256], strides = [1, 1]} : vector<8x256xf32> to vector<2x256xf32>
    %528 = vector.extract_strided_slice %515 {offsets = [6, 0], sizes = [2, 256], strides = [1, 1]} : vector<8x256xf32> to vector<2x256xf32>
    %529 = vector.extract_strided_slice %516 {offsets = [0, 0], sizes = [2, 256], strides = [1, 1]} : vector<8x256xf32> to vector<2x256xf32>
    %530 = vector.extract_strided_slice %516 {offsets = [2, 0], sizes = [2, 256], strides = [1, 1]} : vector<8x256xf32> to vector<2x256xf32>
    %531 = vector.extract_strided_slice %516 {offsets = [4, 0], sizes = [2, 256], strides = [1, 1]} : vector<8x256xf32> to vector<2x256xf32>
    %532 = vector.extract_strided_slice %516 {offsets = [6, 0], sizes = [2, 256], strides = [1, 1]} : vector<8x256xf32> to vector<2x256xf32>
    %533 = vector.extract_strided_slice %517 {offsets = [0, 0], sizes = [2, 256], strides = [1, 1]} : vector<8x256xf32> to vector<2x256xf32>
    %534 = vector.extract_strided_slice %517 {offsets = [2, 0], sizes = [2, 256], strides = [1, 1]} : vector<8x256xf32> to vector<2x256xf32>
    %535 = vector.extract_strided_slice %517 {offsets = [4, 0], sizes = [2, 256], strides = [1, 1]} : vector<8x256xf32> to vector<2x256xf32>
    %536 = vector.extract_strided_slice %517 {offsets = [6, 0], sizes = [2, 256], strides = [1, 1]} : vector<8x256xf32> to vector<2x256xf32>
    %537 = vector.extract_strided_slice %518 {offsets = [0, 0], sizes = [2, 256], strides = [1, 1]} : vector<8x256xf32> to vector<2x256xf32>
    %538 = vector.extract_strided_slice %518 {offsets = [2, 0], sizes = [2, 256], strides = [1, 1]} : vector<8x256xf32> to vector<2x256xf32>
    %539 = vector.extract_strided_slice %518 {offsets = [4, 0], sizes = [2, 256], strides = [1, 1]} : vector<8x256xf32> to vector<2x256xf32>
    %540 = vector.extract_strided_slice %518 {offsets = [6, 0], sizes = [2, 256], strides = [1, 1]} : vector<8x256xf32> to vector<2x256xf32>
    %541 = vector.extract_strided_slice %519 {offsets = [0, 0], sizes = [2, 256], strides = [1, 1]} : vector<8x256xf32> to vector<2x256xf32>
    %542 = vector.extract_strided_slice %519 {offsets = [2, 0], sizes = [2, 256], strides = [1, 1]} : vector<8x256xf32> to vector<2x256xf32>
    %543 = vector.extract_strided_slice %519 {offsets = [4, 0], sizes = [2, 256], strides = [1, 1]} : vector<8x256xf32> to vector<2x256xf32>
    %544 = vector.extract_strided_slice %519 {offsets = [6, 0], sizes = [2, 256], strides = [1, 1]} : vector<8x256xf32> to vector<2x256xf32>
    %545 = vector.extract_strided_slice %520 {offsets = [0, 0], sizes = [2, 256], strides = [1, 1]} : vector<8x256xf32> to vector<2x256xf32>
    %546 = vector.extract_strided_slice %520 {offsets = [2, 0], sizes = [2, 256], strides = [1, 1]} : vector<8x256xf32> to vector<2x256xf32>
    %547 = vector.extract_strided_slice %520 {offsets = [4, 0], sizes = [2, 256], strides = [1, 1]} : vector<8x256xf32> to vector<2x256xf32>
    %548 = vector.extract_strided_slice %520 {offsets = [6, 0], sizes = [2, 256], strides = [1, 1]} : vector<8x256xf32> to vector<2x256xf32>
    %c0_21 = arith.constant 0 : index
    %549 = memref.load %arg4[%c0_21] : memref<112xf32, #tpu.memory_space<smem>>
    %550 = vector.broadcast %549 : f32 to vector<2x256xf32>
    %551 = arith.mulf %521, %550 : vector<2x256xf32>
    %c4_22 = arith.constant 4 : index
    %552 = memref.load %arg4[%c4_22] : memref<112xf32, #tpu.memory_space<smem>>
    %553 = vector.broadcast %552 : f32 to vector<2x256xf32>
    %554 = arith.mulf %522, %553 : vector<2x256xf32>
    %555 = arith.addf %551, %554 : vector<2x256xf32>
    %c8_23 = arith.constant 8 : index
    %556 = memref.load %arg4[%c8_23] : memref<112xf32, #tpu.memory_space<smem>>
    %557 = vector.broadcast %556 : f32 to vector<2x256xf32>
    %558 = arith.mulf %523, %557 : vector<2x256xf32>
    %559 = arith.addf %555, %558 : vector<2x256xf32>
    %c12_24 = arith.constant 12 : index
    %560 = memref.load %arg4[%c12_24] : memref<112xf32, #tpu.memory_space<smem>>
    %561 = vector.broadcast %560 : f32 to vector<2x256xf32>
    %562 = arith.mulf %524, %561 : vector<2x256xf32>
    %563 = arith.addf %559, %562 : vector<2x256xf32>
    %c16_25 = arith.constant 16 : index
    %564 = memref.load %arg4[%c16_25] : memref<112xf32, #tpu.memory_space<smem>>
    %565 = vector.broadcast %564 : f32 to vector<2x256xf32>
    %566 = arith.mulf %525, %565 : vector<2x256xf32>
    %567 = arith.addf %563, %566 : vector<2x256xf32>
    %c20_26 = arith.constant 20 : index
    %568 = memref.load %arg4[%c20_26] : memref<112xf32, #tpu.memory_space<smem>>
    %569 = vector.broadcast %568 : f32 to vector<2x256xf32>
    %570 = arith.mulf %526, %569 : vector<2x256xf32>
    %571 = arith.addf %567, %570 : vector<2x256xf32>
    %c24_27 = arith.constant 24 : index
    %572 = memref.load %arg4[%c24_27] : memref<112xf32, #tpu.memory_space<smem>>
    %573 = vector.broadcast %572 : f32 to vector<2x256xf32>
    %574 = arith.mulf %527, %573 : vector<2x256xf32>
    %575 = arith.addf %571, %574 : vector<2x256xf32>
    %c28_28 = arith.constant 28 : index
    %576 = memref.load %arg4[%c28_28] : memref<112xf32, #tpu.memory_space<smem>>
    %577 = vector.broadcast %576 : f32 to vector<2x256xf32>
    %578 = arith.mulf %528, %577 : vector<2x256xf32>
    %579 = arith.addf %575, %578 : vector<2x256xf32>
    %c32_29 = arith.constant 32 : index
    %580 = memref.load %arg4[%c32_29] : memref<112xf32, #tpu.memory_space<smem>>
    %581 = vector.broadcast %580 : f32 to vector<2x256xf32>
    %582 = arith.mulf %529, %581 : vector<2x256xf32>
    %583 = arith.addf %579, %582 : vector<2x256xf32>
    %c36_30 = arith.constant 36 : index
    %584 = memref.load %arg4[%c36_30] : memref<112xf32, #tpu.memory_space<smem>>
    %585 = vector.broadcast %584 : f32 to vector<2x256xf32>
    %586 = arith.mulf %530, %585 : vector<2x256xf32>
    %587 = arith.addf %583, %586 : vector<2x256xf32>
    %c40_31 = arith.constant 40 : index
    %588 = memref.load %arg4[%c40_31] : memref<112xf32, #tpu.memory_space<smem>>
    %589 = vector.broadcast %588 : f32 to vector<2x256xf32>
    %590 = arith.mulf %531, %589 : vector<2x256xf32>
    %591 = arith.addf %587, %590 : vector<2x256xf32>
    %c44_32 = arith.constant 44 : index
    %592 = memref.load %arg4[%c44_32] : memref<112xf32, #tpu.memory_space<smem>>
    %593 = vector.broadcast %592 : f32 to vector<2x256xf32>
    %594 = arith.mulf %532, %593 : vector<2x256xf32>
    %595 = arith.addf %591, %594 : vector<2x256xf32>
    %c48_33 = arith.constant 48 : index
    %596 = memref.load %arg4[%c48_33] : memref<112xf32, #tpu.memory_space<smem>>
    %597 = vector.broadcast %596 : f32 to vector<2x256xf32>
    %598 = arith.mulf %533, %597 : vector<2x256xf32>
    %599 = arith.addf %595, %598 : vector<2x256xf32>
    %c52_34 = arith.constant 52 : index
    %600 = memref.load %arg4[%c52_34] : memref<112xf32, #tpu.memory_space<smem>>
    %601 = vector.broadcast %600 : f32 to vector<2x256xf32>
    %602 = arith.mulf %534, %601 : vector<2x256xf32>
    %603 = arith.addf %599, %602 : vector<2x256xf32>
    %c56_35 = arith.constant 56 : index
    %604 = memref.load %arg4[%c56_35] : memref<112xf32, #tpu.memory_space<smem>>
    %605 = vector.broadcast %604 : f32 to vector<2x256xf32>
    %606 = arith.mulf %535, %605 : vector<2x256xf32>
    %607 = arith.addf %603, %606 : vector<2x256xf32>
    %c60_36 = arith.constant 60 : index
    %608 = memref.load %arg4[%c60_36] : memref<112xf32, #tpu.memory_space<smem>>
    %609 = vector.broadcast %608 : f32 to vector<2x256xf32>
    %610 = arith.mulf %536, %609 : vector<2x256xf32>
    %611 = arith.addf %607, %610 : vector<2x256xf32>
    %c64_37 = arith.constant 64 : index
    %612 = memref.load %arg4[%c64_37] : memref<112xf32, #tpu.memory_space<smem>>
    %613 = vector.broadcast %612 : f32 to vector<2x256xf32>
    %614 = arith.mulf %537, %613 : vector<2x256xf32>
    %615 = arith.addf %611, %614 : vector<2x256xf32>
    %c68_38 = arith.constant 68 : index
    %616 = memref.load %arg4[%c68_38] : memref<112xf32, #tpu.memory_space<smem>>
    %617 = vector.broadcast %616 : f32 to vector<2x256xf32>
    %618 = arith.mulf %538, %617 : vector<2x256xf32>
    %619 = arith.addf %615, %618 : vector<2x256xf32>
    %c72_39 = arith.constant 72 : index
    %620 = memref.load %arg4[%c72_39] : memref<112xf32, #tpu.memory_space<smem>>
    %621 = vector.broadcast %620 : f32 to vector<2x256xf32>
    %622 = arith.mulf %539, %621 : vector<2x256xf32>
    %623 = arith.addf %619, %622 : vector<2x256xf32>
    %c76_40 = arith.constant 76 : index
    %624 = memref.load %arg4[%c76_40] : memref<112xf32, #tpu.memory_space<smem>>
    %625 = vector.broadcast %624 : f32 to vector<2x256xf32>
    %626 = arith.mulf %540, %625 : vector<2x256xf32>
    %627 = arith.addf %623, %626 : vector<2x256xf32>
    %c80_41 = arith.constant 80 : index
    %628 = memref.load %arg4[%c80_41] : memref<112xf32, #tpu.memory_space<smem>>
    %629 = vector.broadcast %628 : f32 to vector<2x256xf32>
    %630 = arith.mulf %541, %629 : vector<2x256xf32>
    %631 = arith.addf %627, %630 : vector<2x256xf32>
    %c84_42 = arith.constant 84 : index
    %632 = memref.load %arg4[%c84_42] : memref<112xf32, #tpu.memory_space<smem>>
    %633 = vector.broadcast %632 : f32 to vector<2x256xf32>
    %634 = arith.mulf %542, %633 : vector<2x256xf32>
    %635 = arith.addf %631, %634 : vector<2x256xf32>
    %c88_43 = arith.constant 88 : index
    %636 = memref.load %arg4[%c88_43] : memref<112xf32, #tpu.memory_space<smem>>
    %637 = vector.broadcast %636 : f32 to vector<2x256xf32>
    %638 = arith.mulf %543, %637 : vector<2x256xf32>
    %639 = arith.addf %635, %638 : vector<2x256xf32>
    %c92_44 = arith.constant 92 : index
    %640 = memref.load %arg4[%c92_44] : memref<112xf32, #tpu.memory_space<smem>>
    %641 = vector.broadcast %640 : f32 to vector<2x256xf32>
    %642 = arith.mulf %544, %641 : vector<2x256xf32>
    %643 = arith.addf %639, %642 : vector<2x256xf32>
    %c96_45 = arith.constant 96 : index
    %644 = memref.load %arg4[%c96_45] : memref<112xf32, #tpu.memory_space<smem>>
    %645 = vector.broadcast %644 : f32 to vector<2x256xf32>
    %646 = arith.mulf %545, %645 : vector<2x256xf32>
    %647 = arith.addf %643, %646 : vector<2x256xf32>
    %c100_46 = arith.constant 100 : index
    %648 = memref.load %arg4[%c100_46] : memref<112xf32, #tpu.memory_space<smem>>
    %649 = vector.broadcast %648 : f32 to vector<2x256xf32>
    %650 = arith.mulf %546, %649 : vector<2x256xf32>
    %651 = arith.addf %647, %650 : vector<2x256xf32>
    %c104_47 = arith.constant 104 : index
    %652 = memref.load %arg4[%c104_47] : memref<112xf32, #tpu.memory_space<smem>>
    %653 = vector.broadcast %652 : f32 to vector<2x256xf32>
    %654 = arith.mulf %547, %653 : vector<2x256xf32>
    %655 = arith.addf %651, %654 : vector<2x256xf32>
    %c108_48 = arith.constant 108 : index
    %656 = memref.load %arg4[%c108_48] : memref<112xf32, #tpu.memory_space<smem>>
    %657 = vector.broadcast %656 : f32 to vector<2x256xf32>
    %658 = arith.mulf %548, %657 : vector<2x256xf32>
    %659 = arith.addf %655, %658 : vector<2x256xf32>
    %c0_49 = arith.constant 0 : index
    %660 = memref.load %arg5[%c0_49] : memref<4xf32, #tpu.memory_space<smem>>
    %661 = vector.broadcast %660 : f32 to vector<2x256xf32>
    %662 = arith.addf %659, %661 : vector<2x256xf32>
    %cst_50 = arith.constant 0.000000e+00 : f32
    %663 = vector.broadcast %cst_50 : f32 to vector<2x256xf32>
    %664 = arith.cmpf oge, %662, %663 : vector<2x256xf32>
    %cst_51 = arith.constant 2.000000e-02 : f32
    %665 = vector.broadcast %cst_51 : f32 to vector<2x256xf32>
    %666 = arith.mulf %665, %662 : vector<2x256xf32>
    %667 = arith.select %664, %662, %666 : vector<2x256xi1>, vector<2x256xf32>
    %c0_52 = arith.constant 0 : index
    %c0_53 = arith.constant 0 : index
    %668 = vector.load %arg8[%c0_52, %c0_53] : memref<8x256xf32, #tpu.memory_space<vmem>>, vector<2x256xf32>
    tpu.vector_store %arg8[%c0_52, %c0_53], %667 {strides = array<i32>} : memref<8x256xf32, #tpu.memory_space<vmem>>, vector<2x256xf32>,
    %c1_54 = arith.constant 1 : index
    %669 = memref.load %arg4[%c1_54] : memref<112xf32, #tpu.memory_space<smem>>
    %670 = vector.broadcast %669 : f32 to vector<2x256xf32>
    %671 = arith.mulf %521, %670 : vector<2x256xf32>
    %c5_55 = arith.constant 5 : index
    %672 = memref.load %arg4[%c5_55] : memref<112xf32, #tpu.memory_space<smem>>
    %673 = vector.broadcast %672 : f32 to vector<2x256xf32>
    %674 = arith.mulf %522, %673 : vector<2x256xf32>
    %675 = arith.addf %671, %674 : vector<2x256xf32>
    %c9_56 = arith.constant 9 : index
    %676 = memref.load %arg4[%c9_56] : memref<112xf32, #tpu.memory_space<smem>>
    %677 = vector.broadcast %676 : f32 to vector<2x256xf32>
    %678 = arith.mulf %523, %677 : vector<2x256xf32>
    %679 = arith.addf %675, %678 : vector<2x256xf32>
    %c13_57 = arith.constant 13 : index
    %680 = memref.load %arg4[%c13_57] : memref<112xf32, #tpu.memory_space<smem>>
    %681 = vector.broadcast %680 : f32 to vector<2x256xf32>
    %682 = arith.mulf %524, %681 : vector<2x256xf32>
    %683 = arith.addf %679, %682 : vector<2x256xf32>
    %c17_58 = arith.constant 17 : index
    %684 = memref.load %arg4[%c17_58] : memref<112xf32, #tpu.memory_space<smem>>
    %685 = vector.broadcast %684 : f32 to vector<2x256xf32>
    %686 = arith.mulf %525, %685 : vector<2x256xf32>
    %687 = arith.addf %683, %686 : vector<2x256xf32>
    %c21_59 = arith.constant 21 : index
    %688 = memref.load %arg4[%c21_59] : memref<112xf32, #tpu.memory_space<smem>>
    %689 = vector.broadcast %688 : f32 to vector<2x256xf32>
    %690 = arith.mulf %526, %689 : vector<2x256xf32>
    %691 = arith.addf %687, %690 : vector<2x256xf32>
    %c25_60 = arith.constant 25 : index
    %692 = memref.load %arg4[%c25_60] : memref<112xf32, #tpu.memory_space<smem>>
    %693 = vector.broadcast %692 : f32 to vector<2x256xf32>
    %694 = arith.mulf %527, %693 : vector<2x256xf32>
    %695 = arith.addf %691, %694 : vector<2x256xf32>
    %c29_61 = arith.constant 29 : index
    %696 = memref.load %arg4[%c29_61] : memref<112xf32, #tpu.memory_space<smem>>
    %697 = vector.broadcast %696 : f32 to vector<2x256xf32>
    %698 = arith.mulf %528, %697 : vector<2x256xf32>
    %699 = arith.addf %695, %698 : vector<2x256xf32>
    %c33_62 = arith.constant 33 : index
    %700 = memref.load %arg4[%c33_62] : memref<112xf32, #tpu.memory_space<smem>>
    %701 = vector.broadcast %700 : f32 to vector<2x256xf32>
    %702 = arith.mulf %529, %701 : vector<2x256xf32>
    %703 = arith.addf %699, %702 : vector<2x256xf32>
    %c37_63 = arith.constant 37 : index
    %704 = memref.load %arg4[%c37_63] : memref<112xf32, #tpu.memory_space<smem>>
    %705 = vector.broadcast %704 : f32 to vector<2x256xf32>
    %706 = arith.mulf %530, %705 : vector<2x256xf32>
    %707 = arith.addf %703, %706 : vector<2x256xf32>
    %c41_64 = arith.constant 41 : index
    %708 = memref.load %arg4[%c41_64] : memref<112xf32, #tpu.memory_space<smem>>
    %709 = vector.broadcast %708 : f32 to vector<2x256xf32>
    %710 = arith.mulf %531, %709 : vector<2x256xf32>
    %711 = arith.addf %707, %710 : vector<2x256xf32>
    %c45_65 = arith.constant 45 : index
    %712 = memref.load %arg4[%c45_65] : memref<112xf32, #tpu.memory_space<smem>>
    %713 = vector.broadcast %712 : f32 to vector<2x256xf32>
    %714 = arith.mulf %532, %713 : vector<2x256xf32>
    %715 = arith.addf %711, %714 : vector<2x256xf32>
    %c49_66 = arith.constant 49 : index
    %716 = memref.load %arg4[%c49_66] : memref<112xf32, #tpu.memory_space<smem>>
    %717 = vector.broadcast %716 : f32 to vector<2x256xf32>
    %718 = arith.mulf %533, %717 : vector<2x256xf32>
    %719 = arith.addf %715, %718 : vector<2x256xf32>
    %c53_67 = arith.constant 53 : index
    %720 = memref.load %arg4[%c53_67] : memref<112xf32, #tpu.memory_space<smem>>
    %721 = vector.broadcast %720 : f32 to vector<2x256xf32>
    %722 = arith.mulf %534, %721 : vector<2x256xf32>
    %723 = arith.addf %719, %722 : vector<2x256xf32>
    %c57_68 = arith.constant 57 : index
    %724 = memref.load %arg4[%c57_68] : memref<112xf32, #tpu.memory_space<smem>>
    %725 = vector.broadcast %724 : f32 to vector<2x256xf32>
    %726 = arith.mulf %535, %725 : vector<2x256xf32>
    %727 = arith.addf %723, %726 : vector<2x256xf32>
    %c61_69 = arith.constant 61 : index
    %728 = memref.load %arg4[%c61_69] : memref<112xf32, #tpu.memory_space<smem>>
    %729 = vector.broadcast %728 : f32 to vector<2x256xf32>
    %730 = arith.mulf %536, %729 : vector<2x256xf32>
    %731 = arith.addf %727, %730 : vector<2x256xf32>
    %c65_70 = arith.constant 65 : index
    %732 = memref.load %arg4[%c65_70] : memref<112xf32, #tpu.memory_space<smem>>
    %733 = vector.broadcast %732 : f32 to vector<2x256xf32>
    %734 = arith.mulf %537, %733 : vector<2x256xf32>
    %735 = arith.addf %731, %734 : vector<2x256xf32>
    %c69_71 = arith.constant 69 : index
    %736 = memref.load %arg4[%c69_71] : memref<112xf32, #tpu.memory_space<smem>>
    %737 = vector.broadcast %736 : f32 to vector<2x256xf32>
    %738 = arith.mulf %538, %737 : vector<2x256xf32>
    %739 = arith.addf %735, %738 : vector<2x256xf32>
    %c73_72 = arith.constant 73 : index
    %740 = memref.load %arg4[%c73_72] : memref<112xf32, #tpu.memory_space<smem>>
    %741 = vector.broadcast %740 : f32 to vector<2x256xf32>
    %742 = arith.mulf %539, %741 : vector<2x256xf32>
    %743 = arith.addf %739, %742 : vector<2x256xf32>
    %c77_73 = arith.constant 77 : index
    %744 = memref.load %arg4[%c77_73] : memref<112xf32, #tpu.memory_space<smem>>
    %745 = vector.broadcast %744 : f32 to vector<2x256xf32>
    %746 = arith.mulf %540, %745 : vector<2x256xf32>
    %747 = arith.addf %743, %746 : vector<2x256xf32>
    %c81_74 = arith.constant 81 : index
    %748 = memref.load %arg4[%c81_74] : memref<112xf32, #tpu.memory_space<smem>>
    %749 = vector.broadcast %748 : f32 to vector<2x256xf32>
    %750 = arith.mulf %541, %749 : vector<2x256xf32>
    %751 = arith.addf %747, %750 : vector<2x256xf32>
    %c85_75 = arith.constant 85 : index
    %752 = memref.load %arg4[%c85_75] : memref<112xf32, #tpu.memory_space<smem>>
    %753 = vector.broadcast %752 : f32 to vector<2x256xf32>
    %754 = arith.mulf %542, %753 : vector<2x256xf32>
    %755 = arith.addf %751, %754 : vector<2x256xf32>
    %c89_76 = arith.constant 89 : index
    %756 = memref.load %arg4[%c89_76] : memref<112xf32, #tpu.memory_space<smem>>
    %757 = vector.broadcast %756 : f32 to vector<2x256xf32>
    %758 = arith.mulf %543, %757 : vector<2x256xf32>
    %759 = arith.addf %755, %758 : vector<2x256xf32>
    %c93_77 = arith.constant 93 : index
    %760 = memref.load %arg4[%c93_77] : memref<112xf32, #tpu.memory_space<smem>>
    %761 = vector.broadcast %760 : f32 to vector<2x256xf32>
    %762 = arith.mulf %544, %761 : vector<2x256xf32>
    %763 = arith.addf %759, %762 : vector<2x256xf32>
    %c97_78 = arith.constant 97 : index
    %764 = memref.load %arg4[%c97_78] : memref<112xf32, #tpu.memory_space<smem>>
    %765 = vector.broadcast %764 : f32 to vector<2x256xf32>
    %766 = arith.mulf %545, %765 : vector<2x256xf32>
    %767 = arith.addf %763, %766 : vector<2x256xf32>
    %c101_79 = arith.constant 101 : index
    %768 = memref.load %arg4[%c101_79] : memref<112xf32, #tpu.memory_space<smem>>
    %769 = vector.broadcast %768 : f32 to vector<2x256xf32>
    %770 = arith.mulf %546, %769 : vector<2x256xf32>
    %771 = arith.addf %767, %770 : vector<2x256xf32>
    %c105_80 = arith.constant 105 : index
    %772 = memref.load %arg4[%c105_80] : memref<112xf32, #tpu.memory_space<smem>>
    %773 = vector.broadcast %772 : f32 to vector<2x256xf32>
    %774 = arith.mulf %547, %773 : vector<2x256xf32>
    %775 = arith.addf %771, %774 : vector<2x256xf32>
    %c109_81 = arith.constant 109 : index
    %776 = memref.load %arg4[%c109_81] : memref<112xf32, #tpu.memory_space<smem>>
    %777 = vector.broadcast %776 : f32 to vector<2x256xf32>
    %778 = arith.mulf %548, %777 : vector<2x256xf32>
    %779 = arith.addf %775, %778 : vector<2x256xf32>
    %c1_82 = arith.constant 1 : index
    %780 = memref.load %arg5[%c1_82] : memref<4xf32, #tpu.memory_space<smem>>
    %781 = vector.broadcast %780 : f32 to vector<2x256xf32>
    %782 = arith.addf %779, %781 : vector<2x256xf32>
    %cst_83 = arith.constant 0.000000e+00 : f32
    %783 = vector.broadcast %cst_83 : f32 to vector<2x256xf32>
    %784 = arith.cmpf oge, %782, %783 : vector<2x256xf32>
    %cst_84 = arith.constant 2.000000e-02 : f32
    %785 = vector.broadcast %cst_84 : f32 to vector<2x256xf32>
    %786 = arith.mulf %785, %782 : vector<2x256xf32>
    %787 = arith.select %784, %782, %786 : vector<2x256xi1>, vector<2x256xf32>
    %c2_85 = arith.constant 2 : index
    %c0_86 = arith.constant 0 : index
    %788 = vector.load %arg8[%c2_85, %c0_86] : memref<8x256xf32, #tpu.memory_space<vmem>>, vector<2x256xf32>
    tpu.vector_store %arg8[%c2_85, %c0_86], %787 {strides = array<i32>} : memref<8x256xf32, #tpu.memory_space<vmem>>, vector<2x256xf32>,
    %c2_87 = arith.constant 2 : index
    %789 = memref.load %arg4[%c2_87] : memref<112xf32, #tpu.memory_space<smem>>
    %790 = vector.broadcast %789 : f32 to vector<2x256xf32>
    %791 = arith.mulf %521, %790 : vector<2x256xf32>
    %c6_88 = arith.constant 6 : index
    %792 = memref.load %arg4[%c6_88] : memref<112xf32, #tpu.memory_space<smem>>
    %793 = vector.broadcast %792 : f32 to vector<2x256xf32>
    %794 = arith.mulf %522, %793 : vector<2x256xf32>
    %795 = arith.addf %791, %794 : vector<2x256xf32>
    %c10_89 = arith.constant 10 : index
    %796 = memref.load %arg4[%c10_89] : memref<112xf32, #tpu.memory_space<smem>>
    %797 = vector.broadcast %796 : f32 to vector<2x256xf32>
    %798 = arith.mulf %523, %797 : vector<2x256xf32>
    %799 = arith.addf %795, %798 : vector<2x256xf32>
    %c14_90 = arith.constant 14 : index
    %800 = memref.load %arg4[%c14_90] : memref<112xf32, #tpu.memory_space<smem>>
    %801 = vector.broadcast %800 : f32 to vector<2x256xf32>
    %802 = arith.mulf %524, %801 : vector<2x256xf32>
    %803 = arith.addf %799, %802 : vector<2x256xf32>
    %c18_91 = arith.constant 18 : index
    %804 = memref.load %arg4[%c18_91] : memref<112xf32, #tpu.memory_space<smem>>
    %805 = vector.broadcast %804 : f32 to vector<2x256xf32>
    %806 = arith.mulf %525, %805 : vector<2x256xf32>
    %807 = arith.addf %803, %806 : vector<2x256xf32>
    %c22_92 = arith.constant 22 : index
    %808 = memref.load %arg4[%c22_92] : memref<112xf32, #tpu.memory_space<smem>>
    %809 = vector.broadcast %808 : f32 to vector<2x256xf32>
    %810 = arith.mulf %526, %809 : vector<2x256xf32>
    %811 = arith.addf %807, %810 : vector<2x256xf32>
    %c26_93 = arith.constant 26 : index
    %812 = memref.load %arg4[%c26_93] : memref<112xf32, #tpu.memory_space<smem>>
    %813 = vector.broadcast %812 : f32 to vector<2x256xf32>
    %814 = arith.mulf %527, %813 : vector<2x256xf32>
    %815 = arith.addf %811, %814 : vector<2x256xf32>
    %c30_94 = arith.constant 30 : index
    %816 = memref.load %arg4[%c30_94] : memref<112xf32, #tpu.memory_space<smem>>
    %817 = vector.broadcast %816 : f32 to vector<2x256xf32>
    %818 = arith.mulf %528, %817 : vector<2x256xf32>
    %819 = arith.addf %815, %818 : vector<2x256xf32>
    %c34_95 = arith.constant 34 : index
    %820 = memref.load %arg4[%c34_95] : memref<112xf32, #tpu.memory_space<smem>>
    %821 = vector.broadcast %820 : f32 to vector<2x256xf32>
    %822 = arith.mulf %529, %821 : vector<2x256xf32>
    %823 = arith.addf %819, %822 : vector<2x256xf32>
    %c38_96 = arith.constant 38 : index
    %824 = memref.load %arg4[%c38_96] : memref<112xf32, #tpu.memory_space<smem>>
    %825 = vector.broadcast %824 : f32 to vector<2x256xf32>
    %826 = arith.mulf %530, %825 : vector<2x256xf32>
    %827 = arith.addf %823, %826 : vector<2x256xf32>
    %c42_97 = arith.constant 42 : index
    %828 = memref.load %arg4[%c42_97] : memref<112xf32, #tpu.memory_space<smem>>
    %829 = vector.broadcast %828 : f32 to vector<2x256xf32>
    %830 = arith.mulf %531, %829 : vector<2x256xf32>
    %831 = arith.addf %827, %830 : vector<2x256xf32>
    %c46_98 = arith.constant 46 : index
    %832 = memref.load %arg4[%c46_98] : memref<112xf32, #tpu.memory_space<smem>>
    %833 = vector.broadcast %832 : f32 to vector<2x256xf32>
    %834 = arith.mulf %532, %833 : vector<2x256xf32>
    %835 = arith.addf %831, %834 : vector<2x256xf32>
    %c50_99 = arith.constant 50 : index
    %836 = memref.load %arg4[%c50_99] : memref<112xf32, #tpu.memory_space<smem>>
    %837 = vector.broadcast %836 : f32 to vector<2x256xf32>
    %838 = arith.mulf %533, %837 : vector<2x256xf32>
    %839 = arith.addf %835, %838 : vector<2x256xf32>
    %c54_100 = arith.constant 54 : index
    %840 = memref.load %arg4[%c54_100] : memref<112xf32, #tpu.memory_space<smem>>
    %841 = vector.broadcast %840 : f32 to vector<2x256xf32>
    %842 = arith.mulf %534, %841 : vector<2x256xf32>
    %843 = arith.addf %839, %842 : vector<2x256xf32>
    %c58_101 = arith.constant 58 : index
    %844 = memref.load %arg4[%c58_101] : memref<112xf32, #tpu.memory_space<smem>>
    %845 = vector.broadcast %844 : f32 to vector<2x256xf32>
    %846 = arith.mulf %535, %845 : vector<2x256xf32>
    %847 = arith.addf %843, %846 : vector<2x256xf32>
    %c62_102 = arith.constant 62 : index
    %848 = memref.load %arg4[%c62_102] : memref<112xf32, #tpu.memory_space<smem>>
    %849 = vector.broadcast %848 : f32 to vector<2x256xf32>
    %850 = arith.mulf %536, %849 : vector<2x256xf32>
    %851 = arith.addf %847, %850 : vector<2x256xf32>
    %c66_103 = arith.constant 66 : index
    %852 = memref.load %arg4[%c66_103] : memref<112xf32, #tpu.memory_space<smem>>
    %853 = vector.broadcast %852 : f32 to vector<2x256xf32>
    %854 = arith.mulf %537, %853 : vector<2x256xf32>
    %855 = arith.addf %851, %854 : vector<2x256xf32>
    %c70_104 = arith.constant 70 : index
    %856 = memref.load %arg4[%c70_104] : memref<112xf32, #tpu.memory_space<smem>>
    %857 = vector.broadcast %856 : f32 to vector<2x256xf32>
    %858 = arith.mulf %538, %857 : vector<2x256xf32>
    %859 = arith.addf %855, %858 : vector<2x256xf32>
    %c74_105 = arith.constant 74 : index
    %860 = memref.load %arg4[%c74_105] : memref<112xf32, #tpu.memory_space<smem>>
    %861 = vector.broadcast %860 : f32 to vector<2x256xf32>
    %862 = arith.mulf %539, %861 : vector<2x256xf32>
    %863 = arith.addf %859, %862 : vector<2x256xf32>
    %c78_106 = arith.constant 78 : index
    %864 = memref.load %arg4[%c78_106] : memref<112xf32, #tpu.memory_space<smem>>
    %865 = vector.broadcast %864 : f32 to vector<2x256xf32>
    %866 = arith.mulf %540, %865 : vector<2x256xf32>
    %867 = arith.addf %863, %866 : vector<2x256xf32>
    %c82_107 = arith.constant 82 : index
    %868 = memref.load %arg4[%c82_107] : memref<112xf32, #tpu.memory_space<smem>>
    %869 = vector.broadcast %868 : f32 to vector<2x256xf32>
    %870 = arith.mulf %541, %869 : vector<2x256xf32>
    %871 = arith.addf %867, %870 : vector<2x256xf32>
    %c86_108 = arith.constant 86 : index
    %872 = memref.load %arg4[%c86_108] : memref<112xf32, #tpu.memory_space<smem>>
    %873 = vector.broadcast %872 : f32 to vector<2x256xf32>
    %874 = arith.mulf %542, %873 : vector<2x256xf32>
    %875 = arith.addf %871, %874 : vector<2x256xf32>
    %c90_109 = arith.constant 90 : index
    %876 = memref.load %arg4[%c90_109] : memref<112xf32, #tpu.memory_space<smem>>
    %877 = vector.broadcast %876 : f32 to vector<2x256xf32>
    %878 = arith.mulf %543, %877 : vector<2x256xf32>
    %879 = arith.addf %875, %878 : vector<2x256xf32>
    %c94_110 = arith.constant 94 : index
    %880 = memref.load %arg4[%c94_110] : memref<112xf32, #tpu.memory_space<smem>>
    %881 = vector.broadcast %880 : f32 to vector<2x256xf32>
    %882 = arith.mulf %544, %881 : vector<2x256xf32>
    %883 = arith.addf %879, %882 : vector<2x256xf32>
    %c98_111 = arith.constant 98 : index
    %884 = memref.load %arg4[%c98_111] : memref<112xf32, #tpu.memory_space<smem>>
    %885 = vector.broadcast %884 : f32 to vector<2x256xf32>
    %886 = arith.mulf %545, %885 : vector<2x256xf32>
    %887 = arith.addf %883, %886 : vector<2x256xf32>
    %c102_112 = arith.constant 102 : index
    %888 = memref.load %arg4[%c102_112] : memref<112xf32, #tpu.memory_space<smem>>
    %889 = vector.broadcast %888 : f32 to vector<2x256xf32>
    %890 = arith.mulf %546, %889 : vector<2x256xf32>
    %891 = arith.addf %887, %890 : vector<2x256xf32>
    %c106_113 = arith.constant 106 : index
    %892 = memref.load %arg4[%c106_113] : memref<112xf32, #tpu.memory_space<smem>>
    %893 = vector.broadcast %892 : f32 to vector<2x256xf32>
    %894 = arith.mulf %547, %893 : vector<2x256xf32>
    %895 = arith.addf %891, %894 : vector<2x256xf32>
    %c110_114 = arith.constant 110 : index
    %896 = memref.load %arg4[%c110_114] : memref<112xf32, #tpu.memory_space<smem>>
    %897 = vector.broadcast %896 : f32 to vector<2x256xf32>
    %898 = arith.mulf %548, %897 : vector<2x256xf32>
    %899 = arith.addf %895, %898 : vector<2x256xf32>
    %c2_115 = arith.constant 2 : index
    %900 = memref.load %arg5[%c2_115] : memref<4xf32, #tpu.memory_space<smem>>
    %901 = vector.broadcast %900 : f32 to vector<2x256xf32>
    %902 = arith.addf %899, %901 : vector<2x256xf32>
    %cst_116 = arith.constant 0.000000e+00 : f32
    %903 = vector.broadcast %cst_116 : f32 to vector<2x256xf32>
    %904 = arith.cmpf oge, %902, %903 : vector<2x256xf32>
    %cst_117 = arith.constant 2.000000e-02 : f32
    %905 = vector.broadcast %cst_117 : f32 to vector<2x256xf32>
    %906 = arith.mulf %905, %902 : vector<2x256xf32>
    %907 = arith.select %904, %902, %906 : vector<2x256xi1>, vector<2x256xf32>
    %c4_118 = arith.constant 4 : index
    %c0_119 = arith.constant 0 : index
    %908 = vector.load %arg8[%c4_118, %c0_119] : memref<8x256xf32, #tpu.memory_space<vmem>>, vector<2x256xf32>
    tpu.vector_store %arg8[%c4_118, %c0_119], %907 {strides = array<i32>} : memref<8x256xf32, #tpu.memory_space<vmem>>, vector<2x256xf32>,
    %c3_120 = arith.constant 3 : index
    %909 = memref.load %arg4[%c3_120] : memref<112xf32, #tpu.memory_space<smem>>
    %910 = vector.broadcast %909 : f32 to vector<2x256xf32>
    %911 = arith.mulf %521, %910 : vector<2x256xf32>
    %c7_121 = arith.constant 7 : index
    %912 = memref.load %arg4[%c7_121] : memref<112xf32, #tpu.memory_space<smem>>
    %913 = vector.broadcast %912 : f32 to vector<2x256xf32>
    %914 = arith.mulf %522, %913 : vector<2x256xf32>
    %915 = arith.addf %911, %914 : vector<2x256xf32>
    %c11_122 = arith.constant 11 : index
    %916 = memref.load %arg4[%c11_122] : memref<112xf32, #tpu.memory_space<smem>>
    %917 = vector.broadcast %916 : f32 to vector<2x256xf32>
    %918 = arith.mulf %523, %917 : vector<2x256xf32>
    %919 = arith.addf %915, %918 : vector<2x256xf32>
    %c15_123 = arith.constant 15 : index
    %920 = memref.load %arg4[%c15_123] : memref<112xf32, #tpu.memory_space<smem>>
    %921 = vector.broadcast %920 : f32 to vector<2x256xf32>
    %922 = arith.mulf %524, %921 : vector<2x256xf32>
    %923 = arith.addf %919, %922 : vector<2x256xf32>
    %c19_124 = arith.constant 19 : index
    %924 = memref.load %arg4[%c19_124] : memref<112xf32, #tpu.memory_space<smem>>
    %925 = vector.broadcast %924 : f32 to vector<2x256xf32>
    %926 = arith.mulf %525, %925 : vector<2x256xf32>
    %927 = arith.addf %923, %926 : vector<2x256xf32>
    %c23_125 = arith.constant 23 : index
    %928 = memref.load %arg4[%c23_125] : memref<112xf32, #tpu.memory_space<smem>>
    %929 = vector.broadcast %928 : f32 to vector<2x256xf32>
    %930 = arith.mulf %526, %929 : vector<2x256xf32>
    %931 = arith.addf %927, %930 : vector<2x256xf32>
    %c27_126 = arith.constant 27 : index
    %932 = memref.load %arg4[%c27_126] : memref<112xf32, #tpu.memory_space<smem>>
    %933 = vector.broadcast %932 : f32 to vector<2x256xf32>
    %934 = arith.mulf %527, %933 : vector<2x256xf32>
    %935 = arith.addf %931, %934 : vector<2x256xf32>
    %c31_127 = arith.constant 31 : index
    %936 = memref.load %arg4[%c31_127] : memref<112xf32, #tpu.memory_space<smem>>
    %937 = vector.broadcast %936 : f32 to vector<2x256xf32>
    %938 = arith.mulf %528, %937 : vector<2x256xf32>
    %939 = arith.addf %935, %938 : vector<2x256xf32>
    %c35_128 = arith.constant 35 : index
    %940 = memref.load %arg4[%c35_128] : memref<112xf32, #tpu.memory_space<smem>>
    %941 = vector.broadcast %940 : f32 to vector<2x256xf32>
    %942 = arith.mulf %529, %941 : vector<2x256xf32>
    %943 = arith.addf %939, %942 : vector<2x256xf32>
    %c39_129 = arith.constant 39 : index
    %944 = memref.load %arg4[%c39_129] : memref<112xf32, #tpu.memory_space<smem>>
    %945 = vector.broadcast %944 : f32 to vector<2x256xf32>
    %946 = arith.mulf %530, %945 : vector<2x256xf32>
    %947 = arith.addf %943, %946 : vector<2x256xf32>
    %c43_130 = arith.constant 43 : index
    %948 = memref.load %arg4[%c43_130] : memref<112xf32, #tpu.memory_space<smem>>
    %949 = vector.broadcast %948 : f32 to vector<2x256xf32>
    %950 = arith.mulf %531, %949 : vector<2x256xf32>
    %951 = arith.addf %947, %950 : vector<2x256xf32>
    %c47_131 = arith.constant 47 : index
    %952 = memref.load %arg4[%c47_131] : memref<112xf32, #tpu.memory_space<smem>>
    %953 = vector.broadcast %952 : f32 to vector<2x256xf32>
    %954 = arith.mulf %532, %953 : vector<2x256xf32>
    %955 = arith.addf %951, %954 : vector<2x256xf32>
    %c51_132 = arith.constant 51 : index
    %956 = memref.load %arg4[%c51_132] : memref<112xf32, #tpu.memory_space<smem>>
    %957 = vector.broadcast %956 : f32 to vector<2x256xf32>
    %958 = arith.mulf %533, %957 : vector<2x256xf32>
    %959 = arith.addf %955, %958 : vector<2x256xf32>
    %c55_133 = arith.constant 55 : index
    %960 = memref.load %arg4[%c55_133] : memref<112xf32, #tpu.memory_space<smem>>
    %961 = vector.broadcast %960 : f32 to vector<2x256xf32>
    %962 = arith.mulf %534, %961 : vector<2x256xf32>
    %963 = arith.addf %959, %962 : vector<2x256xf32>
    %c59_134 = arith.constant 59 : index
    %964 = memref.load %arg4[%c59_134] : memref<112xf32, #tpu.memory_space<smem>>
    %965 = vector.broadcast %964 : f32 to vector<2x256xf32>
    %966 = arith.mulf %535, %965 : vector<2x256xf32>
    %967 = arith.addf %963, %966 : vector<2x256xf32>
    %c63_135 = arith.constant 63 : index
    %968 = memref.load %arg4[%c63_135] : memref<112xf32, #tpu.memory_space<smem>>
    %969 = vector.broadcast %968 : f32 to vector<2x256xf32>
    %970 = arith.mulf %536, %969 : vector<2x256xf32>
    %971 = arith.addf %967, %970 : vector<2x256xf32>
    %c67_136 = arith.constant 67 : index
    %972 = memref.load %arg4[%c67_136] : memref<112xf32, #tpu.memory_space<smem>>
    %973 = vector.broadcast %972 : f32 to vector<2x256xf32>
    %974 = arith.mulf %537, %973 : vector<2x256xf32>
    %975 = arith.addf %971, %974 : vector<2x256xf32>
    %c71_137 = arith.constant 71 : index
    %976 = memref.load %arg4[%c71_137] : memref<112xf32, #tpu.memory_space<smem>>
    %977 = vector.broadcast %976 : f32 to vector<2x256xf32>
    %978 = arith.mulf %538, %977 : vector<2x256xf32>
    %979 = arith.addf %975, %978 : vector<2x256xf32>
    %c75_138 = arith.constant 75 : index
    %980 = memref.load %arg4[%c75_138] : memref<112xf32, #tpu.memory_space<smem>>
    %981 = vector.broadcast %980 : f32 to vector<2x256xf32>
    %982 = arith.mulf %539, %981 : vector<2x256xf32>
    %983 = arith.addf %979, %982 : vector<2x256xf32>
    %c79_139 = arith.constant 79 : index
    %984 = memref.load %arg4[%c79_139] : memref<112xf32, #tpu.memory_space<smem>>
    %985 = vector.broadcast %984 : f32 to vector<2x256xf32>
    %986 = arith.mulf %540, %985 : vector<2x256xf32>
    %987 = arith.addf %983, %986 : vector<2x256xf32>
    %c83_140 = arith.constant 83 : index
    %988 = memref.load %arg4[%c83_140] : memref<112xf32, #tpu.memory_space<smem>>
    %989 = vector.broadcast %988 : f32 to vector<2x256xf32>
    %990 = arith.mulf %541, %989 : vector<2x256xf32>
    %991 = arith.addf %987, %990 : vector<2x256xf32>
    %c87_141 = arith.constant 87 : index
    %992 = memref.load %arg4[%c87_141] : memref<112xf32, #tpu.memory_space<smem>>
    %993 = vector.broadcast %992 : f32 to vector<2x256xf32>
    %994 = arith.mulf %542, %993 : vector<2x256xf32>
    %995 = arith.addf %991, %994 : vector<2x256xf32>
    %c91_142 = arith.constant 91 : index
    %996 = memref.load %arg4[%c91_142] : memref<112xf32, #tpu.memory_space<smem>>
    %997 = vector.broadcast %996 : f32 to vector<2x256xf32>
    %998 = arith.mulf %543, %997 : vector<2x256xf32>
    %999 = arith.addf %995, %998 : vector<2x256xf32>
    %c95_143 = arith.constant 95 : index
    %1000 = memref.load %arg4[%c95_143] : memref<112xf32, #tpu.memory_space<smem>>
    %1001 = vector.broadcast %1000 : f32 to vector<2x256xf32>
    %1002 = arith.mulf %544, %1001 : vector<2x256xf32>
    %1003 = arith.addf %999, %1002 : vector<2x256xf32>
    %c99_144 = arith.constant 99 : index
    %1004 = memref.load %arg4[%c99_144] : memref<112xf32, #tpu.memory_space<smem>>
    %1005 = vector.broadcast %1004 : f32 to vector<2x256xf32>
    %1006 = arith.mulf %545, %1005 : vector<2x256xf32>
    %1007 = arith.addf %1003, %1006 : vector<2x256xf32>
    %c103_145 = arith.constant 103 : index
    %1008 = memref.load %arg4[%c103_145] : memref<112xf32, #tpu.memory_space<smem>>
    %1009 = vector.broadcast %1008 : f32 to vector<2x256xf32>
    %1010 = arith.mulf %546, %1009 : vector<2x256xf32>
    %1011 = arith.addf %1007, %1010 : vector<2x256xf32>
    %c107_146 = arith.constant 107 : index
    %1012 = memref.load %arg4[%c107_146] : memref<112xf32, #tpu.memory_space<smem>>
    %1013 = vector.broadcast %1012 : f32 to vector<2x256xf32>
    %1014 = arith.mulf %547, %1013 : vector<2x256xf32>
    %1015 = arith.addf %1011, %1014 : vector<2x256xf32>
    %c111_147 = arith.constant 111 : index
    %1016 = memref.load %arg4[%c111_147] : memref<112xf32, #tpu.memory_space<smem>>
    %1017 = vector.broadcast %1016 : f32 to vector<2x256xf32>
    %1018 = arith.mulf %548, %1017 : vector<2x256xf32>
    %1019 = arith.addf %1015, %1018 : vector<2x256xf32>
    %c3_148 = arith.constant 3 : index
    %1020 = memref.load %arg5[%c3_148] : memref<4xf32, #tpu.memory_space<smem>>
    %1021 = vector.broadcast %1020 : f32 to vector<2x256xf32>
    %1022 = arith.addf %1019, %1021 : vector<2x256xf32>
    %cst_149 = arith.constant 0.000000e+00 : f32
    %1023 = vector.broadcast %cst_149 : f32 to vector<2x256xf32>
    %1024 = arith.cmpf oge, %1022, %1023 : vector<2x256xf32>
    %cst_150 = arith.constant 2.000000e-02 : f32
    %1025 = vector.broadcast %cst_150 : f32 to vector<2x256xf32>
    %1026 = arith.mulf %1025, %1022 : vector<2x256xf32>
    %1027 = arith.select %1024, %1022, %1026 : vector<2x256xi1>, vector<2x256xf32>
    %c6_151 = arith.constant 6 : index
    %c0_152 = arith.constant 0 : index
    %1028 = vector.load %arg8[%c6_151, %c0_152] : memref<8x256xf32, #tpu.memory_space<vmem>>, vector<2x256xf32>
    tpu.vector_store %arg8[%c6_151, %c0_152], %1027 {strides = array<i32>} : memref<8x256xf32, #tpu.memory_space<vmem>>, vector<2x256xf32>,
    %c0_153 = arith.constant 0 : index
    %c0_154 = arith.constant 0 : index
    %1029 = vector.load %arg1[%c0_153, %c0_154] : memref<4x256xf32, #tpu.memory_space<vmem>>, vector<1x256xf32>
    %c1_155 = arith.constant 1 : index
    %c0_156 = arith.constant 0 : index
    %1030 = vector.load %arg1[%c1_155, %c0_156] : memref<4x256xf32, #tpu.memory_space<vmem>>, vector<1x256xf32>
    %c2_157 = arith.constant 2 : index
    %c0_158 = arith.constant 0 : index
    %1031 = vector.load %arg1[%c2_157, %c0_158] : memref<4x256xf32, #tpu.memory_space<vmem>>, vector<1x256xf32>
    %c3_159 = arith.constant 3 : index
    %c0_160 = arith.constant 0 : index
    %1032 = vector.load %arg1[%c3_159, %c0_160] : memref<4x256xf32, #tpu.memory_space<vmem>>, vector<1x256xf32>
    %c0_161 = arith.constant 0 : index
    %c0_162 = arith.constant 0 : index
    %1033 = vector.load %arg7[%c0_161, %c0_162] : memref<8x256xf32, #tpu.memory_space<vmem>>, vector<8x256xf32>
    %1034 = vector.broadcast %1029 : vector<1x256xf32> to vector<8x256xf32>
    %1035 = arith.mulf %1033, %1034 : vector<8x256xf32>
    %c248_i32 = arith.constant 248 : i32
    %1036 = tpu.dynamic_rotate %1035 by %c248_i32 dim 1 : vector<8x256xf32>, i32 -> vector<8x256xf32>
    %1037 = arith.addf %1035, %1036 : vector<8x256xf32>
    %c252_i32_163 = arith.constant 252 : i32
    %1038 = tpu.dynamic_rotate %1037 by %c252_i32_163 dim 1 : vector<8x256xf32>, i32 -> vector<8x256xf32>
    %1039 = arith.addf %1037, %1038 : vector<8x256xf32>
    %c254_i32_164 = arith.constant 254 : i32
    %1040 = tpu.dynamic_rotate %1039 by %c254_i32_164 dim 1 : vector<8x256xf32>, i32 -> vector<8x256xf32>
    %1041 = arith.addf %1039, %1040 : vector<8x256xf32>
    %c255_i32_165 = arith.constant 255 : i32
    %1042 = tpu.dynamic_rotate %1041 by %c255_i32_165 dim 1 : vector<8x256xf32>, i32 -> vector<8x256xf32>
    %1043 = arith.addf %1041, %1042 : vector<8x256xf32>
    %1044 = vector.broadcast %1031 : vector<1x256xf32> to vector<8x256xf32>
    %1045 = arith.mulf %1043, %1044 : vector<8x256xf32>
    %c1_i32 = arith.constant 1 : i32
    %1046 = tpu.dynamic_rotate %1045 by %c1_i32 dim 1 : vector<8x256xf32>, i32 -> vector<8x256xf32>
    %1047 = arith.addf %1045, %1046 : vector<8x256xf32>
    %c2_i32 = arith.constant 2 : i32
    %1048 = tpu.dynamic_rotate %1047 by %c2_i32 dim 1 : vector<8x256xf32>, i32 -> vector<8x256xf32>
    %1049 = arith.addf %1047, %1048 : vector<8x256xf32>
    %c4_i32 = arith.constant 4 : i32
    %1050 = tpu.dynamic_rotate %1049 by %c4_i32 dim 1 : vector<8x256xf32>, i32 -> vector<8x256xf32>
    %1051 = arith.addf %1049, %1050 : vector<8x256xf32>
    %c8_i32 = arith.constant 8 : i32
    %1052 = tpu.dynamic_rotate %1051 by %c8_i32 dim 1 : vector<8x256xf32>, i32 -> vector<8x256xf32>
    %1053 = arith.addf %1051, %1052 : vector<8x256xf32>
    %c0_166 = arith.constant 0 : index
    %c0_167 = arith.constant 0 : index
    %1054 = vector.load %arg8[%c0_166, %c0_167] : memref<8x256xf32, #tpu.memory_space<vmem>>, vector<8x256xf32>
    %1055 = vector.broadcast %1030 : vector<1x256xf32> to vector<8x256xf32>
    %1056 = arith.mulf %1054, %1055 : vector<8x256xf32>
    %c128_i32 = arith.constant 128 : i32
    %1057 = tpu.dynamic_rotate %1056 by %c128_i32 dim 1 : vector<8x256xf32>, i32 -> vector<8x256xf32>
    %1058 = arith.addf %1056, %1057 : vector<8x256xf32>
    %c192_i32_168 = arith.constant 192 : i32
    %1059 = tpu.dynamic_rotate %1058 by %c192_i32_168 dim 1 : vector<8x256xf32>, i32 -> vector<8x256xf32>
    %1060 = arith.addf %1058, %1059 : vector<8x256xf32>
    %c224_i32_169 = arith.constant 224 : i32
    %1061 = tpu.dynamic_rotate %1060 by %c224_i32_169 dim 1 : vector<8x256xf32>, i32 -> vector<8x256xf32>
    %1062 = arith.addf %1060, %1061 : vector<8x256xf32>
    %c240_i32_170 = arith.constant 240 : i32
    %1063 = tpu.dynamic_rotate %1062 by %c240_i32_170 dim 1 : vector<8x256xf32>, i32 -> vector<8x256xf32>
    %1064 = arith.addf %1062, %1063 : vector<8x256xf32>
    %1065 = vector.broadcast %1032 : vector<1x256xf32> to vector<8x256xf32>
    %1066 = arith.mulf %1064, %1065 : vector<8x256xf32>
    %c16_i32 = arith.constant 16 : i32
    %1067 = tpu.dynamic_rotate %1066 by %c16_i32 dim 1 : vector<8x256xf32>, i32 -> vector<8x256xf32>
    %1068 = arith.addf %1066, %1067 : vector<8x256xf32>
    %c32_i32 = arith.constant 32 : i32
    %1069 = tpu.dynamic_rotate %1068 by %c32_i32 dim 1 : vector<8x256xf32>, i32 -> vector<8x256xf32>
    %1070 = arith.addf %1068, %1069 : vector<8x256xf32>
    %c64_i32 = arith.constant 64 : i32
    %1071 = tpu.dynamic_rotate %1070 by %c64_i32 dim 1 : vector<8x256xf32>, i32 -> vector<8x256xf32>
    %1072 = arith.addf %1070, %1071 : vector<8x256xf32>
    %c128_i32_171 = arith.constant 128 : i32
    %1073 = tpu.dynamic_rotate %1072 by %c128_i32_171 dim 1 : vector<8x256xf32>, i32 -> vector<8x256xf32>
    %1074 = arith.addf %1072, %1073 : vector<8x256xf32>
    %1075 = arith.mulf %1053, %1074 : vector<8x256xf32>
    %1076 = arith.negf %1075 : vector<8x256xf32>
    %1077 = math.exp %1076 : vector<8x256xf32>
    %cst_172 = arith.constant 1.000000e+00 : f32
    %1078 = vector.broadcast %cst_172 : f32 to vector<8x256xf32>
    %1079 = arith.addf %1078, %1077 : vector<8x256xf32>
    %1080 = arith.divf %1078, %1079 : vector<8x256xf32>
    %c0_173 = arith.constant 0 : index
    %c0_174 = arith.constant 0 : index
    %1081 = vector.load %arg6[%c0_173, %c0_174] : memref<8x256xf32, #tpu.memory_space<vmem>>, vector<8x256xf32>
    tpu.vector_store %arg6[%c0_173, %c0_174], %1080 {strides = array<i32>} : memref<8x256xf32, #tpu.memory_space<vmem>>, vector<8x256xf32>,
    return
  }
}

</mosaic_0001>

<llo_original>
// kernel: tpu_custom_call.1
$region0: #{tpu_custom_call.1}
  #allocation0 [shape = 'u32[]', space=smem, size = 0x4, offset = 0x4, fixed_abs, tag = 'smem constant byte address 0x4 - core index']
  #allocation1 [shape = 'u32[144,128]{1,0:T(1,128)}', space=vmem, size = 0x12000, scoped, tag = 'internal scratch']
  #allocation2 [shape = 'f32[8,256]{1,0:T(8,128)}', space=vmem, size = 0x2000, scoped, tag = 'scratch operand']
  #allocation3 [shape = 'f32[8,256]{1,0:T(8,128)}', space=vmem, size = 0x2000, scoped, tag = 'scratch operand']
  %s0 = inlined_call_operand.hbm [shape: f32[8,256], index: 0, kind: input, shape index: {}]
  %s1 = inlined_call_operand.hbm [shape: f32[4,256], index: 1, kind: input, shape index: {}]
  %s2 = inlined_call_operand.vmem [shape: f32[112], index: 2, kind: input, shape index: {}]
  %s3 = inlined_call_operand.vmem [shape: f32[4], index: 3, kind: input, shape index: {}]
  %s4 = inlined_call_operand.vmem [shape: f32[112], index: 4, kind: input, shape index: {}]
  %s5 = inlined_call_operand.vmem [shape: f32[4], index: 5, kind: input, shape index: {}]
  %s6 = inlined_call_operand.hbm [shape: f32[8,256], index: 6, kind: output, shape index: {}]
  %s7 = sld [smem:[#allocation0]]
  $region58: #{tpu_custom_call.1} parent=0
    _
  %s9 = ssub.s32 1, %s7
  %s10 = scalar_select 0, %s9, %s7
  $region1: #{tpu_custom_call.1} parent=0
    #allocation4 [shape = 'u8[8192]{0}', space=vmem, size = 0x2000, scoped, tag = 'input window, operand 0, single buffered']
    #allocation5 [shape = 's32[1]{0}', space=sflag, size = 0x4, scoped, tag = 'scoped memory for tpu_custom_call.1']
    #allocation6 [shape = 's32[1]{0}', space=sflag, size = 0x4, scoped, tag = 'scoped memory for tpu_custom_call.1']
    #allocation7 [shape = 's32[1]{0}', space=sflag, size = 0x4, scoped, tag = 'scoped memory for tpu_custom_call.1']
    #allocation8 [shape = 'u8[4096]{0}', space=vmem, size = 0x1000, scoped, tag = 'input window, operand 1, single buffered']
    #allocation9 [shape = 's32[1]{0}', space=sflag, size = 0x4, scoped, tag = 'scoped memory for tpu_custom_call.1']
    #allocation10 [shape = 'u8[512]{0}', space=smem, size = 0x200, scoped, tag = 'input window, operand 2, single buffered']
    #allocation11 [shape = 'u8[512]{0}', space=smem, size = 0x200, scoped, tag = 'input window, operand 3, single buffered']
    #allocation12 [shape = 's32[1]{0}', space=sflag, size = 0x4, scoped, tag = 'scoped memory for tpu_custom_call.1']
    #allocation13 [shape = 'u8[512]{0}', space=smem, size = 0x200, scoped, tag = 'input window, operand 4, single buffered']
    #allocation14 [shape = 'u8[512]{0}', space=smem, size = 0x200, scoped, tag = 'input window, operand 5, single buffered']
    #allocation15 [shape = 's32[1]{0}', space=sflag, size = 0x4, scoped, tag = 'scoped memory for tpu_custom_call.1']
    #allocation16 [shape = 'u8[8192]{0}', space=vmem, size = 0x2000, scoped, tag = 'output window, operand 0, single buffered']
    %11 = vsyncpa [#allocation5], 0
    %12 = vsyncpa [#allocation9], 0
    %13 = vsyncpa [#allocation7], 0
    %14 = vsyncpa [#allocation12], 0
    %15 = vsyncpa [#allocation15], 0
    %16 = vsyncpa [#allocation6], 0
    // Predicated region
    $region2: #{tpu_custom_call.1} parent=1 // pred_check
      _
    $region3: #{tpu_custom_call.1} parent=1 // pred_check_branch
      %18 = sbr.rel (0) target = $region5
    $region4: #{tpu_custom_call.1} parent=1 // pred_region
      %s20 = ssub.s32 256, 256
      %21 = vsyncadd [#allocation5], %s20
      %s23 = sshll.u32 [#allocation4], 4
      %s24 = int_to_ptr.vmem [resolvable:$true] %s23
      %26 = dma.hbm_to_vmem [thread:$0]  %s0, 256, %s24, [#allocation5]
    $region5: #{tpu_custom_call.1} parent=1 // pred_fallthru
      _
    // Predicated region
    $region6: #{tpu_custom_call.1} parent=1 // pred_check
      _
    $region7: #{tpu_custom_call.1} parent=1 // pred_check_branch
      %28 = sbr.rel (0) target = $region9
    $region8: #{tpu_custom_call.1} parent=1 // pred_region
      %s30 = ssub.s32 128, 128
      %31 = vsyncadd [#allocation9], %s30
      %s33 = sshll.u32 [#allocation8], 4
      %s34 = int_to_ptr.vmem [resolvable:$true] %s33
      %36 = dma.hbm_to_vmem [thread:$0]  %s1, 128, %s34, [#allocation9]
    $region9: #{tpu_custom_call.1} parent=1 // pred_fallthru
      _
    // Predicated region
    $region10: #{tpu_custom_call.1} parent=1 // pred_check
      _
    $region11: #{tpu_custom_call.1} parent=1 // pred_check_branch
      %38 = sbr.rel (0) target = $region13
    $region12: #{tpu_custom_call.1} parent=1 // pred_region
      %s40 = ssub.s32 16, 16
      %41 = vsyncadd [#allocation7], %s40
      %s43 = sshll.u32 %s2, 4
      %s44 = int_to_ptr.vmem [resolvable:$true] %s43
      %46 = dma.vmem_to_smem %s44, 16, [#allocation10], [#allocation7]
    $region13: #{tpu_custom_call.1} parent=1 // pred_fallthru
      _
    // Predicated region
    $region14: #{tpu_custom_call.1} parent=1 // pred_check
      _
    $region15: #{tpu_custom_call.1} parent=1 // pred_check_branch
      %48 = sbr.rel (0) target = $region17
    $region16: #{tpu_custom_call.1} parent=1 // pred_region
      %s50 = ssub.s32 16, 16
      %51 = vsyncadd [#allocation12], %s50
      %s53 = sshll.u32 %s3, 4
      %s54 = int_to_ptr.vmem [resolvable:$true] %s53
      %56 = dma.vmem_to_smem %s54, 16, [#allocation11], [#allocation12]
    $region17: #{tpu_custom_call.1} parent=1 // pred_fallthru
      _
    // Predicated region
    $region18: #{tpu_custom_call.1} parent=1 // pred_check
      _
    $region19: #{tpu_custom_call.1} parent=1 // pred_check_branch
      %58 = sbr.rel (0) target = $region21
    $region20: #{tpu_custom_call.1} parent=1 // pred_region
      %s60 = ssub.s32 16, 16
      %61 = vsyncadd [#allocation12], %s60
      %s63 = sshll.u32 %s4, 4
      %s64 = int_to_ptr.vmem [resolvable:$true] %s63
      %66 = dma.vmem_to_smem %s64, 16, [#allocation13], [#allocation12]
    $region21: #{tpu_custom_call.1} parent=1 // pred_fallthru
      _
    // Predicated region
    $region22: #{tpu_custom_call.1} parent=1 // pred_check
      _
    $region23: #{tpu_custom_call.1} parent=1 // pred_check_branch
      %68 = sbr.rel (0) target = $region25
    $region24: #{tpu_custom_call.1} parent=1 // pred_region
      %s70 = ssub.s32 16, 16
      %71 = vsyncadd [#allocation15], %s70
      %s73 = sshll.u32 %s5, 4
      %s74 = int_to_ptr.vmem [resolvable:$true] %s73
      %76 = dma.vmem_to_smem %s74, 16, [#allocation14], [#allocation15]
    $region25: #{tpu_custom_call.1} parent=1 // pred_fallthru
      _
    // Predicated region
    $region26: #{tpu_custom_call.1} parent=1 // pred_check
      _
    $region27: #{tpu_custom_call.1} parent=1 // pred_check_branch
      %78 = sbr.rel (0) target = $region29
    $region28: #{tpu_custom_call.1} parent=1 // pred_region
      %79 = dma.done [#allocation5], 256
    $region29: #{tpu_custom_call.1} parent=1 // pred_fallthru
      _
    // Predicated region
    $region30: #{tpu_custom_call.1} parent=1 // pred_check
      _
    $region31: #{tpu_custom_call.1} parent=1 // pred_check_branch
      %81 = sbr.rel (0) target = $region33
    $region32: #{tpu_custom_call.1} parent=1 // pred_region
      %82 = dma.done [#allocation9], 128
    $region33: #{tpu_custom_call.1} parent=1 // pred_fallthru
      _
    // Predicated region
    $region34: #{tpu_custom_call.1} parent=1 // pred_check
      _
    $region35: #{tpu_custom_call.1} parent=1 // pred_check_branch
      %84 = sbr.rel (0) target = $region37
    $region36: #{tpu_custom_call.1} parent=1 // pred_region
      %85 = dma.done [#allocation7], 16
    $region37: #{tpu_custom_call.1} parent=1 // pred_fallthru
      _
    // Predicated region
    $region38: #{tpu_custom_call.1} parent=1 // pred_check
      _
    $region39: #{tpu_custom_call.1} parent=1 // pred_check_branch
      %87 = sbr.rel (0) target = $region41
    $region40: #{tpu_custom_call.1} parent=1 // pred_region
      %88 = dma.done [#allocation12], 16
    $region41: #{tpu_custom_call.1} parent=1 // pred_fallthru
      _
    // Predicated region
    $region42: #{tpu_custom_call.1} parent=1 // pred_check
      _
    $region43: #{tpu_custom_call.1} parent=1 // pred_check_branch
      %90 = sbr.rel (0) target = $region45
    $region44: #{tpu_custom_call.1} parent=1 // pred_region
      %91 = dma.done [#allocation12], 16
    $region45: #{tpu_custom_call.1} parent=1 // pred_fallthru
      _
    // Predicated region
    $region46: #{tpu_custom_call.1} parent=1 // pred_check
      _
    $region47: #{tpu_custom_call.1} parent=1 // pred_check_branch
      %93 = sbr.rel (0) target = $region49
    $region48: #{tpu_custom_call.1} parent=1 // pred_region
      %94 = dma.done [#allocation15], 16
    $region49: #{tpu_custom_call.1} parent=1 // pred_fallthru
      _
    %95 = sfence
    %v96 = vld [vmem:[#allocation4] sm:$0xff]
    %v97 = vld [vmem:[#allocation4 + $0x8] sm:$0xff]
    %98 = vrot.lane.b32.xlu0 %v96, 127
    %v99 = vpop.permute.xlu0 %98
    %100 = vrot.lane.b32.xlu0 %v97, 127
    %v101 = vpop.permute.xlu0 %100
    %v102 = vlaneseq
    %v103 = vand.u32 %v102, 127
    %vm104 = vcmp.lt.s32.totalorder %v103, 127
    %v105 = vsel %vm104, %v99, %v101
    %v106 = vsel %vm104, %v101, %v99
    %107 = vrot.lane.b32.xlu0 %v96, 126
    %v108 = vpop.permute.xlu0 %107
    %109 = vrot.lane.b32.xlu0 %v97, 126
    %v110 = vpop.permute.xlu0 %109
    %vm111 = vcmp.lt.s32.totalorder %v103, 126
    %v112 = vsel %vm111, %v108, %v110
    %v113 = vsel %vm111, %v110, %v108
    %114 = vrot.lane.b32.xlu0 %v96, 125
    %v115 = vpop.permute.xlu0 %114
    %116 = vrot.lane.b32.xlu0 %v97, 125
    %v117 = vpop.permute.xlu0 %116
    %vm118 = vcmp.lt.s32.totalorder %v103, 125
    %v119 = vsel %vm118, %v115, %v117
    %v120 = vsel %vm118, %v117, %v115
    %121 = vrot.lane.b32.xlu0 %v96, 124
    %v122 = vpop.permute.xlu0 %121
    %123 = vrot.lane.b32.xlu0 %v97, 124
    %v124 = vpop.permute.xlu0 %123
    %vm125 = vcmp.lt.s32.totalorder %v103, 124
    %v126 = vsel %vm125, %v122, %v124
    %v127 = vsel %vm125, %v124, %v122
    %128 = vrot.lane.b32.xlu0 %v96, 123
    %v129 = vpop.permute.xlu0 %128
    %130 = vrot.lane.b32.xlu0 %v97, 123
    %v131 = vpop.permute.xlu0 %130
    %vm132 = vcmp.lt.s32.totalorder %v103, 123
    %v133 = vsel %vm132, %v129, %v131
    %v134 = vsel %vm132, %v131, %v129
    %135 = vrot.lane.b32.xlu0 %v96, 122
    %v136 = vpop.permute.xlu0 %135
    %137 = vrot.lane.b32.xlu0 %v97, 122
    %v138 = vpop.permute.xlu0 %137
    %vm139 = vcmp.lt.s32.totalorder %v103, 122
    %v140 = vsel %vm139, %v136, %v138
    %v141 = vsel %vm139, %v138, %v136
    %s142 = sld [smem:[#allocation10]]
    %v143 = vstv %s142
    %v144 = vmul.f32 %v96, %v143
    %v145 = vmul.f32 %v97, %v143
    %s146 = sld [smem:[#allocation10 + $0x4]]
    %v147 = vstv %s146
    %v148 = vmul.f32 %v96, %v147
    %v149 = vmul.f32 %v97, %v147
    %v152 = vrot.slane %v148, 2
    %v153 = vrot.slane %v149, 2
    %v156 = vadd.f32 %v144, %v152
    %v157 = vadd.f32 %v145, %v153
    %s158 = sld [smem:[#allocation10 + $0x8]]
    %v159 = vstv %s158
    %v160 = vmul.f32 %v96, %v159
    %v161 = vmul.f32 %v97, %v159
    %v164 = vrot.slane %v160, 4
    %v165 = vrot.slane %v161, 4
    %v168 = vadd.f32 %v156, %v164
    %v169 = vadd.f32 %v157, %v165
    %s170 = sld [smem:[#allocation10 + $0xc]]
    %v171 = vstv %s170
    %v172 = vmul.f32 %v96, %v171
    %v173 = vmul.f32 %v97, %v171
    %v176 = vrot.slane %v172, 6
    %v177 = vrot.slane %v173, 6
    %v180 = vadd.f32 %v168, %v176
    %v181 = vadd.f32 %v169, %v177
    %s182 = sld [smem:[#allocation10 + $0x10]]
    %v183 = vstv %s182
    %v184 = vmul.f32 %v105, %v183
    %v185 = vmul.f32 %v106, %v183
    %v186 = vadd.f32 %v180, %v184
    %v187 = vadd.f32 %v181, %v185
    %s188 = sld [smem:[#allocation10 + $0x14]]
    %v189 = vstv %s188
    %v190 = vmul.f32 %v105, %v189
    %v191 = vmul.f32 %v106, %v189
    %v194 = vrot.slane %v190, 2
    %v195 = vrot.slane %v191, 2
    %v198 = vadd.f32 %v186, %v194
    %v199 = vadd.f32 %v187, %v195
    %s200 = sld [smem:[#allocation10 + $0x18]]
    %v201 = vstv %s200
    %v202 = vmul.f32 %v105, %v201
    %v203 = vmul.f32 %v106, %v201
    %v206 = vrot.slane %v202, 4
    %v207 = vrot.slane %v203, 4
    %v210 = vadd.f32 %v198, %v206
    %v211 = vadd.f32 %v199, %v207
    %s212 = sld [smem:[#allocation10 + $0x1c]]
    %v213 = vstv %s212
    %v214 = vmul.f32 %v105, %v213
    %v215 = vmul.f32 %v106, %v213
    %v218 = vrot.slane %v214, 6
    %v219 = vrot.slane %v215, 6
    %v222 = vadd.f32 %v210, %v218
    %v223 = vadd.f32 %v211, %v219
    %s224 = sld [smem:[#allocation10 + $0x20]]
    %v225 = vstv %s224
    %v226 = vmul.f32 %v112, %v225
    %v227 = vmul.f32 %v113, %v225
    %v228 = vadd.f32 %v222, %v226
    %v229 = vadd.f32 %v223, %v227
    %s230 = sld [smem:[#allocation10 + $0x24]]
    %v231 = vstv %s230
    %v232 = vmul.f32 %v112, %v231
    %v233 = vmul.f32 %v113, %v231
    %v236 = vrot.slane %v232, 2
    %v237 = vrot.slane %v233, 2
    %v240 = vadd.f32 %v228, %v236
    %v241 = vadd.f32 %v229, %v237
    %s242 = sld [smem:[#allocation10 + $0x28]]
    %v243 = vstv %s242
    %v244 = vmul.f32 %v112, %v243
    %v245 = vmul.f32 %v113, %v243
    %v248 = vrot.slane %v244, 4
    %v249 = vrot.slane %v245, 4
    %v252 = vadd.f32 %v240, %v248
    %v253 = vadd.f32 %v241, %v249
    %s254 = sld [smem:[#allocation10 + $0x2c]]
    %v255 = vstv %s254
    %v256 = vmul.f32 %v112, %v255
    %v257 = vmul.f32 %v113, %v255
    %v260 = vrot.slane %v256, 6
    %v261 = vrot.slane %v257, 6
    %v264 = vadd.f32 %v252, %v260
    %v265 = vadd.f32 %v253, %v261
    %s266 = sld [smem:[#allocation10 + $0x30]]
    %v267 = vstv %s266
    %v268 = vmul.f32 %v119, %v267
    %v269 = vmul.f32 %v120, %v267
    %v270 = vadd.f32 %v264, %v268
    %v271 = vadd.f32 %v265, %v269
    %s272 = sld [smem:[#allocation10 + $0x34]]
    %v273 = vstv %s272
    %v274 = vmul.f32 %v119, %v273
    %v275 = vmul.f32 %v120, %v273
    %v278 = vrot.slane %v274, 2
    %v279 = vrot.slane %v275, 2
    %v282 = vadd.f32 %v270, %v278
    %v283 = vadd.f32 %v271, %v279
    %s284 = sld [smem:[#allocation10 + $0x38]]
    %v285 = vstv %s284
    %v286 = vmul.f32 %v119, %v285
    %v287 = vmul.f32 %v120, %v285
    %v290 = vrot.slane %v286, 4
    %v291 = vrot.slane %v287, 4
    %v294 = vadd.f32 %v282, %v290
    %v295 = vadd.f32 %v283, %v291
    %s296 = sld [smem:[#allocation10 + $0x3c]]
    %v297 = vstv %s296
    %v298 = vmul.f32 %v119, %v297
    %v299 = vmul.f32 %v120, %v297
    %v302 = vrot.slane %v298, 6
    %v303 = vrot.slane %v299, 6
    %v306 = vadd.f32 %v294, %v302
    %v307 = vadd.f32 %v295, %v303
    %s308 = sld [smem:[#allocation10 + $0x40]]
    %v309 = vstv %s308
    %v310 = vmul.f32 %v126, %v309
    %v311 = vmul.f32 %v127, %v309
    %v312 = vadd.f32 %v306, %v310
    %v313 = vadd.f32 %v307, %v311
    %s314 = sld [smem:[#allocation10 + $0x44]]
    %v315 = vstv %s314
    %v316 = vmul.f32 %v126, %v315
    %v317 = vmul.f32 %v127, %v315
    %v320 = vrot.slane %v316, 2
    %v321 = vrot.slane %v317, 2
    %v324 = vadd.f32 %v312, %v320
    %v325 = vadd.f32 %v313, %v321
    %s326 = sld [smem:[#allocation10 + $0x48]]
    %v327 = vstv %s326
    %v328 = vmul.f32 %v126, %v327
    %v329 = vmul.f32 %v127, %v327
    %v332 = vrot.slane %v328, 4
    %v333 = vrot.slane %v329, 4
    %v336 = vadd.f32 %v324, %v332
    %v337 = vadd.f32 %v325, %v333
    %s338 = sld [smem:[#allocation10 + $0x4c]]
    %v339 = vstv %s338
    %v340 = vmul.f32 %v126, %v339
    %v341 = vmul.f32 %v127, %v339
    %v344 = vrot.slane %v340, 6
    %v345 = vrot.slane %v341, 6
    %v348 = vadd.f32 %v336, %v344
    %v349 = vadd.f32 %v337, %v345
    %s350 = sld [smem:[#allocation10 + $0x50]]
    %v351 = vstv %s350
    %v352 = vmul.f32 %v133, %v351
    %v353 = vmul.f32 %v134, %v351
    %v354 = vadd.f32 %v348, %v352
    %v355 = vadd.f32 %v349, %v353
    %s356 = sld [smem:[#allocation10 + $0x54]]
    %v357 = vstv %s356
    %v358 = vmul.f32 %v133, %v357
    %v359 = vmul.f32 %v134, %v357
    %v362 = vrot.slane %v358, 2
    %v363 = vrot.slane %v359, 2
    %v366 = vadd.f32 %v354, %v362
    %v367 = vadd.f32 %v355, %v363
    %s368 = sld [smem:[#allocation10 + $0x58]]
    %v369 = vstv %s368
    %v370 = vmul.f32 %v133, %v369
    %v371 = vmul.f32 %v134, %v369
    %v374 = vrot.slane %v370, 4
    %v375 = vrot.slane %v371, 4
    %v378 = vadd.f32 %v366, %v374
    %v379 = vadd.f32 %v367, %v375
    %s380 = sld [smem:[#allocation10 + $0x5c]]
    %v381 = vstv %s380
    %v382 = vmul.f32 %v133, %v381
    %v383 = vmul.f32 %v134, %v381
    %v386 = vrot.slane %v382, 6
    %v387 = vrot.slane %v383, 6
    %v390 = vadd.f32 %v378, %v386
    %v391 = vadd.f32 %v379, %v387
    %s392 = sld [smem:[#allocation10 + $0x60]]
    %v393 = vstv %s392
    %v394 = vmul.f32 %v140, %v393
    %v395 = vmul.f32 %v141, %v393
    %v396 = vadd.f32 %v390, %v394
    %v397 = vadd.f32 %v391, %v395
    %s398 = sld [smem:[#allocation10 + $0x64]]
    %v399 = vstv %s398
    %v400 = vmul.f32 %v140, %v399
    %v401 = vmul.f32 %v141, %v399
    %v404 = vrot.slane %v400, 2
    %v405 = vrot.slane %v401, 2
    %v408 = vadd.f32 %v396, %v404
    %v409 = vadd.f32 %v397, %v405
    %s410 = sld [smem:[#allocation10 + $0x68]]
    %v411 = vstv %s410
    %v412 = vmul.f32 %v140, %v411
    %v413 = vmul.f32 %v141, %v411
    %v416 = vrot.slane %v412, 4
    %v417 = vrot.slane %v413, 4
    %v420 = vadd.f32 %v408, %v416
    %v421 = vadd.f32 %v409, %v417
    %s422 = sld [smem:[#allocation10 + $0x6c]]
    %v423 = vstv %s422
    %v424 = vmul.f32 %v140, %v423
    %v425 = vmul.f32 %v141, %v423
    %v428 = vrot.slane %v424, 6
    %v429 = vrot.slane %v425, 6
    %v432 = vadd.f32 %v420, %v428
    %v433 = vadd.f32 %v421, %v429
    %s434 = sld [smem:[#allocation11]]
    %v435 = vstv %s434
    %v436 = vadd.f32 %v432, %v435
    %v437 = vadd.f32 %v433, %v435
    %vm438 = vcmp.ge.f32.partialorder %v436, 0.0
    %vm439 = vcmp.ge.f32.partialorder %v437, 0.0
    %v440 = vmul.f32 %v436, 0.02
    %v441 = vmul.f32 %v437, 0.02
    %v442 = vsel %vm438, %v436, %v440
    %v443 = vsel %vm439, %v437, %v441
    %444 = vst [vmem:[#allocation2] sm:$0x3] %v442
    %445 = vst [vmem:[#allocation2 + $0x8] sm:$0x3] %v443
    %s446 = sld [smem:[#allocation10 + $0x1]]
    %v447 = vstv %s446
    %v448 = vmul.f32 %v96, %v447
    %v449 = vmul.f32 %v97, %v447
    %s450 = sld [smem:[#allocation10 + $0x5]]
    %v451 = vstv %s450
    %v452 = vmul.f32 %v96, %v451
    %v453 = vmul.f32 %v97, %v451
    %v456 = vrot.slane %v452, 2
    %v457 = vrot.slane %v453, 2
    %v460 = vadd.f32 %v448, %v456
    %v461 = vadd.f32 %v449, %v457
    %s462 = sld [smem:[#allocation10 + $0x9]]
    %v463 = vstv %s462
    %v464 = vmul.f32 %v96, %v463
    %v465 = vmul.f32 %v97, %v463
    %v468 = vrot.slane %v464, 4
    %v469 = vrot.slane %v465, 4
    %v472 = vadd.f32 %v460, %v468
    %v473 = vadd.f32 %v461, %v469
    %s474 = sld [smem:[#allocation10 + $0xd]]
    %v475 = vstv %s474
    %v476 = vmul.f32 %v96, %v475
    %v477 = vmul.f32 %v97, %v475
    %v480 = vrot.slane %v476, 6
    %v481 = vrot.slane %v477, 6
    %v484 = vadd.f32 %v472, %v480
    %v485 = vadd.f32 %v473, %v481
    %s486 = sld [smem:[#allocation10 + $0x11]]
    %v487 = vstv %s486
    %v488 = vmul.f32 %v105, %v487
    %v489 = vmul.f32 %v106, %v487
    %v490 = vadd.f32 %v484, %v488
    %v491 = vadd.f32 %v485, %v489
    %s492 = sld [smem:[#allocation10 + $0x15]]
    %v493 = vstv %s492
    %v494 = vmul.f32 %v105, %v493
    %v495 = vmul.f32 %v106, %v493
    %v498 = vrot.slane %v494, 2
    %v499 = vrot.slane %v495, 2
    %v502 = vadd.f32 %v490, %v498
    %v503 = vadd.f32 %v491, %v499
    %s504 = sld [smem:[#allocation10 + $0x19]]
    %v505 = vstv %s504
    %v506 = vmul.f32 %v105, %v505
    %v507 = vmul.f32 %v106, %v505
    %v510 = vrot.slane %v506, 4
    %v511 = vrot.slane %v507, 4
    %v514 = vadd.f32 %v502, %v510
    %v515 = vadd.f32 %v503, %v511
    %s516 = sld [smem:[#allocation10 + $0x1d]]
    %v517 = vstv %s516
    %v518 = vmul.f32 %v105, %v517
    %v519 = vmul.f32 %v106, %v517
    %v522 = vrot.slane %v518, 6
    %v523 = vrot.slane %v519, 6
    %v526 = vadd.f32 %v514, %v522
    %v527 = vadd.f32 %v515, %v523
    %s528 = sld [smem:[#allocation10 + $0x21]]
    %v529 = vstv %s528
    %v530 = vmul.f32 %v112, %v529
    %v531 = vmul.f32 %v113, %v529
    %v532 = vadd.f32 %v526, %v530
    %v533 = vadd.f32 %v527, %v531
    %s534 = sld [smem:[#allocation10 + $0x25]]
    %v535 = vstv %s534
    %v536 = vmul.f32 %v112, %v535
    %v537 = vmul.f32 %v113, %v535
    %v540 = vrot.slane %v536, 2
    %v541 = vrot.slane %v537, 2
    %v544 = vadd.f32 %v532, %v540
    %v545 = vadd.f32 %v533, %v541
    %s546 = sld [smem:[#allocation10 + $0x29]]
    %v547 = vstv %s546
    %v548 = vmul.f32 %v112, %v547
    %v549 = vmul.f32 %v113, %v547
    %v552 = vrot.slane %v548, 4
    %v553 = vrot.slane %v549, 4
    %v556 = vadd.f32 %v544, %v552
    %v557 = vadd.f32 %v545, %v553
    %s558 = sld [smem:[#allocation10 + $0x2d]]
    %v559 = vstv %s558
    %v560 = vmul.f32 %v112, %v559
    %v561 = vmul.f32 %v113, %v559
    %v564 = vrot.slane %v560, 6
    %v565 = vrot.slane %v561, 6
    %v568 = vadd.f32 %v556, %v564
    %v569 = vadd.f32 %v557, %v565
    %s570 = sld [smem:[#allocation10 + $0x31]]
    %v571 = vstv %s570
    %v572 = vmul.f32 %v119, %v571
    %v573 = vmul.f32 %v120, %v571
    %v574 = vadd.f32 %v568, %v572
    %v575 = vadd.f32 %v569, %v573
    %s576 = sld [smem:[#allocation10 + $0x35]]
    %v577 = vstv %s576
    %v578 = vmul.f32 %v119, %v577
    %v579 = vmul.f32 %v120, %v577
    %v582 = vrot.slane %v578, 2
    %v583 = vrot.slane %v579, 2
    %v586 = vadd.f32 %v574, %v582
    %v587 = vadd.f32 %v575, %v583
    %s588 = sld [smem:[#allocation10 + $0x39]]
    %v589 = vstv %s588
    %v590 = vmul.f32 %v119, %v589
    %v591 = vmul.f32 %v120, %v589
    %v594 = vrot.slane %v590, 4
    %v595 = vrot.slane %v591, 4
    %v598 = vadd.f32 %v586, %v594
    %v599 = vadd.f32 %v587, %v595
    %s600 = sld [smem:[#allocation10 + $0x3d]]
    %v601 = vstv %s600
    %v602 = vmul.f32 %v119, %v601
    %v603 = vmul.f32 %v120, %v601
    %v606 = vrot.slane %v602, 6
    %v607 = vrot.slane %v603, 6
    %v610 = vadd.f32 %v598, %v606
    %v611 = vadd.f32 %v599, %v607
    %s612 = sld [smem:[#allocation10 + $0x41]]
    %v613 = vstv %s612
    %v614 = vmul.f32 %v126, %v613
    %v615 = vmul.f32 %v127, %v613
    %v616 = vadd.f32 %v610, %v614
    %v617 = vadd.f32 %v611, %v615
    %s618 = sld [smem:[#allocation10 + $0x45]]
    %v619 = vstv %s618
    %v620 = vmul.f32 %v126, %v619
    %v621 = vmul.f32 %v127, %v619
    %v624 = vrot.slane %v620, 2
    %v625 = vrot.slane %v621, 2
    %v628 = vadd.f32 %v616, %v624
    %v629 = vadd.f32 %v617, %v625
    %s630 = sld [smem:[#allocation10 + $0x49]]
    %v631 = vstv %s630
    %v632 = vmul.f32 %v126, %v631
    %v633 = vmul.f32 %v127, %v631
    %v636 = vrot.slane %v632, 4
    %v637 = vrot.slane %v633, 4
    %v640 = vadd.f32 %v628, %v636
    %v641 = vadd.f32 %v629, %v637
    %s642 = sld [smem:[#allocation10 + $0x4d]]
    %v643 = vstv %s642
    %v644 = vmul.f32 %v126, %v643
    %v645 = vmul.f32 %v127, %v643
    %v648 = vrot.slane %v644, 6
    %v649 = vrot.slane %v645, 6
    %v652 = vadd.f32 %v640, %v648
    %v653 = vadd.f32 %v641, %v649
    %s654 = sld [smem:[#allocation10 + $0x51]]
    %v655 = vstv %s654
    %v656 = vmul.f32 %v133, %v655
    %v657 = vmul.f32 %v134, %v655
    %v658 = vadd.f32 %v652, %v656
    %v659 = vadd.f32 %v653, %v657
    %s660 = sld [smem:[#allocation10 + $0x55]]
    %v661 = vstv %s660
    %v662 = vmul.f32 %v133, %v661
    %v663 = vmul.f32 %v134, %v661
    %v666 = vrot.slane %v662, 2
    %v667 = vrot.slane %v663, 2
    %v670 = vadd.f32 %v658, %v666
    %v671 = vadd.f32 %v659, %v667
    %s672 = sld [smem:[#allocation10 + $0x59]]
    %v673 = vstv %s672
    %v674 = vmul.f32 %v133, %v673
    %v675 = vmul.f32 %v134, %v673
    %v678 = vrot.slane %v674, 4
    %v679 = vrot.slane %v675, 4
    %v682 = vadd.f32 %v670, %v678
    %v683 = vadd.f32 %v671, %v679
    %s684 = sld [smem:[#allocation10 + $0x5d]]
    %v685 = vstv %s684
    %v686 = vmul.f32 %v133, %v685
    %v687 = vmul.f32 %v134, %v685
    %v690 = vrot.slane %v686, 6
    %v691 = vrot.slane %v687, 6
    %v694 = vadd.f32 %v682, %v690
    %v695 = vadd.f32 %v683, %v691
    %s696 = sld [smem:[#allocation10 + $0x61]]
    %v697 = vstv %s696
    %v698 = vmul.f32 %v140, %v697
    %v699 = vmul.f32 %v141, %v697
    %v700 = vadd.f32 %v694, %v698
    %v701 = vadd.f32 %v695, %v699
    %s702 = sld [smem:[#allocation10 + $0x65]]
    %v703 = vstv %s702
    %v704 = vmul.f32 %v140, %v703
    %v705 = vmul.f32 %v141, %v703
    %v708 = vrot.slane %v704, 2
    %v709 = vrot.slane %v705, 2
    %v712 = vadd.f32 %v700, %v708
    %v713 = vadd.f32 %v701, %v709
    %s714 = sld [smem:[#allocation10 + $0x69]]
    %v715 = vstv %s714
    %v716 = vmul.f32 %v140, %v715
    %v717 = vmul.f32 %v141, %v715
    %v720 = vrot.slane %v716, 4
    %v721 = vrot.slane %v717, 4
    %v724 = vadd.f32 %v712, %v720
    %v725 = vadd.f32 %v713, %v721
    %s726 = sld [smem:[#allocation10 + $0x6d]]
    %v727 = vstv %s726
    %v728 = vmul.f32 %v140, %v727
    %v729 = vmul.f32 %v141, %v727
    %v732 = vrot.slane %v728, 6
    %v733 = vrot.slane %v729, 6
    %v736 = vadd.f32 %v724, %v732
    %v737 = vadd.f32 %v725, %v733
    %s738 = sld [smem:[#allocation11 + $0x1]]
    %v739 = vstv %s738
    %v740 = vadd.f32 %v736, %v739
    %v741 = vadd.f32 %v737, %v739
    %vm742 = vcmp.ge.f32.partialorder %v740, 0.0
    %vm743 = vcmp.ge.f32.partialorder %v741, 0.0
    %v744 = vmul.f32 %v740, 0.02
    %v745 = vmul.f32 %v741, 0.02
    %v746 = vsel %vm742, %v740, %v744
    %v747 = vsel %vm743, %v741, %v745
    %v750 = vrot.slane %v746, 6
    %v751 = vrot.slane %v747, 6
    %754 = vst [vmem:[#allocation2] sm:$0xc] %v750
    %755 = vst [vmem:[#allocation2 + $0x8] sm:$0xc] %v751
    %s756 = sld [smem:[#allocation10 + $0x2]]
    %v757 = vstv %s756
    %v758 = vmul.f32 %v96, %v757
    %v759 = vmul.f32 %v97, %v757
    %s760 = sld [smem:[#allocation10 + $0x6]]
    %v761 = vstv %s760
    %v762 = vmul.f32 %v96, %v761
    %v763 = vmul.f32 %v97, %v761
    %v766 = vrot.slane %v762, 2
    %v767 = vrot.slane %v763, 2
    %v770 = vadd.f32 %v758, %v766
    %v771 = vadd.f32 %v759, %v767
    %s772 = sld [smem:[#allocation10 + $0xa]]
    %v773 = vstv %s772
    %v774 = vmul.f32 %v96, %v773
    %v775 = vmul.f32 %v97, %v773
    %v778 = vrot.slane %v774, 4
    %v779 = vrot.slane %v775, 4
    %v782 = vadd.f32 %v770, %v778
    %v783 = vadd.f32 %v771, %v779
    %s784 = sld [smem:[#allocation10 + $0xe]]
    %v785 = vstv %s784
    %v786 = vmul.f32 %v96, %v785
    %v787 = vmul.f32 %v97, %v785
    %v790 = vrot.slane %v786, 6
    %v791 = vrot.slane %v787, 6
    %v794 = vadd.f32 %v782, %v790
    %v795 = vadd.f32 %v783, %v791
    %s796 = sld [smem:[#allocation10 + $0x12]]
    %v797 = vstv %s796
    %v798 = vmul.f32 %v105, %v797
    %v799 = vmul.f32 %v106, %v797
    %v800 = vadd.f32 %v794, %v798
    %v801 = vadd.f32 %v795, %v799
    %s802 = sld [smem:[#allocation10 + $0x16]]
    %v803 = vstv %s802
    %v804 = vmul.f32 %v105, %v803
    %v805 = vmul.f32 %v106, %v803
    %v808 = vrot.slane %v804, 2
    %v809 = vrot.slane %v805, 2
    %v812 = vadd.f32 %v800, %v808
    %v813 = vadd.f32 %v801, %v809
    %s814 = sld [smem:[#allocation10 + $0x1a]]
    %v815 = vstv %s814
    %v816 = vmul.f32 %v105, %v815
    %v817 = vmul.f32 %v106, %v815
    %v820 = vrot.slane %v816, 4
    %v821 = vrot.slane %v817, 4
    %v824 = vadd.f32 %v812, %v820
    %v825 = vadd.f32 %v813, %v821
    %s826 = sld [smem:[#allocation10 + $0x1e]]
    %v827 = vstv %s826
    %v828 = vmul.f32 %v105, %v827
    %v829 = vmul.f32 %v106, %v827
    %v832 = vrot.slane %v828, 6
    %v833 = vrot.slane %v829, 6
    %v836 = vadd.f32 %v824, %v832
    %v837 = vadd.f32 %v825, %v833
    %s838 = sld [smem:[#allocation10 + $0x22]]
    %v839 = vstv %s838
    %v840 = vmul.f32 %v112, %v839
    %v841 = vmul.f32 %v113, %v839
    %v842 = vadd.f32 %v836, %v840
    %v843 = vadd.f32 %v837, %v841
    %s844 = sld [smem:[#allocation10 + $0x26]]
    %v845 = vstv %s844
    %v846 = vmul.f32 %v112, %v845
    %v847 = vmul.f32 %v113, %v845
    %v850 = vrot.slane %v846, 2
    %v851 = vrot.slane %v847, 2
    %v854 = vadd.f32 %v842, %v850
    %v855 = vadd.f32 %v843, %v851
    %s856 = sld [smem:[#allocation10 + $0x2a]]
    %v857 = vstv %s856
    %v858 = vmul.f32 %v112, %v857
    %v859 = vmul.f32 %v113, %v857
    %v862 = vrot.slane %v858, 4
    %v863 = vrot.slane %v859, 4
    %v866 = vadd.f32 %v854, %v862
    %v867 = vadd.f32 %v855, %v863
    %s868 = sld [smem:[#allocation10 + $0x2e]]
    %v869 = vstv %s868
    %v870 = vmul.f32 %v112, %v869
    %v871 = vmul.f32 %v113, %v869
    %v874 = vrot.slane %v870, 6
    %v875 = vrot.slane %v871, 6
    %v878 = vadd.f32 %v866, %v874
    %v879 = vadd.f32 %v867, %v875
    %s880 = sld [smem:[#allocation10 + $0x32]]
    %v881 = vstv %s880
    %v882 = vmul.f32 %v119, %v881
    %v883 = vmul.f32 %v120, %v881
    %v884 = vadd.f32 %v878, %v882
    %v885 = vadd.f32 %v879, %v883
    %s886 = sld [smem:[#allocation10 + $0x36]]
    %v887 = vstv %s886
    %v888 = vmul.f32 %v119, %v887
    %v889 = vmul.f32 %v120, %v887
    %v892 = vrot.slane %v888, 2
    %v893 = vrot.slane %v889, 2
    %v896 = vadd.f32 %v884, %v892
    %v897 = vadd.f32 %v885, %v893
    %s898 = sld [smem:[#allocation10 + $0x3a]]
    %v899 = vstv %s898
    %v900 = vmul.f32 %v119, %v899
    %v901 = vmul.f32 %v120, %v899
    %v904 = vrot.slane %v900, 4
    %v905 = vrot.slane %v901, 4
    %v908 = vadd.f32 %v896, %v904
    %v909 = vadd.f32 %v897, %v905
    %s910 = sld [smem:[#allocation10 + $0x3e]]
    %v911 = vstv %s910
    %v912 = vmul.f32 %v119, %v911
    %v913 = vmul.f32 %v120, %v911
    %v916 = vrot.slane %v912, 6
    %v917 = vrot.slane %v913, 6
    %v920 = vadd.f32 %v908, %v916
    %v921 = vadd.f32 %v909, %v917
    %s922 = sld [smem:[#allocation10 + $0x42]]
    %v923 = vstv %s922
    %v924 = vmul.f32 %v126, %v923
    %v925 = vmul.f32 %v127, %v923
    %v926 = vadd.f32 %v920, %v924
    %v927 = vadd.f32 %v921, %v925
    %s928 = sld [smem:[#allocation10 + $0x46]]
    %v929 = vstv %s928
    %v930 = vmul.f32 %v126, %v929
    %v931 = vmul.f32 %v127, %v929
    %v934 = vrot.slane %v930, 2
    %v935 = vrot.slane %v931, 2
    %v938 = vadd.f32 %v926, %v934
    %v939 = vadd.f32 %v927, %v935
    %s940 = sld [smem:[#allocation10 + $0x4a]]
    %v941 = vstv %s940
    %v942 = vmul.f32 %v126, %v941
    %v943 = vmul.f32 %v127, %v941
    %v946 = vrot.slane %v942, 4
    %v947 = vrot.slane %v943, 4
    %v950 = vadd.f32 %v938, %v946
    %v951 = vadd.f32 %v939, %v947
    %s952 = sld [smem:[#allocation10 + $0x4e]]
    %v953 = vstv %s952
    %v954 = vmul.f32 %v126, %v953
    %v955 = vmul.f32 %v127, %v953
    %v958 = vrot.slane %v954, 6
    %v959 = vrot.slane %v955, 6
    %v962 = vadd.f32 %v950, %v958
    %v963 = vadd.f32 %v951, %v959
    %s964 = sld [smem:[#allocation10 + $0x52]]
    %v965 = vstv %s964
    %v966 = vmul.f32 %v133, %v965
    %v967 = vmul.f32 %v134, %v965
    %v968 = vadd.f32 %v962, %v966
    %v969 = vadd.f32 %v963, %v967
    %s970 = sld [smem:[#allocation10 + $0x56]]
    %v971 = vstv %s970
    %v972 = vmul.f32 %v133, %v971
    %v973 = vmul.f32 %v134, %v971
    %v976 = vrot.slane %v972, 2
    %v977 = vrot.slane %v973, 2
    %v980 = vadd.f32 %v968, %v976
    %v981 = vadd.f32 %v969, %v977
    %s982 = sld [smem:[#allocation10 + $0x5a]]
    %v983 = vstv %s982
    %v984 = vmul.f32 %v133, %v983
    %v985 = vmul.f32 %v134, %v983
    %v988 = vrot.slane %v984, 4
    %v989 = vrot.slane %v985, 4
    %v992 = vadd.f32 %v980, %v988
    %v993 = vadd.f32 %v981, %v989
    %s994 = sld [smem:[#allocation10 + $0x5e]]
    %v995 = vstv %s994
    %v996 = vmul.f32 %v133, %v995
    %v997 = vmul.f32 %v134, %v995
    %v1000 = vrot.slane %v996, 6
    %v1001 = vrot.slane %v997, 6
    %v1004 = vadd.f32 %v992, %v1000
    %v1005 = vadd.f32 %v993, %v1001
    %s1006 = sld [smem:[#allocation10 + $0x62]]
    %v1007 = vstv %s1006
    %v1008 = vmul.f32 %v140, %v1007
    %v1009 = vmul.f32 %v141, %v1007
    %v1010 = vadd.f32 %v1004, %v1008
    %v1011 = vadd.f32 %v1005, %v1009
    %s1012 = sld [smem:[#allocation10 + $0x66]]
    %v1013 = vstv %s1012
    %v1014 = vmul.f32 %v140, %v1013
    %v1015 = vmul.f32 %v141, %v1013
    %v1018 = vrot.slane %v1014, 2
    %v1019 = vrot.slane %v1015, 2
    %v1022 = vadd.f32 %v1010, %v1018
    %v1023 = vadd.f32 %v1011, %v1019
    %s1024 = sld [smem:[#allocation10 + $0x6a]]
    %v1025 = vstv %s1024
    %v1026 = vmul.f32 %v140, %v1025
    %v1027 = vmul.f32 %v141, %v1025
    %v1030 = vrot.slane %v1026, 4
    %v1031 = vrot.slane %v1027, 4
    %v1034 = vadd.f32 %v1022, %v1030
    %v1035 = vadd.f32 %v1023, %v1031
    %s1036 = sld [smem:[#allocation10 + $0x6e]]
    %v1037 = vstv %s1036
    %v1038 = vmul.f32 %v140, %v1037
    %v1039 = vmul.f32 %v141, %v1037
    %v1042 = vrot.slane %v1038, 6
    %v1043 = vrot.slane %v1039, 6
    %v1046 = vadd.f32 %v1034, %v1042
    %v1047 = vadd.f32 %v1035, %v1043
    %s1048 = sld [smem:[#allocation11 + $0x2]]
    %v1049 = vstv %s1048
    %v1050 = vadd.f32 %v1046, %v1049
    %v1051 = vadd.f32 %v1047, %v1049
    %vm1052 = vcmp.ge.f32.partialorder %v1050, 0.0
    %vm1053 = vcmp.ge.f32.partialorder %v1051, 0.0
    %v1054 = vmul.f32 %v1050, 0.02
    %v1055 = vmul.f32 %v1051, 0.02
    %v1056 = vsel %vm1052, %v1050, %v1054
    %v1057 = vsel %vm1053, %v1051, %v1055
    %v1060 = vrot.slane %v1056, 4
    %v1061 = vrot.slane %v1057, 4
    %1064 = vst [vmem:[#allocation2] sm:$0x30] %v1060
    %1065 = vst [vmem:[#allocation2 + $0x8] sm:$0x30] %v1061
    %s1066 = sld [smem:[#allocation10 + $0x3]]
    %v1067 = vstv %s1066
    %v1068 = vmul.f32 %v96, %v1067
    %v1069 = vmul.f32 %v97, %v1067
    %s1070 = sld [smem:[#allocation10 + $0x7]]
    %v1071 = vstv %s1070
    %v1072 = vmul.f32 %v96, %v1071
    %v1073 = vmul.f32 %v97, %v1071
    %v1076 = vrot.slane %v1072, 2
    %v1077 = vrot.slane %v1073, 2
    %v1080 = vadd.f32 %v1068, %v1076
    %v1081 = vadd.f32 %v1069, %v1077
    %s1082 = sld [smem:[#allocation10 + $0xb]]
    %v1083 = vstv %s1082
    %v1084 = vmul.f32 %v96, %v1083
    %v1085 = vmul.f32 %v97, %v1083
    %v1088 = vrot.slane %v1084, 4
    %v1089 = vrot.slane %v1085, 4
    %v1092 = vadd.f32 %v1080, %v1088
    %v1093 = vadd.f32 %v1081, %v1089
    %s1094 = sld [smem:[#allocation10 + $0xf]]
    %v1095 = vstv %s1094
    %v1096 = vmul.f32 %v96, %v1095
    %v1097 = vmul.f32 %v97, %v1095
    %v1100 = vrot.slane %v1096, 6
    %v1101 = vrot.slane %v1097, 6
    %v1104 = vadd.f32 %v1092, %v1100
    %v1105 = vadd.f32 %v1093, %v1101
    %s1106 = sld [smem:[#allocation10 + $0x13]]
    %v1107 = vstv %s1106
    %v1108 = vmul.f32 %v105, %v1107
    %v1109 = vmul.f32 %v106, %v1107
    %v1110 = vadd.f32 %v1104, %v1108
    %v1111 = vadd.f32 %v1105, %v1109
    %s1112 = sld [smem:[#allocation10 + $0x17]]
    %v1113 = vstv %s1112
    %v1114 = vmul.f32 %v105, %v1113
    %v1115 = vmul.f32 %v106, %v1113
    %v1118 = vrot.slane %v1114, 2
    %v1119 = vrot.slane %v1115, 2
    %v1122 = vadd.f32 %v1110, %v1118
    %v1123 = vadd.f32 %v1111, %v1119
    %s1124 = sld [smem:[#allocation10 + $0x1b]]
    %v1125 = vstv %s1124
    %v1126 = vmul.f32 %v105, %v1125
    %v1127 = vmul.f32 %v106, %v1125
    %v1130 = vrot.slane %v1126, 4
    %v1131 = vrot.slane %v1127, 4
    %v1134 = vadd.f32 %v1122, %v1130
    %v1135 = vadd.f32 %v1123, %v1131
    %s1136 = sld [smem:[#allocation10 + $0x1f]]
    %v1137 = vstv %s1136
    %v1138 = vmul.f32 %v105, %v1137
    %v1139 = vmul.f32 %v106, %v1137
    %v1142 = vrot.slane %v1138, 6
    %v1143 = vrot.slane %v1139, 6
    %v1146 = vadd.f32 %v1134, %v1142
    %v1147 = vadd.f32 %v1135, %v1143
    %s1148 = sld [smem:[#allocation10 + $0x23]]
    %v1149 = vstv %s1148
    %v1150 = vmul.f32 %v112, %v1149
    %v1151 = vmul.f32 %v113, %v1149
    %v1152 = vadd.f32 %v1146, %v1150
    %v1153 = vadd.f32 %v1147, %v1151
    %s1154 = sld [smem:[#allocation10 + $0x27]]
    %v1155 = vstv %s1154
    %v1156 = vmul.f32 %v112, %v1155
    %v1157 = vmul.f32 %v113, %v1155
    %v1160 = vrot.slane %v1156, 2
    %v1161 = vrot.slane %v1157, 2
    %v1164 = vadd.f32 %v1152, %v1160
    %v1165 = vadd.f32 %v1153, %v1161
    %s1166 = sld [smem:[#allocation10 + $0x2b]]
    %v1167 = vstv %s1166
    %v1168 = vmul.f32 %v112, %v1167
    %v1169 = vmul.f32 %v113, %v1167
    %v1172 = vrot.slane %v1168, 4
    %v1173 = vrot.slane %v1169, 4
    %v1176 = vadd.f32 %v1164, %v1172
    %v1177 = vadd.f32 %v1165, %v1173
    %s1178 = sld [smem:[#allocation10 + $0x2f]]
    %v1179 = vstv %s1178
    %v1180 = vmul.f32 %v112, %v1179
    %v1181 = vmul.f32 %v113, %v1179
    %v1184 = vrot.slane %v1180, 6
    %v1185 = vrot.slane %v1181, 6
    %v1188 = vadd.f32 %v1176, %v1184
    %v1189 = vadd.f32 %v1177, %v1185
    %s1190 = sld [smem:[#allocation10 + $0x33]]
    %v1191 = vstv %s1190
    %v1192 = vmul.f32 %v119, %v1191
    %v1193 = vmul.f32 %v120, %v1191
    %v1194 = vadd.f32 %v1188, %v1192
    %v1195 = vadd.f32 %v1189, %v1193
    %s1196 = sld [smem:[#allocation10 + $0x37]]
    %v1197 = vstv %s1196
    %v1198 = vmul.f32 %v119, %v1197
    %v1199 = vmul.f32 %v120, %v1197
    %v1202 = vrot.slane %v1198, 2
    %v1203 = vrot.slane %v1199, 2
    %v1206 = vadd.f32 %v1194, %v1202
    %v1207 = vadd.f32 %v1195, %v1203
    %s1208 = sld [smem:[#allocation10 + $0x3b]]
    %v1209 = vstv %s1208
    %v1210 = vmul.f32 %v119, %v1209
    %v1211 = vmul.f32 %v120, %v1209
    %v1214 = vrot.slane %v1210, 4
    %v1215 = vrot.slane %v1211, 4
    %v1218 = vadd.f32 %v1206, %v1214
    %v1219 = vadd.f32 %v1207, %v1215
    %s1220 = sld [smem:[#allocation10 + $0x3f]]
    %v1221 = vstv %s1220
    %v1222 = vmul.f32 %v119, %v1221
    %v1223 = vmul.f32 %v120, %v1221
    %v1226 = vrot.slane %v1222, 6
    %v1227 = vrot.slane %v1223, 6
    %v1230 = vadd.f32 %v1218, %v1226
    %v1231 = vadd.f32 %v1219, %v1227
    %s1232 = sld [smem:[#allocation10 + $0x43]]
    %v1233 = vstv %s1232
    %v1234 = vmul.f32 %v126, %v1233
    %v1235 = vmul.f32 %v127, %v1233
    %v1236 = vadd.f32 %v1230, %v1234
    %v1237 = vadd.f32 %v1231, %v1235
    %s1238 = sld [smem:[#allocation10 + $0x47]]
    %v1239 = vstv %s1238
    %v1240 = vmul.f32 %v126, %v1239
    %v1241 = vmul.f32 %v127, %v1239
    %v1244 = vrot.slane %v1240, 2
    %v1245 = vrot.slane %v1241, 2
    %v1248 = vadd.f32 %v1236, %v1244
    %v1249 = vadd.f32 %v1237, %v1245
    %s1250 = sld [smem:[#allocation10 + $0x4b]]
    %v1251 = vstv %s1250
    %v1252 = vmul.f32 %v126, %v1251
    %v1253 = vmul.f32 %v127, %v1251
    %v1256 = vrot.slane %v1252, 4
    %v1257 = vrot.slane %v1253, 4
    %v1260 = vadd.f32 %v1248, %v1256
    %v1261 = vadd.f32 %v1249, %v1257
    %s1262 = sld [smem:[#allocation10 + $0x4f]]
    %v1263 = vstv %s1262
    %v1264 = vmul.f32 %v126, %v1263
    %v1265 = vmul.f32 %v127, %v1263
    %v1268 = vrot.slane %v1264, 6
    %v1269 = vrot.slane %v1265, 6
    %v1272 = vadd.f32 %v1260, %v1268
    %v1273 = vadd.f32 %v1261, %v1269
    %s1274 = sld [smem:[#allocation10 + $0x53]]
    %v1275 = vstv %s1274
    %v1276 = vmul.f32 %v133, %v1275
    %v1277 = vmul.f32 %v134, %v1275
    %v1278 = vadd.f32 %v1272, %v1276
    %v1279 = vadd.f32 %v1273, %v1277
    %s1280 = sld [smem:[#allocation10 + $0x57]]
    %v1281 = vstv %s1280
    %v1282 = vmul.f32 %v133, %v1281
    %v1283 = vmul.f32 %v134, %v1281
    %v1286 = vrot.slane %v1282, 2
    %v1287 = vrot.slane %v1283, 2
    %v1290 = vadd.f32 %v1278, %v1286
    %v1291 = vadd.f32 %v1279, %v1287
    %s1292 = sld [smem:[#allocation10 + $0x5b]]
    %v1293 = vstv %s1292
    %v1294 = vmul.f32 %v133, %v1293
    %v1295 = vmul.f32 %v134, %v1293
    %v1298 = vrot.slane %v1294, 4
    %v1299 = vrot.slane %v1295, 4
    %v1302 = vadd.f32 %v1290, %v1298
    %v1303 = vadd.f32 %v1291, %v1299
    %s1304 = sld [smem:[#allocation10 + $0x5f]]
    %v1305 = vstv %s1304
    %v1306 = vmul.f32 %v133, %v1305
    %v1307 = vmul.f32 %v134, %v1305
    %v1310 = vrot.slane %v1306, 6
    %v1311 = vrot.slane %v1307, 6
    %v1314 = vadd.f32 %v1302, %v1310
    %v1315 = vadd.f32 %v1303, %v1311
    %s1316 = sld [smem:[#allocation10 + $0x63]]
    %v1317 = vstv %s1316
    %v1318 = vmul.f32 %v140, %v1317
    %v1319 = vmul.f32 %v141, %v1317
    %v1320 = vadd.f32 %v1314, %v1318
    %v1321 = vadd.f32 %v1315, %v1319
    %s1322 = sld [smem:[#allocation10 + $0x67]]
    %v1323 = vstv %s1322
    %v1324 = vmul.f32 %v140, %v1323
    %v1325 = vmul.f32 %v141, %v1323
    %v1328 = vrot.slane %v1324, 2
    %v1329 = vrot.slane %v1325, 2
    %v1332 = vadd.f32 %v1320, %v1328
    %v1333 = vadd.f32 %v1321, %v1329
    %s1334 = sld [smem:[#allocation10 + $0x6b]]
    %v1335 = vstv %s1334
    %v1336 = vmul.f32 %v140, %v1335
    %v1337 = vmul.f32 %v141, %v1335
    %v1340 = vrot.slane %v1336, 4
    %v1341 = vrot.slane %v1337, 4
    %v1344 = vadd.f32 %v1332, %v1340
    %v1345 = vadd.f32 %v1333, %v1341
    %s1346 = sld [smem:[#allocation10 + $0x6f]]
    %v1347 = vstv %s1346
    %v1348 = vmul.f32 %v140, %v1347
    %v1349 = vmul.f32 %v141, %v1347
    %v1352 = vrot.slane %v1348, 6
    %v1353 = vrot.slane %v1349, 6
    %v1356 = vadd.f32 %v1344, %v1352
    %v1357 = vadd.f32 %v1345, %v1353
    %s1358 = sld [smem:[#allocation11 + $0x3]]
    %v1359 = vstv %s1358
    %v1360 = vadd.f32 %v1356, %v1359
    %v1361 = vadd.f32 %v1357, %v1359
    %vm1362 = vcmp.ge.f32.partialorder %v1360, 0.0
    %vm1363 = vcmp.ge.f32.partialorder %v1361, 0.0
    %v1364 = vmul.f32 %v1360, 0.02
    %v1365 = vmul.f32 %v1361, 0.02
    %v1366 = vsel %vm1362, %v1360, %v1364
    %v1367 = vsel %vm1363, %v1361, %v1365
    %v1370 = vrot.slane %v1366, 2
    %v1371 = vrot.slane %v1367, 2
    %1374 = vst [vmem:[#allocation2] sm:$0xc0] %v1370
    %1375 = vst [vmem:[#allocation2 + $0x8] sm:$0xc0] %v1371
    %1376 = vrot.lane.b32.xlu0 %v96, 112
    %v1377 = vpop.permute.xlu0 %1376
    %1378 = vrot.lane.b32.xlu0 %v97, 112
    %v1379 = vpop.permute.xlu0 %1378
    %vm1380 = vcmp.lt.s32.totalorder %v103, 112
    %v1381 = vsel %vm1380, %v1377, %v1379
    %v1382 = vsel %vm1380, %v1379, %v1377
    %1383 = vrot.lane.b32.xlu0 %v96, 96
    %v1384 = vpop.permute.xlu0 %1383
    %1385 = vrot.lane.b32.xlu0 %v97, 96
    %v1386 = vpop.permute.xlu0 %1385
    %vm1387 = vcmp.lt.s32.totalorder %v103, 96
    %v1388 = vsel %vm1387, %v1384, %v1386
    %v1389 = vsel %vm1387, %v1386, %v1384
    %1390 = vrot.lane.b32.xlu0 %v96, 80
    %v1391 = vpop.permute.xlu0 %1390
    %1392 = vrot.lane.b32.xlu0 %v97, 80
    %v1393 = vpop.permute.xlu0 %1392
    %vm1394 = vcmp.lt.s32.totalorder %v103, 80
    %v1395 = vsel %vm1394, %v1391, %v1393
    %v1396 = vsel %vm1394, %v1393, %v1391
    %1397 = vrot.lane.b32.xlu0 %v96, 64
    %v1398 = vpop.permute.xlu0 %1397
    %1399 = vrot.lane.b32.xlu0 %v97, 64
    %v1400 = vpop.permute.xlu0 %1399
    %vm1401 = vcmp.lt.s32.totalorder %v103, 64
    %v1402 = vsel %vm1401, %v1398, %v1400
    %v1403 = vsel %vm1401, %v1400, %v1398
    %1404 = vrot.lane.b32.xlu0 %v96, 48
    %v1405 = vpop.permute.xlu0 %1404
    %1406 = vrot.lane.b32.xlu0 %v97, 48
    %v1407 = vpop.permute.xlu0 %1406
    %vm1408 = vcmp.lt.s32.totalorder %v103, 48
    %v1409 = vsel %vm1408, %v1405, %v1407
    %v1410 = vsel %vm1408, %v1407, %v1405
    %1411 = vrot.lane.b32.xlu0 %v96, 32
    %v1412 = vpop.permute.xlu0 %1411
    %1413 = vrot.lane.b32.xlu0 %v97, 32
    %v1414 = vpop.permute.xlu0 %1413
    %vm1415 = vcmp.lt.s32.totalorder %v103, 32
    %v1416 = vsel %vm1415, %v1412, %v1414
    %v1417 = vsel %vm1415, %v1414, %v1412
    %s1418 = sld [smem:[#allocation13]]
    %v1419 = vstv %s1418
    %v1420 = vmul.f32 %v96, %v1419
    %v1421 = vmul.f32 %v97, %v1419
    %s1422 = sld [smem:[#allocation13 + $0x4]]
    %v1423 = vstv %s1422
    %v1424 = vmul.f32 %v96, %v1423
    %v1425 = vmul.f32 %v97, %v1423
    %v1428 = vrot.slane %v1424, 2
    %v1429 = vrot.slane %v1425, 2
    %v1432 = vadd.f32 %v1420, %v1428
    %v1433 = vadd.f32 %v1421, %v1429
    %s1434 = sld [smem:[#allocation13 + $0x8]]
    %v1435 = vstv %s1434
    %v1436 = vmul.f32 %v96, %v1435
    %v1437 = vmul.f32 %v97, %v1435
    %v1440 = vrot.slane %v1436, 4
    %v1441 = vrot.slane %v1437, 4
    %v1444 = vadd.f32 %v1432, %v1440
    %v1445 = vadd.f32 %v1433, %v1441
    %s1446 = sld [smem:[#allocation13 + $0xc]]
    %v1447 = vstv %s1446
    %v1448 = vmul.f32 %v96, %v1447
    %v1449 = vmul.f32 %v97, %v1447
    %v1452 = vrot.slane %v1448, 6
    %v1453 = vrot.slane %v1449, 6
    %v1456 = vadd.f32 %v1444, %v1452
    %v1457 = vadd.f32 %v1445, %v1453
    %s1458 = sld [smem:[#allocation13 + $0x10]]
    %v1459 = vstv %s1458
    %v1460 = vmul.f32 %v1381, %v1459
    %v1461 = vmul.f32 %v1382, %v1459
    %v1462 = vadd.f32 %v1456, %v1460
    %v1463 = vadd.f32 %v1457, %v1461
    %s1464 = sld [smem:[#allocation13 + $0x14]]
    %v1465 = vstv %s1464
    %v1466 = vmul.f32 %v1381, %v1465
    %v1467 = vmul.f32 %v1382, %v1465
    %v1470 = vrot.slane %v1466, 2
    %v1471 = vrot.slane %v1467, 2
    %v1474 = vadd.f32 %v1462, %v1470
    %v1475 = vadd.f32 %v1463, %v1471
    %s1476 = sld [smem:[#allocation13 + $0x18]]
    %v1477 = vstv %s1476
    %v1478 = vmul.f32 %v1381, %v1477
    %v1479 = vmul.f32 %v1382, %v1477
    %v1482 = vrot.slane %v1478, 4
    %v1483 = vrot.slane %v1479, 4
    %v1486 = vadd.f32 %v1474, %v1482
    %v1487 = vadd.f32 %v1475, %v1483
    %s1488 = sld [smem:[#allocation13 + $0x1c]]
    %v1489 = vstv %s1488
    %v1490 = vmul.f32 %v1381, %v1489
    %v1491 = vmul.f32 %v1382, %v1489
    %v1494 = vrot.slane %v1490, 6
    %v1495 = vrot.slane %v1491, 6
    %v1498 = vadd.f32 %v1486, %v1494
    %v1499 = vadd.f32 %v1487, %v1495
    %s1500 = sld [smem:[#allocation13 + $0x20]]
    %v1501 = vstv %s1500
    %v1502 = vmul.f32 %v1388, %v1501
    %v1503 = vmul.f32 %v1389, %v1501
    %v1504 = vadd.f32 %v1498, %v1502
    %v1505 = vadd.f32 %v1499, %v1503
    %s1506 = sld [smem:[#allocation13 + $0x24]]
    %v1507 = vstv %s1506
    %v1508 = vmul.f32 %v1388, %v1507
    %v1509 = vmul.f32 %v1389, %v1507
    %v1512 = vrot.slane %v1508, 2
    %v1513 = vrot.slane %v1509, 2
    %v1516 = vadd.f32 %v1504, %v1512
    %v1517 = vadd.f32 %v1505, %v1513
    %s1518 = sld [smem:[#allocation13 + $0x28]]
    %v1519 = vstv %s1518
    %v1520 = vmul.f32 %v1388, %v1519
    %v1521 = vmul.f32 %v1389, %v1519
    %v1524 = vrot.slane %v1520, 4
    %v1525 = vrot.slane %v1521, 4
    %v1528 = vadd.f32 %v1516, %v1524
    %v1529 = vadd.f32 %v1517, %v1525
    %s1530 = sld [smem:[#allocation13 + $0x2c]]
    %v1531 = vstv %s1530
    %v1532 = vmul.f32 %v1388, %v1531
    %v1533 = vmul.f32 %v1389, %v1531
    %v1536 = vrot.slane %v1532, 6
    %v1537 = vrot.slane %v1533, 6
    %v1540 = vadd.f32 %v1528, %v1536
    %v1541 = vadd.f32 %v1529, %v1537
    %s1542 = sld [smem:[#allocation13 + $0x30]]
    %v1543 = vstv %s1542
    %v1544 = vmul.f32 %v1395, %v1543
    %v1545 = vmul.f32 %v1396, %v1543
    %v1546 = vadd.f32 %v1540, %v1544
    %v1547 = vadd.f32 %v1541, %v1545
    %s1548 = sld [smem:[#allocation13 + $0x34]]
    %v1549 = vstv %s1548
    %v1550 = vmul.f32 %v1395, %v1549
    %v1551 = vmul.f32 %v1396, %v1549
    %v1554 = vrot.slane %v1550, 2
    %v1555 = vrot.slane %v1551, 2
    %v1558 = vadd.f32 %v1546, %v1554
    %v1559 = vadd.f32 %v1547, %v1555
    %s1560 = sld [smem:[#allocation13 + $0x38]]
    %v1561 = vstv %s1560
    %v1562 = vmul.f32 %v1395, %v1561
    %v1563 = vmul.f32 %v1396, %v1561
    %v1566 = vrot.slane %v1562, 4
    %v1567 = vrot.slane %v1563, 4
    %v1570 = vadd.f32 %v1558, %v1566
    %v1571 = vadd.f32 %v1559, %v1567
    %s1572 = sld [smem:[#allocation13 + $0x3c]]
    %v1573 = vstv %s1572
    %v1574 = vmul.f32 %v1395, %v1573
    %v1575 = vmul.f32 %v1396, %v1573
    %v1578 = vrot.slane %v1574, 6
    %v1579 = vrot.slane %v1575, 6
    %v1582 = vadd.f32 %v1570, %v1578
    %v1583 = vadd.f32 %v1571, %v1579
    %s1584 = sld [smem:[#allocation13 + $0x40]]
    %v1585 = vstv %s1584
    %v1586 = vmul.f32 %v1402, %v1585
    %v1587 = vmul.f32 %v1403, %v1585
    %v1588 = vadd.f32 %v1582, %v1586
    %v1589 = vadd.f32 %v1583, %v1587
    %s1590 = sld [smem:[#allocation13 + $0x44]]
    %v1591 = vstv %s1590
    %v1592 = vmul.f32 %v1402, %v1591
    %v1593 = vmul.f32 %v1403, %v1591
    %v1596 = vrot.slane %v1592, 2
    %v1597 = vrot.slane %v1593, 2
    %v1600 = vadd.f32 %v1588, %v1596
    %v1601 = vadd.f32 %v1589, %v1597
    %s1602 = sld [smem:[#allocation13 + $0x48]]
    %v1603 = vstv %s1602
    %v1604 = vmul.f32 %v1402, %v1603
    %v1605 = vmul.f32 %v1403, %v1603
    %v1608 = vrot.slane %v1604, 4
    %v1609 = vrot.slane %v1605, 4
    %v1612 = vadd.f32 %v1600, %v1608
    %v1613 = vadd.f32 %v1601, %v1609
    %s1614 = sld [smem:[#allocation13 + $0x4c]]
    %v1615 = vstv %s1614
    %v1616 = vmul.f32 %v1402, %v1615
    %v1617 = vmul.f32 %v1403, %v1615
    %v1620 = vrot.slane %v1616, 6
    %v1621 = vrot.slane %v1617, 6
    %v1624 = vadd.f32 %v1612, %v1620
    %v1625 = vadd.f32 %v1613, %v1621
    %s1626 = sld [smem:[#allocation13 + $0x50]]
    %v1627 = vstv %s1626
    %v1628 = vmul.f32 %v1409, %v1627
    %v1629 = vmul.f32 %v1410, %v1627
    %v1630 = vadd.f32 %v1624, %v1628
    %v1631 = vadd.f32 %v1625, %v1629
    %s1632 = sld [smem:[#allocation13 + $0x54]]
    %v1633 = vstv %s1632
    %v1634 = vmul.f32 %v1409, %v1633
    %v1635 = vmul.f32 %v1410, %v1633
    %v1638 = vrot.slane %v1634, 2
    %v1639 = vrot.slane %v1635, 2
    %v1642 = vadd.f32 %v1630, %v1638
    %v1643 = vadd.f32 %v1631, %v1639
    %s1644 = sld [smem:[#allocation13 + $0x58]]
    %v1645 = vstv %s1644
    %v1646 = vmul.f32 %v1409, %v1645
    %v1647 = vmul.f32 %v1410, %v1645
    %v1650 = vrot.slane %v1646, 4
    %v1651 = vrot.slane %v1647, 4
    %v1654 = vadd.f32 %v1642, %v1650
    %v1655 = vadd.f32 %v1643, %v1651
    %s1656 = sld [smem:[#allocation13 + $0x5c]]
    %v1657 = vstv %s1656
    %v1658 = vmul.f32 %v1409, %v1657
    %v1659 = vmul.f32 %v1410, %v1657
    %v1662 = vrot.slane %v1658, 6
    %v1663 = vrot.slane %v1659, 6
    %v1666 = vadd.f32 %v1654, %v1662
    %v1667 = vadd.f32 %v1655, %v1663
    %s1668 = sld [smem:[#allocation13 + $0x60]]
    %v1669 = vstv %s1668
    %v1670 = vmul.f32 %v1416, %v1669
    %v1671 = vmul.f32 %v1417, %v1669
    %v1672 = vadd.f32 %v1666, %v1670
    %v1673 = vadd.f32 %v1667, %v1671
    %s1674 = sld [smem:[#allocation13 + $0x64]]
    %v1675 = vstv %s1674
    %v1676 = vmul.f32 %v1416, %v1675
    %v1677 = vmul.f32 %v1417, %v1675
    %v1680 = vrot.slane %v1676, 2
    %v1681 = vrot.slane %v1677, 2
    %v1684 = vadd.f32 %v1672, %v1680
    %v1685 = vadd.f32 %v1673, %v1681
    %s1686 = sld [smem:[#allocation13 + $0x68]]
    %v1687 = vstv %s1686
    %v1688 = vmul.f32 %v1416, %v1687
    %v1689 = vmul.f32 %v1417, %v1687
    %v1692 = vrot.slane %v1688, 4
    %v1693 = vrot.slane %v1689, 4
    %v1696 = vadd.f32 %v1684, %v1692
    %v1697 = vadd.f32 %v1685, %v1693
    %s1698 = sld [smem:[#allocation13 + $0x6c]]
    %v1699 = vstv %s1698
    %v1700 = vmul.f32 %v1416, %v1699
    %v1701 = vmul.f32 %v1417, %v1699
    %v1704 = vrot.slane %v1700, 6
    %v1705 = vrot.slane %v1701, 6
    %v1708 = vadd.f32 %v1696, %v1704
    %v1709 = vadd.f32 %v1697, %v1705
    %s1710 = sld [smem:[#allocation14]]
    %v1711 = vstv %s1710
    %v1712 = vadd.f32 %v1708, %v1711
    %v1713 = vadd.f32 %v1709, %v1711
    %vm1714 = vcmp.ge.f32.partialorder %v1712, 0.0
    %vm1715 = vcmp.ge.f32.partialorder %v1713, 0.0
    %v1716 = vmul.f32 %v1712, 0.02
    %v1717 = vmul.f32 %v1713, 0.02
    %v1718 = vsel %vm1714, %v1712, %v1716
    %v1719 = vsel %vm1715, %v1713, %v1717
    %1720 = vst [vmem:[#allocation3] sm:$0x3] %v1718
    %1721 = vst [vmem:[#allocation3 + $0x8] sm:$0x3] %v1719
    %s1722 = sld [smem:[#allocation13 + $0x1]]
    %v1723 = vstv %s1722
    %v1724 = vmul.f32 %v96, %v1723
    %v1725 = vmul.f32 %v97, %v1723
    %s1726 = sld [smem:[#allocation13 + $0x5]]
    %v1727 = vstv %s1726
    %v1728 = vmul.f32 %v96, %v1727
    %v1729 = vmul.f32 %v97, %v1727
    %v1732 = vrot.slane %v1728, 2
    %v1733 = vrot.slane %v1729, 2
    %v1736 = vadd.f32 %v1724, %v1732
    %v1737 = vadd.f32 %v1725, %v1733
    %s1738 = sld [smem:[#allocation13 + $0x9]]
    %v1739 = vstv %s1738
    %v1740 = vmul.f32 %v96, %v1739
    %v1741 = vmul.f32 %v97, %v1739
    %v1744 = vrot.slane %v1740, 4
    %v1745 = vrot.slane %v1741, 4
    %v1748 = vadd.f32 %v1736, %v1744
    %v1749 = vadd.f32 %v1737, %v1745
    %s1750 = sld [smem:[#allocation13 + $0xd]]
    %v1751 = vstv %s1750
    %v1752 = vmul.f32 %v96, %v1751
    %v1753 = vmul.f32 %v97, %v1751
    %v1756 = vrot.slane %v1752, 6
    %v1757 = vrot.slane %v1753, 6
    %v1760 = vadd.f32 %v1748, %v1756
    %v1761 = vadd.f32 %v1749, %v1757
    %s1762 = sld [smem:[#allocation13 + $0x11]]
    %v1763 = vstv %s1762
    %v1764 = vmul.f32 %v1381, %v1763
    %v1765 = vmul.f32 %v1382, %v1763
    %v1766 = vadd.f32 %v1760, %v1764
    %v1767 = vadd.f32 %v1761, %v1765
    %s1768 = sld [smem:[#allocation13 + $0x15]]
    %v1769 = vstv %s1768
    %v1770 = vmul.f32 %v1381, %v1769
    %v1771 = vmul.f32 %v1382, %v1769
    %v1774 = vrot.slane %v1770, 2
    %v1775 = vrot.slane %v1771, 2
    %v1778 = vadd.f32 %v1766, %v1774
    %v1779 = vadd.f32 %v1767, %v1775
    %s1780 = sld [smem:[#allocation13 + $0x19]]
    %v1781 = vstv %s1780
    %v1782 = vmul.f32 %v1381, %v1781
    %v1783 = vmul.f32 %v1382, %v1781
    %v1786 = vrot.slane %v1782, 4
    %v1787 = vrot.slane %v1783, 4
    %v1790 = vadd.f32 %v1778, %v1786
    %v1791 = vadd.f32 %v1779, %v1787
    %s1792 = sld [smem:[#allocation13 + $0x1d]]
    %v1793 = vstv %s1792
    %v1794 = vmul.f32 %v1381, %v1793
    %v1795 = vmul.f32 %v1382, %v1793
    %v1798 = vrot.slane %v1794, 6
    %v1799 = vrot.slane %v1795, 6
    %v1802 = vadd.f32 %v1790, %v1798
    %v1803 = vadd.f32 %v1791, %v1799
    %s1804 = sld [smem:[#allocation13 + $0x21]]
    %v1805 = vstv %s1804
    %v1806 = vmul.f32 %v1388, %v1805
    %v1807 = vmul.f32 %v1389, %v1805
    %v1808 = vadd.f32 %v1802, %v1806
    %v1809 = vadd.f32 %v1803, %v1807
    %s1810 = sld [smem:[#allocation13 + $0x25]]
    %v1811 = vstv %s1810
    %v1812 = vmul.f32 %v1388, %v1811
    %v1813 = vmul.f32 %v1389, %v1811
    %v1816 = vrot.slane %v1812, 2
    %v1817 = vrot.slane %v1813, 2
    %v1820 = vadd.f32 %v1808, %v1816
    %v1821 = vadd.f32 %v1809, %v1817
    %s1822 = sld [smem:[#allocation13 + $0x29]]
    %v1823 = vstv %s1822
    %v1824 = vmul.f32 %v1388, %v1823
    %v1825 = vmul.f32 %v1389, %v1823
    %v1828 = vrot.slane %v1824, 4
    %v1829 = vrot.slane %v1825, 4
    %v1832 = vadd.f32 %v1820, %v1828
    %v1833 = vadd.f32 %v1821, %v1829
    %s1834 = sld [smem:[#allocation13 + $0x2d]]
    %v1835 = vstv %s1834
    %v1836 = vmul.f32 %v1388, %v1835
    %v1837 = vmul.f32 %v1389, %v1835
    %v1840 = vrot.slane %v1836, 6
    %v1841 = vrot.slane %v1837, 6
    %v1844 = vadd.f32 %v1832, %v1840
    %v1845 = vadd.f32 %v1833, %v1841
    %s1846 = sld [smem:[#allocation13 + $0x31]]
    %v1847 = vstv %s1846
    %v1848 = vmul.f32 %v1395, %v1847
    %v1849 = vmul.f32 %v1396, %v1847
    %v1850 = vadd.f32 %v1844, %v1848
    %v1851 = vadd.f32 %v1845, %v1849
    %s1852 = sld [smem:[#allocation13 + $0x35]]
    %v1853 = vstv %s1852
    %v1854 = vmul.f32 %v1395, %v1853
    %v1855 = vmul.f32 %v1396, %v1853
    %v1858 = vrot.slane %v1854, 2
    %v1859 = vrot.slane %v1855, 2
    %v1862 = vadd.f32 %v1850, %v1858
    %v1863 = vadd.f32 %v1851, %v1859
    %s1864 = sld [smem:[#allocation13 + $0x39]]
    %v1865 = vstv %s1864
    %v1866 = vmul.f32 %v1395, %v1865
    %v1867 = vmul.f32 %v1396, %v1865
    %v1870 = vrot.slane %v1866, 4
    %v1871 = vrot.slane %v1867, 4
    %v1874 = vadd.f32 %v1862, %v1870
    %v1875 = vadd.f32 %v1863, %v1871
    %s1876 = sld [smem:[#allocation13 + $0x3d]]
    %v1877 = vstv %s1876
    %v1878 = vmul.f32 %v1395, %v1877
    %v1879 = vmul.f32 %v1396, %v1877
    %v1882 = vrot.slane %v1878, 6
    %v1883 = vrot.slane %v1879, 6
    %v1886 = vadd.f32 %v1874, %v1882
    %v1887 = vadd.f32 %v1875, %v1883
    %s1888 = sld [smem:[#allocation13 + $0x41]]
    %v1889 = vstv %s1888
    %v1890 = vmul.f32 %v1402, %v1889
    %v1891 = vmul.f32 %v1403, %v1889
    %v1892 = vadd.f32 %v1886, %v1890
    %v1893 = vadd.f32 %v1887, %v1891
    %s1894 = sld [smem:[#allocation13 + $0x45]]
    %v1895 = vstv %s1894
    %v1896 = vmul.f32 %v1402, %v1895
    %v1897 = vmul.f32 %v1403, %v1895
    %v1900 = vrot.slane %v1896, 2
    %v1901 = vrot.slane %v1897, 2
    %v1904 = vadd.f32 %v1892, %v1900
    %v1905 = vadd.f32 %v1893, %v1901
    %s1906 = sld [smem:[#allocation13 + $0x49]]
    %v1907 = vstv %s1906
    %v1908 = vmul.f32 %v1402, %v1907
    %v1909 = vmul.f32 %v1403, %v1907
    %v1912 = vrot.slane %v1908, 4
    %v1913 = vrot.slane %v1909, 4
    %v1916 = vadd.f32 %v1904, %v1912
    %v1917 = vadd.f32 %v1905, %v1913
    %s1918 = sld [smem:[#allocation13 + $0x4d]]
    %v1919 = vstv %s1918
    %v1920 = vmul.f32 %v1402, %v1919
    %v1921 = vmul.f32 %v1403, %v1919
    %v1924 = vrot.slane %v1920, 6
    %v1925 = vrot.slane %v1921, 6
    %v1928 = vadd.f32 %v1916, %v1924
    %v1929 = vadd.f32 %v1917, %v1925
    %s1930 = sld [smem:[#allocation13 + $0x51]]
    %v1931 = vstv %s1930
    %v1932 = vmul.f32 %v1409, %v1931
    %v1933 = vmul.f32 %v1410, %v1931
    %v1934 = vadd.f32 %v1928, %v1932
    %v1935 = vadd.f32 %v1929, %v1933
    %s1936 = sld [smem:[#allocation13 + $0x55]]
    %v1937 = vstv %s1936
    %v1938 = vmul.f32 %v1409, %v1937
    %v1939 = vmul.f32 %v1410, %v1937
    %v1942 = vrot.slane %v1938, 2
    %v1943 = vrot.slane %v1939, 2
    %v1946 = vadd.f32 %v1934, %v1942
    %v1947 = vadd.f32 %v1935, %v1943
    %s1948 = sld [smem:[#allocation13 + $0x59]]
    %v1949 = vstv %s1948
    %v1950 = vmul.f32 %v1409, %v1949
    %v1951 = vmul.f32 %v1410, %v1949
    %v1954 = vrot.slane %v1950, 4
    %v1955 = vrot.slane %v1951, 4
    %v1958 = vadd.f32 %v1946, %v1954
    %v1959 = vadd.f32 %v1947, %v1955
    %s1960 = sld [smem:[#allocation13 + $0x5d]]
    %v1961 = vstv %s1960
    %v1962 = vmul.f32 %v1409, %v1961
    %v1963 = vmul.f32 %v1410, %v1961
    %v1966 = vrot.slane %v1962, 6
    %v1967 = vrot.slane %v1963, 6
    %v1970 = vadd.f32 %v1958, %v1966
    %v1971 = vadd.f32 %v1959, %v1967
    %s1972 = sld [smem:[#allocation13 + $0x61]]
    %v1973 = vstv %s1972
    %v1974 = vmul.f32 %v1416, %v1973
    %v1975 = vmul.f32 %v1417, %v1973
    %v1976 = vadd.f32 %v1970, %v1974
    %v1977 = vadd.f32 %v1971, %v1975
    %s1978 = sld [smem:[#allocation13 + $0x65]]
    %v1979 = vstv %s1978
    %v1980 = vmul.f32 %v1416, %v1979
    %v1981 = vmul.f32 %v1417, %v1979
    %v1984 = vrot.slane %v1980, 2
    %v1985 = vrot.slane %v1981, 2
    %v1988 = vadd.f32 %v1976, %v1984
    %v1989 = vadd.f32 %v1977, %v1985
    %s1990 = sld [smem:[#allocation13 + $0x69]]
    %v1991 = vstv %s1990
    %v1992 = vmul.f32 %v1416, %v1991
    %v1993 = vmul.f32 %v1417, %v1991
    %v1996 = vrot.slane %v1992, 4
    %v1997 = vrot.slane %v1993, 4
    %v2000 = vadd.f32 %v1988, %v1996
    %v2001 = vadd.f32 %v1989, %v1997
    %s2002 = sld [smem:[#allocation13 + $0x6d]]
    %v2003 = vstv %s2002
    %v2004 = vmul.f32 %v1416, %v2003
    %v2005 = vmul.f32 %v1417, %v2003
    %v2008 = vrot.slane %v2004, 6
    %v2009 = vrot.slane %v2005, 6
    %v2012 = vadd.f32 %v2000, %v2008
    %v2013 = vadd.f32 %v2001, %v2009
    %s2014 = sld [smem:[#allocation14 + $0x1]]
    %v2015 = vstv %s2014
    %v2016 = vadd.f32 %v2012, %v2015
    %v2017 = vadd.f32 %v2013, %v2015
    %vm2018 = vcmp.ge.f32.partialorder %v2016, 0.0
    %vm2019 = vcmp.ge.f32.partialorder %v2017, 0.0
    %v2020 = vmul.f32 %v2016, 0.02
    %v2021 = vmul.f32 %v2017, 0.02
    %v2022 = vsel %vm2018, %v2016, %v2020
    %v2023 = vsel %vm2019, %v2017, %v2021
    %v2026 = vrot.slane %v2022, 6
    %v2027 = vrot.slane %v2023, 6
    %2030 = vst [vmem:[#allocation3] sm:$0xc] %v2026
    %2031 = vst [vmem:[#allocation3 + $0x8] sm:$0xc] %v2027
    %s2032 = sld [smem:[#allocation13 + $0x2]]
    %v2033 = vstv %s2032
    %v2034 = vmul.f32 %v96, %v2033
    %v2035 = vmul.f32 %v97, %v2033
    %s2036 = sld [smem:[#allocation13 + $0x6]]
    %v2037 = vstv %s2036
    %v2038 = vmul.f32 %v96, %v2037
    %v2039 = vmul.f32 %v97, %v2037
    %v2042 = vrot.slane %v2038, 2
    %v2043 = vrot.slane %v2039, 2
    %v2046 = vadd.f32 %v2034, %v2042
    %v2047 = vadd.f32 %v2035, %v2043
    %s2048 = sld [smem:[#allocation13 + $0xa]]
    %v2049 = vstv %s2048
    %v2050 = vmul.f32 %v96, %v2049
    %v2051 = vmul.f32 %v97, %v2049
    %v2054 = vrot.slane %v2050, 4
    %v2055 = vrot.slane %v2051, 4
    %v2058 = vadd.f32 %v2046, %v2054
    %v2059 = vadd.f32 %v2047, %v2055
    %s2060 = sld [smem:[#allocation13 + $0xe]]
    %v2061 = vstv %s2060
    %v2062 = vmul.f32 %v96, %v2061
    %v2063 = vmul.f32 %v97, %v2061
    %v2066 = vrot.slane %v2062, 6
    %v2067 = vrot.slane %v2063, 6
    %v2070 = vadd.f32 %v2058, %v2066
    %v2071 = vadd.f32 %v2059, %v2067
    %s2072 = sld [smem:[#allocation13 + $0x12]]
    %v2073 = vstv %s2072
    %v2074 = vmul.f32 %v1381, %v2073
    %v2075 = vmul.f32 %v1382, %v2073
    %v2076 = vadd.f32 %v2070, %v2074
    %v2077 = vadd.f32 %v2071, %v2075
    %s2078 = sld [smem:[#allocation13 + $0x16]]
    %v2079 = vstv %s2078
    %v2080 = vmul.f32 %v1381, %v2079
    %v2081 = vmul.f32 %v1382, %v2079
    %v2084 = vrot.slane %v2080, 2
    %v2085 = vrot.slane %v2081, 2
    %v2088 = vadd.f32 %v2076, %v2084
    %v2089 = vadd.f32 %v2077, %v2085
    %s2090 = sld [smem:[#allocation13 + $0x1a]]
    %v2091 = vstv %s2090
    %v2092 = vmul.f32 %v1381, %v2091
    %v2093 = vmul.f32 %v1382, %v2091
    %v2096 = vrot.slane %v2092, 4
    %v2097 = vrot.slane %v2093, 4
    %v2100 = vadd.f32 %v2088, %v2096
    %v2101 = vadd.f32 %v2089, %v2097
    %s2102 = sld [smem:[#allocation13 + $0x1e]]
    %v2103 = vstv %s2102
    %v2104 = vmul.f32 %v1381, %v2103
    %v2105 = vmul.f32 %v1382, %v2103
    %v2108 = vrot.slane %v2104, 6
    %v2109 = vrot.slane %v2105, 6
    %v2112 = vadd.f32 %v2100, %v2108
    %v2113 = vadd.f32 %v2101, %v2109
    %s2114 = sld [smem:[#allocation13 + $0x22]]
    %v2115 = vstv %s2114
    %v2116 = vmul.f32 %v1388, %v2115
    %v2117 = vmul.f32 %v1389, %v2115
    %v2118 = vadd.f32 %v2112, %v2116
    %v2119 = vadd.f32 %v2113, %v2117
    %s2120 = sld [smem:[#allocation13 + $0x26]]
    %v2121 = vstv %s2120
    %v2122 = vmul.f32 %v1388, %v2121
    %v2123 = vmul.f32 %v1389, %v2121
    %v2126 = vrot.slane %v2122, 2
    %v2127 = vrot.slane %v2123, 2
    %v2130 = vadd.f32 %v2118, %v2126
    %v2131 = vadd.f32 %v2119, %v2127
    %s2132 = sld [smem:[#allocation13 + $0x2a]]
    %v2133 = vstv %s2132
    %v2134 = vmul.f32 %v1388, %v2133
    %v2135 = vmul.f32 %v1389, %v2133
    %v2138 = vrot.slane %v2134, 4
    %v2139 = vrot.slane %v2135, 4
    %v2142 = vadd.f32 %v2130, %v2138
    %v2143 = vadd.f32 %v2131, %v2139
    %s2144 = sld [smem:[#allocation13 + $0x2e]]
    %v2145 = vstv %s2144
    %v2146 = vmul.f32 %v1388, %v2145
    %v2147 = vmul.f32 %v1389, %v2145
    %v2150 = vrot.slane %v2146, 6
    %v2151 = vrot.slane %v2147, 6
    %v2154 = vadd.f32 %v2142, %v2150
    %v2155 = vadd.f32 %v2143, %v2151
    %s2156 = sld [smem:[#allocation13 + $0x32]]
    %v2157 = vstv %s2156
    %v2158 = vmul.f32 %v1395, %v2157
    %v2159 = vmul.f32 %v1396, %v2157
    %v2160 = vadd.f32 %v2154, %v2158
    %v2161 = vadd.f32 %v2155, %v2159
    %s2162 = sld [smem:[#allocation13 + $0x36]]
    %v2163 = vstv %s2162
    %v2164 = vmul.f32 %v1395, %v2163
    %v2165 = vmul.f32 %v1396, %v2163
    %v2168 = vrot.slane %v2164, 2
    %v2169 = vrot.slane %v2165, 2
    %v2172 = vadd.f32 %v2160, %v2168
    %v2173 = vadd.f32 %v2161, %v2169
    %s2174 = sld [smem:[#allocation13 + $0x3a]]
    %v2175 = vstv %s2174
    %v2176 = vmul.f32 %v1395, %v2175
    %v2177 = vmul.f32 %v1396, %v2175
    %v2180 = vrot.slane %v2176, 4
    %v2181 = vrot.slane %v2177, 4
    %v2184 = vadd.f32 %v2172, %v2180
    %v2185 = vadd.f32 %v2173, %v2181
    %s2186 = sld [smem:[#allocation13 + $0x3e]]
    %v2187 = vstv %s2186
    %v2188 = vmul.f32 %v1395, %v2187
    %v2189 = vmul.f32 %v1396, %v2187
    %v2192 = vrot.slane %v2188, 6
    %v2193 = vrot.slane %v2189, 6
    %v2196 = vadd.f32 %v2184, %v2192
    %v2197 = vadd.f32 %v2185, %v2193
    %s2198 = sld [smem:[#allocation13 + $0x42]]
    %v2199 = vstv %s2198
    %v2200 = vmul.f32 %v1402, %v2199
    %v2201 = vmul.f32 %v1403, %v2199
    %v2202 = vadd.f32 %v2196, %v2200
    %v2203 = vadd.f32 %v2197, %v2201
    %s2204 = sld [smem:[#allocation13 + $0x46]]
    %v2205 = vstv %s2204
    %v2206 = vmul.f32 %v1402, %v2205
    %v2207 = vmul.f32 %v1403, %v2205
    %v2210 = vrot.slane %v2206, 2
    %v2211 = vrot.slane %v2207, 2
    %v2214 = vadd.f32 %v2202, %v2210
    %v2215 = vadd.f32 %v2203, %v2211
    %s2216 = sld [smem:[#allocation13 + $0x4a]]
    %v2217 = vstv %s2216
    %v2218 = vmul.f32 %v1402, %v2217
    %v2219 = vmul.f32 %v1403, %v2217
    %v2222 = vrot.slane %v2218, 4
    %v2223 = vrot.slane %v2219, 4
    %v2226 = vadd.f32 %v2214, %v2222
    %v2227 = vadd.f32 %v2215, %v2223
    %s2228 = sld [smem:[#allocation13 + $0x4e]]
    %v2229 = vstv %s2228
    %v2230 = vmul.f32 %v1402, %v2229
    %v2231 = vmul.f32 %v1403, %v2229
    %v2234 = vrot.slane %v2230, 6
    %v2235 = vrot.slane %v2231, 6
    %v2238 = vadd.f32 %v2226, %v2234
    %v2239 = vadd.f32 %v2227, %v2235
    %s2240 = sld [smem:[#allocation13 + $0x52]]
    %v2241 = vstv %s2240
    %v2242 = vmul.f32 %v1409, %v2241
    %v2243 = vmul.f32 %v1410, %v2241
    %v2244 = vadd.f32 %v2238, %v2242
    %v2245 = vadd.f32 %v2239, %v2243
    %s2246 = sld [smem:[#allocation13 + $0x56]]
    %v2247 = vstv %s2246
    %v2248 = vmul.f32 %v1409, %v2247
    %v2249 = vmul.f32 %v1410, %v2247
    %v2252 = vrot.slane %v2248, 2
    %v2253 = vrot.slane %v2249, 2
    %v2256 = vadd.f32 %v2244, %v2252
    %v2257 = vadd.f32 %v2245, %v2253
    %s2258 = sld [smem:[#allocation13 + $0x5a]]
    %v2259 = vstv %s2258
    %v2260 = vmul.f32 %v1409, %v2259
    %v2261 = vmul.f32 %v1410, %v2259
    %v2264 = vrot.slane %v2260, 4
    %v2265 = vrot.slane %v2261, 4
    %v2268 = vadd.f32 %v2256, %v2264
    %v2269 = vadd.f32 %v2257, %v2265
    %s2270 = sld [smem:[#allocation13 + $0x5e]]
    %v2271 = vstv %s2270
    %v2272 = vmul.f32 %v1409, %v2271
    %v2273 = vmul.f32 %v1410, %v2271
    %v2276 = vrot.slane %v2272, 6
    %v2277 = vrot.slane %v2273, 6
    %v2280 = vadd.f32 %v2268, %v2276
    %v2281 = vadd.f32 %v2269, %v2277
    %s2282 = sld [smem:[#allocation13 + $0x62]]
    %v2283 = vstv %s2282
    %v2284 = vmul.f32 %v1416, %v2283
    %v2285 = vmul.f32 %v1417, %v2283
    %v2286 = vadd.f32 %v2280, %v2284
    %v2287 = vadd.f32 %v2281, %v2285
    %s2288 = sld [smem:[#allocation13 + $0x66]]
    %v2289 = vstv %s2288
    %v2290 = vmul.f32 %v1416, %v2289
    %v2291 = vmul.f32 %v1417, %v2289
    %v2294 = vrot.slane %v2290, 2
    %v2295 = vrot.slane %v2291, 2
    %v2298 = vadd.f32 %v2286, %v2294
    %v2299 = vadd.f32 %v2287, %v2295
    %s2300 = sld [smem:[#allocation13 + $0x6a]]
    %v2301 = vstv %s2300
    %v2302 = vmul.f32 %v1416, %v2301
    %v2303 = vmul.f32 %v1417, %v2301
    %v2306 = vrot.slane %v2302, 4
    %v2307 = vrot.slane %v2303, 4
    %v2310 = vadd.f32 %v2298, %v2306
    %v2311 = vadd.f32 %v2299, %v2307
    %s2312 = sld [smem:[#allocation13 + $0x6e]]
    %v2313 = vstv %s2312
    %v2314 = vmul.f32 %v1416, %v2313
    %v2315 = vmul.f32 %v1417, %v2313
    %v2318 = vrot.slane %v2314, 6
    %v2319 = vrot.slane %v2315, 6
    %v2322 = vadd.f32 %v2310, %v2318
    %v2323 = vadd.f32 %v2311, %v2319
    %s2324 = sld [smem:[#allocation14 + $0x2]]
    %v2325 = vstv %s2324
    %v2326 = vadd.f32 %v2322, %v2325
    %v2327 = vadd.f32 %v2323, %v2325
    %vm2328 = vcmp.ge.f32.partialorder %v2326, 0.0
    %vm2329 = vcmp.ge.f32.partialorder %v2327, 0.0
    %v2330 = vmul.f32 %v2326, 0.02
    %v2331 = vmul.f32 %v2327, 0.02
    %v2332 = vsel %vm2328, %v2326, %v2330
    %v2333 = vsel %vm2329, %v2327, %v2331
    %v2336 = vrot.slane %v2332, 4
    %v2337 = vrot.slane %v2333, 4
    %2340 = vst [vmem:[#allocation3] sm:$0x30] %v2336
    %2341 = vst [vmem:[#allocation3 + $0x8] sm:$0x30] %v2337
    %s2342 = sld [smem:[#allocation13 + $0x3]]
    %v2343 = vstv %s2342
    %v2344 = vmul.f32 %v96, %v2343
    %v2345 = vmul.f32 %v97, %v2343
    %s2346 = sld [smem:[#allocation13 + $0x7]]
    %v2347 = vstv %s2346
    %v2348 = vmul.f32 %v96, %v2347
    %v2349 = vmul.f32 %v97, %v2347
    %v2352 = vrot.slane %v2348, 2
    %v2353 = vrot.slane %v2349, 2
    %v2356 = vadd.f32 %v2344, %v2352
    %v2357 = vadd.f32 %v2345, %v2353
    %s2358 = sld [smem:[#allocation13 + $0xb]]
    %v2359 = vstv %s2358
    %v2360 = vmul.f32 %v96, %v2359
    %v2361 = vmul.f32 %v97, %v2359
    %v2364 = vrot.slane %v2360, 4
    %v2365 = vrot.slane %v2361, 4
    %v2368 = vadd.f32 %v2356, %v2364
    %v2369 = vadd.f32 %v2357, %v2365
    %s2370 = sld [smem:[#allocation13 + $0xf]]
    %v2371 = vstv %s2370
    %v2372 = vmul.f32 %v96, %v2371
    %v2373 = vmul.f32 %v97, %v2371
    %v2376 = vrot.slane %v2372, 6
    %v2377 = vrot.slane %v2373, 6
    %v2380 = vadd.f32 %v2368, %v2376
    %v2381 = vadd.f32 %v2369, %v2377
    %s2382 = sld [smem:[#allocation13 + $0x13]]
    %v2383 = vstv %s2382
    %v2384 = vmul.f32 %v1381, %v2383
    %v2385 = vmul.f32 %v1382, %v2383
    %v2386 = vadd.f32 %v2380, %v2384
    %v2387 = vadd.f32 %v2381, %v2385
    %s2388 = sld [smem:[#allocation13 + $0x17]]
    %v2389 = vstv %s2388
    %v2390 = vmul.f32 %v1381, %v2389
    %v2391 = vmul.f32 %v1382, %v2389
    %v2394 = vrot.slane %v2390, 2
    %v2395 = vrot.slane %v2391, 2
    %v2398 = vadd.f32 %v2386, %v2394
    %v2399 = vadd.f32 %v2387, %v2395
    %s2400 = sld [smem:[#allocation13 + $0x1b]]
    %v2401 = vstv %s2400
    %v2402 = vmul.f32 %v1381, %v2401
    %v2403 = vmul.f32 %v1382, %v2401
    %v2406 = vrot.slane %v2402, 4
    %v2407 = vrot.slane %v2403, 4
    %v2410 = vadd.f32 %v2398, %v2406
    %v2411 = vadd.f32 %v2399, %v2407
    %s2412 = sld [smem:[#allocation13 + $0x1f]]
    %v2413 = vstv %s2412
    %v2414 = vmul.f32 %v1381, %v2413
    %v2415 = vmul.f32 %v1382, %v2413
    %v2418 = vrot.slane %v2414, 6
    %v2419 = vrot.slane %v2415, 6
    %v2422 = vadd.f32 %v2410, %v2418
    %v2423 = vadd.f32 %v2411, %v2419
    %s2424 = sld [smem:[#allocation13 + $0x23]]
    %v2425 = vstv %s2424
    %v2426 = vmul.f32 %v1388, %v2425
    %v2427 = vmul.f32 %v1389, %v2425
    %v2428 = vadd.f32 %v2422, %v2426
    %v2429 = vadd.f32 %v2423, %v2427
    %s2430 = sld [smem:[#allocation13 + $0x27]]
    %v2431 = vstv %s2430
    %v2432 = vmul.f32 %v1388, %v2431
    %v2433 = vmul.f32 %v1389, %v2431
    %v2436 = vrot.slane %v2432, 2
    %v2437 = vrot.slane %v2433, 2
    %v2440 = vadd.f32 %v2428, %v2436
    %v2441 = vadd.f32 %v2429, %v2437
    %s2442 = sld [smem:[#allocation13 + $0x2b]]
    %v2443 = vstv %s2442
    %v2444 = vmul.f32 %v1388, %v2443
    %v2445 = vmul.f32 %v1389, %v2443
    %v2448 = vrot.slane %v2444, 4
    %v2449 = vrot.slane %v2445, 4
    %v2452 = vadd.f32 %v2440, %v2448
    %v2453 = vadd.f32 %v2441, %v2449
    %s2454 = sld [smem:[#allocation13 + $0x2f]]
    %v2455 = vstv %s2454
    %v2456 = vmul.f32 %v1388, %v2455
    %v2457 = vmul.f32 %v1389, %v2455
    %v2460 = vrot.slane %v2456, 6
    %v2461 = vrot.slane %v2457, 6
    %v2464 = vadd.f32 %v2452, %v2460
    %v2465 = vadd.f32 %v2453, %v2461
    %s2466 = sld [smem:[#allocation13 + $0x33]]
    %v2467 = vstv %s2466
    %v2468 = vmul.f32 %v1395, %v2467
    %v2469 = vmul.f32 %v1396, %v2467
    %v2470 = vadd.f32 %v2464, %v2468
    %v2471 = vadd.f32 %v2465, %v2469
    %s2472 = sld [smem:[#allocation13 + $0x37]]
    %v2473 = vstv %s2472
    %v2474 = vmul.f32 %v1395, %v2473
    %v2475 = vmul.f32 %v1396, %v2473
    %v2478 = vrot.slane %v2474, 2
    %v2479 = vrot.slane %v2475, 2
    %v2482 = vadd.f32 %v2470, %v2478
    %v2483 = vadd.f32 %v2471, %v2479
    %s2484 = sld [smem:[#allocation13 + $0x3b]]
    %v2485 = vstv %s2484
    %v2486 = vmul.f32 %v1395, %v2485
    %v2487 = vmul.f32 %v1396, %v2485
    %v2490 = vrot.slane %v2486, 4
    %v2491 = vrot.slane %v2487, 4
    %v2494 = vadd.f32 %v2482, %v2490
    %v2495 = vadd.f32 %v2483, %v2491
    %s2496 = sld [smem:[#allocation13 + $0x3f]]
    %v2497 = vstv %s2496
    %v2498 = vmul.f32 %v1395, %v2497
    %v2499 = vmul.f32 %v1396, %v2497
    %v2502 = vrot.slane %v2498, 6
    %v2503 = vrot.slane %v2499, 6
    %v2506 = vadd.f32 %v2494, %v2502
    %v2507 = vadd.f32 %v2495, %v2503
    %s2508 = sld [smem:[#allocation13 + $0x43]]
    %v2509 = vstv %s2508
    %v2510 = vmul.f32 %v1402, %v2509
    %v2511 = vmul.f32 %v1403, %v2509
    %v2512 = vadd.f32 %v2506, %v2510
    %v2513 = vadd.f32 %v2507, %v2511
    %s2514 = sld [smem:[#allocation13 + $0x47]]
    %v2515 = vstv %s2514
    %v2516 = vmul.f32 %v1402, %v2515
    %v2517 = vmul.f32 %v1403, %v2515
    %v2520 = vrot.slane %v2516, 2
    %v2521 = vrot.slane %v2517, 2
    %v2524 = vadd.f32 %v2512, %v2520
    %v2525 = vadd.f32 %v2513, %v2521
    %s2526 = sld [smem:[#allocation13 + $0x4b]]
    %v2527 = vstv %s2526
    %v2528 = vmul.f32 %v1402, %v2527
    %v2529 = vmul.f32 %v1403, %v2527
    %v2532 = vrot.slane %v2528, 4
    %v2533 = vrot.slane %v2529, 4
    %v2536 = vadd.f32 %v2524, %v2532
    %v2537 = vadd.f32 %v2525, %v2533
    %s2538 = sld [smem:[#allocation13 + $0x4f]]
    %v2539 = vstv %s2538
    %v2540 = vmul.f32 %v1402, %v2539
    %v2541 = vmul.f32 %v1403, %v2539
    %v2544 = vrot.slane %v2540, 6
    %v2545 = vrot.slane %v2541, 6
    %v2548 = vadd.f32 %v2536, %v2544
    %v2549 = vadd.f32 %v2537, %v2545
    %s2550 = sld [smem:[#allocation13 + $0x53]]
    %v2551 = vstv %s2550
    %v2552 = vmul.f32 %v1409, %v2551
    %v2553 = vmul.f32 %v1410, %v2551
    %v2554 = vadd.f32 %v2548, %v2552
    %v2555 = vadd.f32 %v2549, %v2553
    %s2556 = sld [smem:[#allocation13 + $0x57]]
    %v2557 = vstv %s2556
    %v2558 = vmul.f32 %v1409, %v2557
    %v2559 = vmul.f32 %v1410, %v2557
    %v2562 = vrot.slane %v2558, 2
    %v2563 = vrot.slane %v2559, 2
    %v2566 = vadd.f32 %v2554, %v2562
    %v2567 = vadd.f32 %v2555, %v2563
    %s2568 = sld [smem:[#allocation13 + $0x5b]]
    %v2569 = vstv %s2568
    %v2570 = vmul.f32 %v1409, %v2569
    %v2571 = vmul.f32 %v1410, %v2569
    %v2574 = vrot.slane %v2570, 4
    %v2575 = vrot.slane %v2571, 4
    %v2578 = vadd.f32 %v2566, %v2574
    %v2579 = vadd.f32 %v2567, %v2575
    %s2580 = sld [smem:[#allocation13 + $0x5f]]
    %v2581 = vstv %s2580
    %v2582 = vmul.f32 %v1409, %v2581
    %v2583 = vmul.f32 %v1410, %v2581
    %v2586 = vrot.slane %v2582, 6
    %v2587 = vrot.slane %v2583, 6
    %v2590 = vadd.f32 %v2578, %v2586
    %v2591 = vadd.f32 %v2579, %v2587
    %s2592 = sld [smem:[#allocation13 + $0x63]]
    %v2593 = vstv %s2592
    %v2594 = vmul.f32 %v1416, %v2593
    %v2595 = vmul.f32 %v1417, %v2593
    %v2596 = vadd.f32 %v2590, %v2594
    %v2597 = vadd.f32 %v2591, %v2595
    %s2598 = sld [smem:[#allocation13 + $0x67]]
    %v2599 = vstv %s2598
    %v2600 = vmul.f32 %v1416, %v2599
    %v2601 = vmul.f32 %v1417, %v2599
    %v2604 = vrot.slane %v2600, 2
    %v2605 = vrot.slane %v2601, 2
    %v2608 = vadd.f32 %v2596, %v2604
    %v2609 = vadd.f32 %v2597, %v2605
    %s2610 = sld [smem:[#allocation13 + $0x6b]]
    %v2611 = vstv %s2610
    %v2612 = vmul.f32 %v1416, %v2611
    %v2613 = vmul.f32 %v1417, %v2611
    %v2616 = vrot.slane %v2612, 4
    %v2617 = vrot.slane %v2613, 4
    %v2620 = vadd.f32 %v2608, %v2616
    %v2621 = vadd.f32 %v2609, %v2617
    %s2622 = sld [smem:[#allocation13 + $0x6f]]
    %v2623 = vstv %s2622
    %v2624 = vmul.f32 %v1416, %v2623
    %v2625 = vmul.f32 %v1417, %v2623
    %v2628 = vrot.slane %v2624, 6
    %v2629 = vrot.slane %v2625, 6
    %v2632 = vadd.f32 %v2620, %v2628
    %v2633 = vadd.f32 %v2621, %v2629
    %s2634 = sld [smem:[#allocation14 + $0x3]]
    %v2635 = vstv %s2634
    %v2636 = vadd.f32 %v2632, %v2635
    %v2637 = vadd.f32 %v2633, %v2635
    %vm2638 = vcmp.ge.f32.partialorder %v2636, 0.0
    %vm2639 = vcmp.ge.f32.partialorder %v2637, 0.0
    %v2640 = vmul.f32 %v2636, 0.02
    %v2641 = vmul.f32 %v2637, 0.02
    %v2642 = vsel %vm2638, %v2636, %v2640
    %v2643 = vsel %vm2639, %v2637, %v2641
    %v2646 = vrot.slane %v2642, 2
    %v2647 = vrot.slane %v2643, 2
    %2650 = vst [vmem:[#allocation3] sm:$0xc0] %v2646
    %2651 = vst [vmem:[#allocation3 + $0x8] sm:$0xc0] %v2647
    %v2652 = vld [vmem:[#allocation8] ss:$4 sm:$0x3]
    %s2653 = scalar_lea.vmem [#allocation8], 1
    %v2654 = vld [vmem:[%s2653] ss:$4 sm:$0x3]
    %s2655 = scalar_lea.vmem [#allocation8], 2
    %v2656 = vld [vmem:[%s2655] ss:$4 sm:$0x3]
    %s2657 = scalar_lea.vmem [#allocation8], 3
    %v2658 = vld [vmem:[%s2657] ss:$4 sm:$0x3]
    %v2659 = vld [vmem:[#allocation2] sm:$0xff]
    %v2660 = vld [vmem:[#allocation2 + $0x8] sm:$0xff]
    %v2662 = vlaneseq
    %v2663 = vshrl.u32 %v2662, 7
    %v2664 = vsub.s32 0, %v2663
    %v2665 = vrot.slane %v2652, %v2664
    %v2666 = vlaneseq
    %v2667 = vshrl.u32 %v2666, 7
    %v2668 = vsub.s32 1, %v2667
    %v2669 = vrot.slane %v2652, %v2668
    %v2672 = vmul.f32 %v2659, %v2665
    %v2673 = vmul.f32 %v2660, %v2669
    %2674 = vrot.lane.b32.xlu0 %v2672, 120
    %v2675 = vpop.permute.xlu0 %2674
    %2676 = vrot.lane.b32.xlu0 %v2673, 120
    %v2677 = vpop.permute.xlu0 %2676
    %vm2678 = vcmp.lt.s32.totalorder %v103, 120
    %v2679 = vsel %vm2678, %v2675, %v2677
    %v2680 = vsel %vm2678, %v2677, %v2675
    %v2681 = vadd.f32 %v2672, %v2679
    %v2682 = vadd.f32 %v2673, %v2680
    %2683 = vrot.lane.b32.xlu0 %v2681, 124
    %v2684 = vpop.permute.xlu0 %2683
    %2685 = vrot.lane.b32.xlu0 %v2682, 124
    %v2686 = vpop.permute.xlu0 %2685
    %v2687 = vsel %vm125, %v2684, %v2686
    %v2688 = vsel %vm125, %v2686, %v2684
    %v2689 = vadd.f32 %v2681, %v2687
    %v2690 = vadd.f32 %v2682, %v2688
    %2691 = vrot.lane.b32.xlu0 %v2689, 126
    %v2692 = vpop.permute.xlu0 %2691
    %2693 = vrot.lane.b32.xlu0 %v2690, 126
    %v2694 = vpop.permute.xlu0 %2693
    %v2695 = vsel %vm111, %v2692, %v2694
    %v2696 = vsel %vm111, %v2694, %v2692
    %v2697 = vadd.f32 %v2689, %v2695
    %v2698 = vadd.f32 %v2690, %v2696
    %2699 = vrot.lane.b32.xlu0 %v2697, 127
    %v2700 = vpop.permute.xlu0 %2699
    %2701 = vrot.lane.b32.xlu0 %v2698, 127
    %v2702 = vpop.permute.xlu0 %2701
    %v2703 = vsel %vm104, %v2700, %v2702
    %v2704 = vsel %vm104, %v2702, %v2700
    %v2705 = vadd.f32 %v2697, %v2703
    %v2706 = vadd.f32 %v2698, %v2704
    %v2708 = vlaneseq
    %v2709 = vshrl.u32 %v2708, 7
    %v2710 = vsub.s32 0, %v2709
    %v2711 = vrot.slane %v2656, %v2710
    %v2712 = vlaneseq
    %v2713 = vshrl.u32 %v2712, 7
    %v2714 = vsub.s32 1, %v2713
    %v2715 = vrot.slane %v2656, %v2714
    %v2718 = vmul.f32 %v2705, %v2711
    %v2719 = vmul.f32 %v2706, %v2715
    %2720 = vrot.lane.b32.xlu0 %v2718, 1
    %v2721 = vpop.permute.xlu0 %2720
    %2722 = vrot.lane.b32.xlu0 %v2719, 1
    %v2723 = vpop.permute.xlu0 %2722
    %vm2724 = vcmp.lt.s32.totalorder %v103, 1
    %v2725 = vsel %vm2724, %v2721, %v2723
    %v2726 = vsel %vm2724, %v2723, %v2721
    %v2727 = vadd.f32 %v2718, %v2726
    %v2728 = vadd.f32 %v2719, %v2725
    %2729 = vrot.lane.b32.xlu0 %v2727, 2
    %v2730 = vpop.permute.xlu0 %2729
    %2731 = vrot.lane.b32.xlu0 %v2728, 2
    %v2732 = vpop.permute.xlu0 %2731
    %vm2733 = vcmp.lt.s32.totalorder %v103, 2
    %v2734 = vsel %vm2733, %v2730, %v2732
    %v2735 = vsel %vm2733, %v2732, %v2730
    %v2736 = vadd.f32 %v2727, %v2735
    %v2737 = vadd.f32 %v2728, %v2734
    %2738 = vrot.lane.b32.xlu0 %v2736, 4
    %v2739 = vpop.permute.xlu0 %2738
    %2740 = vrot.lane.b32.xlu0 %v2737, 4
    %v2741 = vpop.permute.xlu0 %2740
    %vm2742 = vcmp.lt.s32.totalorder %v103, 4
    %v2743 = vsel %vm2742, %v2739, %v2741
    %v2744 = vsel %vm2742, %v2741, %v2739
    %v2745 = vadd.f32 %v2736, %v2744
    %v2746 = vadd.f32 %v2737, %v2743
    %2747 = vrot.lane.b32.xlu0 %v2745, 8
    %v2748 = vpop.permute.xlu0 %2747
    %2749 = vrot.lane.b32.xlu0 %v2746, 8
    %v2750 = vpop.permute.xlu0 %2749
    %vm2751 = vcmp.lt.s32.totalorder %v103, 8
    %v2752 = vsel %vm2751, %v2748, %v2750
    %v2753 = vsel %vm2751, %v2750, %v2748
    %v2754 = vadd.f32 %v2745, %v2753
    %v2755 = vadd.f32 %v2746, %v2752
    %v2756 = vld [vmem:[#allocation3] sm:$0xff]
    %v2757 = vld [vmem:[#allocation3 + $0x8] sm:$0xff]
    %v2759 = vlaneseq
    %v2760 = vshrl.u32 %v2759, 7
    %v2761 = vsub.s32 0, %v2760
    %v2762 = vrot.slane %v2654, %v2761
    %v2763 = vlaneseq
    %v2764 = vshrl.u32 %v2763, 7
    %v2765 = vsub.s32 1, %v2764
    %v2766 = vrot.slane %v2654, %v2765
    %v2769 = vmul.f32 %v2756, %v2762
    %v2770 = vmul.f32 %v2757, %v2766
    %v2771 = vadd.f32 %v2769, %v2770
    %2772 = vrot.lane.b32.xlu0 %v2771, 64
    %v2773 = vpop.permute.xlu0 %2772
    %v2774 = vadd.f32 %v2771, %v2773
    %2775 = vrot.lane.b32.xlu0 %v2774, 96
    %v2776 = vpop.permute.xlu0 %2775
    %v2777 = vadd.f32 %v2774, %v2776
    %2778 = vrot.lane.b32.xlu0 %v2777, 112
    %v2779 = vpop.permute.xlu0 %2778
    %v2780 = vadd.f32 %v2777, %v2779
    %v2782 = vlaneseq
    %v2783 = vshrl.u32 %v2782, 7
    %v2784 = vsub.s32 0, %v2783
    %v2785 = vrot.slane %v2658, %v2784
    %v2786 = vlaneseq
    %v2787 = vshrl.u32 %v2786, 7
    %v2788 = vsub.s32 1, %v2787
    %v2789 = vrot.slane %v2658, %v2788
    %v2792 = vmul.f32 %v2780, %v2785
    %v2793 = vmul.f32 %v2780, %v2789
    %2794 = vrot.lane.b32.xlu0 %v2792, 16
    %v2795 = vpop.permute.xlu0 %2794
    %2796 = vrot.lane.b32.xlu0 %v2793, 16
    %v2797 = vpop.permute.xlu0 %2796
    %vm2798 = vcmp.lt.s32.totalorder %v103, 16
    %v2799 = vsel %vm2798, %v2795, %v2797
    %v2800 = vsel %vm2798, %v2797, %v2795
    %v2801 = vadd.f32 %v2792, %v2800
    %v2802 = vadd.f32 %v2793, %v2799
    %2803 = vrot.lane.b32.xlu0 %v2801, 32
    %v2804 = vpop.permute.xlu0 %2803
    %2805 = vrot.lane.b32.xlu0 %v2802, 32
    %v2806 = vpop.permute.xlu0 %2805
    %v2807 = vsel %vm1415, %v2804, %v2806
    %v2808 = vsel %vm1415, %v2806, %v2804
    %v2809 = vadd.f32 %v2801, %v2808
    %v2810 = vadd.f32 %v2802, %v2807
    %2811 = vrot.lane.b32.xlu0 %v2809, 64
    %v2812 = vpop.permute.xlu0 %2811
    %2813 = vrot.lane.b32.xlu0 %v2810, 64
    %v2814 = vpop.permute.xlu0 %2813
    %v2815 = vsel %vm1401, %v2812, %v2814
    %v2816 = vsel %vm1401, %v2814, %v2812
    %v2817 = vadd.f32 %v2809, %v2816
    %v2818 = vadd.f32 %v2810, %v2815
    %v2819 = vadd.f32 %v2817, %v2818
    %v2820 = vmul.f32 %v2754, %v2819
    %v2821 = vmul.f32 %v2755, %v2819
    %v2822 = vxor.u32 %v2820, 2147483648
    %v2823 = vxor.u32 %v2821, 2147483648
    %v2824 = vmul.f32 %v2822, 1.442695
    %v2825 = vpow.pop %v2824
    %v2826 = vmul.f32 %v2823, 1.442695
    %v2827 = vpow.pop %v2826
    %v2828 = vadd.f32 %v2825, 1.0
    %v2829 = vadd.f32 %v2827, 1.0
    %v2830 = vrcp.pop %v2828
    %v2831 = vmul.f32 1.0, %v2830
    %v2832 = vrcp.pop %v2829
    %v2833 = vmul.f32 1.0, %v2832
    %2834 = vst [vmem:[#allocation16] sm:$0xff] %v2831
    %2835 = vst [vmem:[#allocation16 + $0x8] sm:$0xff] %v2833
    // Predicated region
    $region50: #{tpu_custom_call.1} parent=1 // pred_check
      _
    $region51: #{tpu_custom_call.1} parent=1 // pred_check_branch
      %2837 = sbr.rel (0) target = $region53
    $region52: #{tpu_custom_call.1} parent=1 // pred_region
      %s2839 = ssub.s32 256, 256
      %2840 = vsyncadd [#allocation6], %s2839
      %s2842 = sshll.u32 [#allocation16], 4
      %s2843 = int_to_ptr.vmem [resolvable:$true] %s2842
      %2845 = dma.vmem_to_hbm [thread:$0]  %s2843, 256, %s6, [#allocation6]
    $region53: #{tpu_custom_call.1} parent=1 // pred_fallthru
      _
    // Predicated region
    $region54: #{tpu_custom_call.1} parent=1 // pred_check
      _
    $region55: #{tpu_custom_call.1} parent=1 // pred_check_branch
      %2847 = sbr.rel (0) target = $region57
    $region56: #{tpu_custom_call.1} parent=1 // pred_region
      %2848 = dma.done [#allocation6], 256
    $region57: #{tpu_custom_call.1} parent=1 // pred_fallthru
      _
    %2849 = vsyncpa [#allocation5], 1
    %2850 = vsyncpa [#allocation9], 1
    %2851 = vsyncpa [#allocation6], 1
    %2852 = vsyncpa [#allocation7], 1
    %2853 = vsyncpa [#allocation12], 1
    %2854 = vsyncpa [#allocation15], 1

</llo_original>
